<compile_context>
chip_gen: v7x
topology: tpu7x:2x2x1
jax: 0.10.0
libtpu: 0.0.40
codegen_flags: <defaults>
</compile_context>

<pallas_src>
import functools

import jax
import jax.numpy as jnp
from jax.experimental import pallas as pl
from jax.experimental.pallas import tpu as pltpu


def ufl_attention_kernel(x_ref, p_ref, o_ref, *, num_heads, dim, eps, sub):
    """One batch tile of UFLAttention.

    x_ref : (BT, D)    input features (feature/j axis on lanes)
    p_ref : (H, 6, D)  per-head affine params [w_q, b_q, w_k, b_k, w_v, b_v]
    o_ref : (BT, D)    output block = x + sum_h att_h
    """
    x = x_ref[...]                                   # (BT, D) f32
    inv_sqrt_d = jnp.float32(1.0 / float(dim) ** 0.5)

    # Residual first; every head then accumulates into the resident VMEM block.
    o_ref[...] = x.astype(o_ref.dtype)

    # Static i-chunks: a (BT, cur, D) slab streams through VMEM instead of
    # materializing full (BT, D, D) per-head temporaries. Offsets/sizes are
    # Python ints -> purely static slicing.
    chunks = [(off, min(sub, dim - off)) for off in range(0, dim, sub)]

    # Head loop: not unrolled — one head's recip/exp chain already saturates
    # the single EUP, and the unrolled i-chunks below give plenty of overlap.
    @pl.loop(0, num_heads)
    def _(h):
        p = p_ref[h]                                 # (6, D)
        q = p[0:1, :] * x + p[1:2, :]                # (BT, D)
        k = p[2:3, :] * x + p[3:4, :]                # (BT, D)
        v_s = (p[4:5, :] * x + p[5:6, :]) * inv_sqrt_d   # 1/sqrt(D) folded in
        q3 = q[:, None, :]                           # (BT, 1, D)  no relayout
        v3 = v_s[:, None, :]                         # (BT, 1, D)  no relayout

        for off, cur in chunks:
            # Small lane->sublane relayout of this chunk's k (BT, cur) — the
            # per-chunk XLU work totals one (BT, D) relayout per head and
            # overlaps with the EUP chain of neighbouring chunks.
            k3 = k[:, off:off + cur][:, :, None]     # (BT, cur, 1)
            # s = 1/(|q_j - k_i| + eps); exact f32 (s reaches up to 1/eps).
            s = 1.0 / (jnp.abs(q3 - k3) + eps)       # (BT, cur, D)
            m = jnp.max(s, axis=-1, keepdims=True)   # (BT, cur, 1)
            e = jnp.exp(s - m)                       # (BT, cur, D)
            den = jnp.sum(e, axis=-1)                # (BT, cur)  XLU lane-reduce
            num = jnp.sum(e * v3, axis=-1)           # (BT, cur)  VPU mul + reduce
            att = num / den                          # (BT, cur)  tiny exact divide
            o_ref[:, off:off + cur] += att.astype(o_ref.dtype)


def _vmem_capacity_bytes():
    """Per-core VMEM capacity; conservative (v7x) fallback if unavailable."""
    try:
        info = pltpu.get_tpu_info()
        for name in ("vmem_capacity_bytes", "vmem_bytes", "vmem_size_bytes"):
            val = getattr(info, name, None)
            if val:
                return int(val)
    except Exception:
        pass
    return 64 << 20


def _pick_tiles(B, D, cap_bytes):
    """Pick (batch tile, i-chunk) from the per-generation VMEM budget."""
    slab_budget = max(cap_bytes // 2, 2 << 20)

    def pick_sub(bt_):
        s = slab_budget // (6 * 4 * bt_ * max(D, 1))   # ~6 live slab-sized temps
        s = int(min(s, D, 512))
        if s >= 8:
            s = (s // 8) * 8                            # sublane granularity
        s = max(s, 1)
        # Bound the number of statically unrolled i-chunks (code size).
        min_sub = -(-D // 64)
        if min_sub > 8:
            min_sub = ((min_sub + 7) // 8) * 8
        return max(min(s, D), min(min_sub, D))

    # Batch tiles: multiples of 8 (sublane rule) that divide B, capped at 256.
    candidates = [c for c in range(8, min(B, 256) + 1, 8) if B % c == 0]
    if not candidates:
        candidates = [B]                                # e.g. B < 8 / odd B
    split = sorted([c for c in candidates if c < B], reverse=True)
    ordered = split if split else [max(candidates)]     # prefer >= 2 programs
    bt = ordered[-1]
    for c in ordered:
        if 6 * 4 * c * pick_sub(c) * D <= slab_budget:
            bt = c
            break
    return bt, pick_sub(bt)


def ufl_attention(x, params, eps=1e-8, max_sub=None):
    """x: (B, D) f32, params: (num_heads, 6, D) f32 -> (B, D) f32."""
    B, D = x.shape
    H = params.shape[0]
    if H == 0:
        return x

    cap_bytes = min(int(_vmem_capacity_bytes() * 0.9), 100 << 20)
    bt, sub = _pick_tiles(B, D, cap_bytes)
    if max_sub is not None:                      # test / tuning hook
        sub = max(1, min(sub, int(max_sub)))

    kernel = functools.partial(
        ufl_attention_kernel, num_heads=H, dim=D, eps=float(eps), sub=sub)

    # Transcendental-heavy profile: exp + reciprocal over H*B*D^2 elements.
    cost = pl.CostEstimate(
        flops=10 * H * B * D * D,
        transcendentals=2 * H * B * D * D,
        bytes_accessed=4 * (2 * B * D + 6 * H * D),
    )

    bytes_btd = 4 * bt * D
    est = (4 * bytes_btd                 # x-in + out blocks, double-buffered
           + 2 * 4 * H * 6 * D           # params block, double-buffered
           + 6 * bytes_btd               # x / q / k / v_s values + slack
           + 6 * 4 * bt * sub * D        # streaming slab temporaries
           + (8 << 20))                  # headroom
    vmem_limit = int(min(max(est, 32 << 20), cap_bytes))

    grid = (B // bt,)
    return pl.pallas_call(
        kernel,
        out_shape=jax.ShapeDtypeStruct((B, D), x.dtype),
        grid_spec=pltpu.PrefetchScalarGridSpec(
            num_scalar_prefetch=0,
            grid=grid,
            in_specs=[
                pl.BlockSpec((bt, D), lambda b: (b, 0)),       # x batch tile
                pl.BlockSpec((H, 6, D), lambda b: (0, 0, 0)),  # full params
            ],
            out_specs=pl.BlockSpec((bt, D), lambda b: (b, 0)),
        ),
        compiler_params=pltpu.CompilerParams(
            dimension_semantics=("parallel",),
            vmem_limit_bytes=vmem_limit,
        ),
        cost_estimate=cost,
    )(x, params)


def ufl_attention_ref(x, params, eps=1e-8):
    """Pure-JAX reference mirroring the PyTorch forward."""
    B, D = x.shape
    acc = jnp.zeros_like(x)
    for h in range(params.shape[0]):
        wq, bq, wk, bk, wv, bv = (params[h, i] for i in range(6))
        q = wq * x + bq
        k = wk * x + bk
        v = wv * x + bv
        diff = jnp.abs(q[:, None, :] - k[:, :, None]) + eps
        sim = jax.nn.softmax(1.0 / diff, axis=-1) / jnp.sqrt(jnp.float32(D))
        acc = acc + jnp.einsum("bij,bj->bi", sim, v)
    return x + acc


def _make_params(key, H, D):
    # Deterministic init matching reset_parameters(): weights ~ U(0,1), biases 0.
    w = jax.random.uniform(key, (H, 3, D), dtype=jnp.float32)   # [q, k, v] weights
    b = jnp.zeros((H, 3, D), dtype=jnp.float32)
    return jnp.stack(
        [w[:, 0], b[:, 0], w[:, 1], b[:, 1], w[:, 2], b[:, 2]], axis=1
    )  # (H, 6, D)


if __name__ == "__main__":
    key = jax.random.PRNGKey(0)
    k1, k2, k3, k4 = jax.random.split(key, 4)

    # Case 1: module-sized example (single program, single i-chunk).
    B, D, H = 8, 128, 2
    x = jax.random.normal(k1, (B, D), dtype=jnp.float32)
    params = _make_params(k2, H, D)
    out = jax.block_until_ready(ufl_attention(x, params))
    ref = jax.block_until_ready(ufl_attention_ref(x, params))
    assert out.shape == (B, D) and out.dtype == jnp.float32
    assert jnp.allclose(out, ref, atol=2e-4, rtol=2e-4), "mismatch vs reference (case 1)"

    # Case 2: exercise the multi-program grid and the streamed i-chunk path.
    B2, D2, H2 = 32, 256, 3
    x2 = jax.random.normal(k3, (B2, D2), dtype=jnp.float32)
    params2 = _make_params(k4, H2, D2)
    out2 = jax.block_until_ready(ufl_attention(x2, params2, max_sub=32))
    ref2 = jax.block_until_ready(ufl_attention_ref(x2, params2))
    assert out2.shape == (B2, D2) and out2.dtype == jnp.float32
    assert jnp.allclose(out2, ref2, atol=2e-4, rtol=2e-4), "mismatch vs reference (case 2)"

    print("KERNEL_OK")
</pallas_src>

<mosaic_0001>
module attributes {stable_mosaic.version = 11 : i64} {
  func.func @ufl_attention_kernel(%arg0: i32, %arg1: memref<8x128xf32, #tpu.memory_space<vmem>>, %arg2: memref<2x6x128xf32, #tpu.memory_space<vmem>>, %arg3: memref<8x128xf32, #tpu.memory_space<vmem>>) attributes {dimension_semantics = [#tpu.dimension_semantics<parallel>], iteration_bounds = array<i64: 1>, scalar_prefetch = 0 : i64, scratch_operands = 0 : i64, tpu.core_type = #tpu.core_type<tc>, window_params = [{transform_indices = @transform_0, window_bounds = array<i64: 8, 128>}, {pipeline_mode = #tpu.pipeline_mode<synchronous>, transform_indices = @transform_1, window_bounds = array<i64: 2, 6, 128>}, {transform_indices = @transform_2, window_bounds = array<i64: 8, 128>}]} {
    %c0 = arith.constant 0 : index
    %c0_0 = arith.constant 0 : index
    %0 = vector.load %arg1[%c0, %c0_0] : memref<8x128xf32, #tpu.memory_space<vmem>>, vector<8x128xf32>
    %c0_1 = arith.constant 0 : index
    %c0_2 = arith.constant 0 : index
    %1 = vector.load %arg3[%c0_1, %c0_2] : memref<8x128xf32, #tpu.memory_space<vmem>>, vector<8x128xf32>
    tpu.vector_store %arg3[%c0_1, %c0_2], %0 {strides = array<i32>} : memref<8x128xf32, #tpu.memory_space<vmem>>, vector<8x128xf32>,
    %cst = arith.constant 0.0883883461 : f32
    %c0_i32 = arith.constant 0 : i32
    %c2_i32 = arith.constant 2 : i32
    %2 = arith.addi %c0_i32, %c2_i32 : i32
    %c1_i32 = arith.constant 1 : i32
    scf.for %arg4 = %c0_i32 to %2 step %c1_i32  : i32 {
      %c1_i32_4 = arith.constant 1 : i32
      %3 = arith.muli %arg4, %c1_i32_4 : i32
      %c0_i32_5 = arith.constant 0 : i32
      %4 = arith.addi %c0_i32_5, %3 : i32
      %5 = arith.index_cast %4 : i32 to index
      %c0_6 = arith.constant 0 : index
      %c0_7 = arith.constant 0 : index
      %6 = vector.load %arg2[%5, %c0_6, %c0_7] : memref<2x6x128xf32, #tpu.memory_space<vmem>>, vector<1x6x128xf32>
      %7 = vector.shape_cast %6 : vector<1x6x128xf32> to vector<6x128xf32>
      %8 = vector.extract_strided_slice %7 {offsets = [0, 0], sizes = [1, 128], strides = [1, 1]} : vector<6x128xf32> to vector<1x128xf32>
      %9 = vector.broadcast %8 : vector<1x128xf32> to vector<8x128xf32>
      %10 = arith.mulf %9, %0 : vector<8x128xf32>
      %11 = vector.extract_strided_slice %7 {offsets = [1, 0], sizes = [1, 128], strides = [1, 1]} : vector<6x128xf32> to vector<1x128xf32>
      %12 = vector.broadcast %11 : vector<1x128xf32> to vector<8x128xf32>
      %13 = arith.addf %10, %12 : vector<8x128xf32>
      %14 = vector.extract_strided_slice %7 {offsets = [2, 0], sizes = [1, 128], strides = [1, 1]} : vector<6x128xf32> to vector<1x128xf32>
      %15 = vector.broadcast %14 : vector<1x128xf32> to vector<8x128xf32>
      %16 = arith.mulf %15, %0 : vector<8x128xf32>
      %17 = vector.extract_strided_slice %7 {offsets = [3, 0], sizes = [1, 128], strides = [1, 1]} : vector<6x128xf32> to vector<1x128xf32>
      %18 = vector.broadcast %17 : vector<1x128xf32> to vector<8x128xf32>
      %19 = arith.addf %16, %18 : vector<8x128xf32>
      %20 = vector.extract_strided_slice %7 {offsets = [4, 0], sizes = [1, 128], strides = [1, 1]} : vector<6x128xf32> to vector<1x128xf32>
      %21 = vector.broadcast %20 : vector<1x128xf32> to vector<8x128xf32>
      %22 = arith.mulf %21, %0 : vector<8x128xf32>
      %23 = vector.extract_strided_slice %7 {offsets = [5, 0], sizes = [1, 128], strides = [1, 1]} : vector<6x128xf32> to vector<1x128xf32>
      %24 = vector.broadcast %23 : vector<1x128xf32> to vector<8x128xf32>
      %25 = arith.addf %22, %24 : vector<8x128xf32>
      %26 = vector.broadcast %cst : f32 to vector<8x128xf32>
      %27 = arith.mulf %25, %26 : vector<8x128xf32>
      %28 = vector.shape_cast %13 : vector<8x128xf32> to vector<8x1x128xf32>
      %29 = vector.shape_cast %27 : vector<8x128xf32> to vector<8x1x128xf32>
      %30 = vector.shape_cast %19 : vector<8x128xf32> to vector<8x128x1xf32>
      %31 = vector.broadcast %28 : vector<8x1x128xf32> to vector<8x128x128xf32>
      %32 = vector.broadcast %30 : vector<8x128x1xf32> to vector<8x128x128xf32>
      %33 = arith.subf %31, %32 : vector<8x128x128xf32>
      %34 = math.absf %33 : vector<8x128x128xf32>
      %cst_8 = arith.constant 9.99999993E-9 : f32
      %35 = vector.broadcast %cst_8 : f32 to vector<8x128x128xf32>
      %36 = arith.addf %34, %35 : vector<8x128x128xf32>
      %cst_9 = arith.constant 1.000000e+00 : f32
      %37 = vector.broadcast %cst_9 : f32 to vector<8x128x128xf32>
      %38 = arith.divf %37, %36 : vector<8x128x128xf32>
      %cst_10 = arith.constant dense<0xFF800000> : vector<8x128xf32>
      %39 = vector.multi_reduction <maximumf>, %38, %cst_10 [2] : vector<8x128x128xf32> to vector<8x128xf32>
      %40 = vector.shape_cast %39 : vector<8x128xf32> to vector<8x128x1xf32>
      %41 = vector.broadcast %40 : vector<8x128x1xf32> to vector<8x128x128xf32>
      %42 = arith.subf %38, %41 : vector<8x128x128xf32>
      %43 = math.exp %42 : vector<8x128x128xf32>
      %cst_11 = arith.constant dense<0.000000e+00> : vector<8x128xf32>
      %44 = vector.multi_reduction <add>, %43, %cst_11 [2] : vector<8x128x128xf32> to vector<8x128xf32>
      %45 = vector.broadcast %29 : vector<8x1x128xf32> to vector<8x128x128xf32>
      %46 = arith.mulf %43, %45 : vector<8x128x128xf32>
      %cst_12 = arith.constant dense<0.000000e+00> : vector<8x128xf32>
      %47 = vector.multi_reduction <add>, %46, %cst_12 [2] : vector<8x128x128xf32> to vector<8x128xf32>
      %48 = arith.divf %47, %44 : vector<8x128xf32>
      %c0_13 = arith.constant 0 : index
      %c0_14 = arith.constant 0 : index
      %49 = vector.load %arg3[%c0_13, %c0_14] : memref<8x128xf32, #tpu.memory_space<vmem>>, vector<8x128xf32>
      %50 = arith.addf %49, %48 : vector<8x128xf32>
      %c0_15 = arith.constant 0 : index
      %c0_16 = arith.constant 0 : index
      %51 = vector.load %arg3[%c0_15, %c0_16] : memref<8x128xf32, #tpu.memory_space<vmem>>, vector<8x128xf32>
      tpu.vector_store %arg3[%c0_15, %c0_16], %50 {strides = array<i32>} : memref<8x128xf32, #tpu.memory_space<vmem>>, vector<8x128xf32>,
    }
    %c2_i32_3 = arith.constant 2 : i32
    return
  }
  func.func @transform_0(%arg0: i32) -> (i32, i32) {
    %c0_i32 = arith.constant 0 : i32
    %c0_i32_0 = arith.constant 0 : i32
    return %arg0, %c0_i32 : i32, i32
  }
  func.func @transform_1(%arg0: i32) -> (i32, i32, i32) {
    %c0_i32 = arith.constant 0 : i32
    %c0_i32_0 = arith.constant 0 : i32
    %c0_i32_1 = arith.constant 0 : i32
    %c0_i32_2 = arith.constant 0 : i32
    return %c0_i32, %c0_i32_0, %c0_i32_1 : i32, i32, i32
  }
  func.func @transform_2(%arg0: i32) -> (i32, i32) {
    %c0_i32 = arith.constant 0 : i32
    %c0_i32_0 = arith.constant 0 : i32
    return %arg0, %c0_i32 : i32, i32
  }
}

</mosaic_0001>

<llo_original>
// kernel: tpu_custom_call.1
$region0: #{tpu_custom_call.1}
  #allocation0 [shape = 'u32[]', space=smem, size = 0x4, offset = 0x4, fixed_abs, tag = 'smem constant byte address 0x4 - core index']
  #allocation1 [shape = 'u32[144,128]{1,0:T(1,128)}', space=vmem, size = 0x12000, scoped, tag = 'internal scratch']
  %s0 = inlined_call_operand.vmem [shape: f32[8,128], index: 0, kind: input, shape index: {}]
  %s1 = inlined_call_operand.vmem [shape: f32[2,6,128], index: 1, kind: input, shape index: {}]
  %s2 = inlined_call_operand.hbm [shape: f32[8,128], index: 2, kind: output, shape index: {}]
  %s3 = sld [smem:[#allocation0]]
  $region25: #{tpu_custom_call.1} parent=0
    _
  %s5 = ssub.s32 1, %s3
  %s6 = scalar_select 0, %s5, %s3
  $region1: #{tpu_custom_call.1} parent=0
    #allocation2 [shape = 'u8[4096]{0}', space=vmem, size = 0x1000, scoped, tag = 'output window, operand 0, single buffered']
    #allocation3 [shape = 's32[1]{0}', space=sflag, size = 0x4, scoped, tag = 'scoped memory for tpu_custom_call.1']
    %7 = vsyncpa [#allocation3], 0
    // Predicated region
    $region2: #{tpu_custom_call.1} parent=1 // pred_check
      _
    $region3: #{tpu_custom_call.1} parent=1 // pred_check_branch
      %9 = sbr.rel (0) target = $region5
    $region4: #{tpu_custom_call.1} parent=1 // pred_region
      _
    $region5: #{tpu_custom_call.1} parent=1 // pred_fallthru
      _
    // Predicated region
    $region6: #{tpu_custom_call.1} parent=1 // pred_check
      _
    $region7: #{tpu_custom_call.1} parent=1 // pred_check_branch
      %11 = sbr.rel (0) target = $region9
    $region8: #{tpu_custom_call.1} parent=1 // pred_region
      _
    $region9: #{tpu_custom_call.1} parent=1 // pred_fallthru
      _
    %v12 = vld [vmem:[%s0] sm:$0xff]
    %13 = vst [vmem:[#allocation2] sm:$0xff] %v12
    loop: start=0, step=1, limit=2
    $region10: #{tpu_custom_call.1} parent=1 // loop_pre_header
      _
    $region11: #{tpu_custom_call.1} parent=1 // loop_header
      %s15 = sphi 0, %s19
      %p16 = scmp.ge.s32.totalorder %s15, 2
    $region12: #{tpu_custom_call.1} parent=1 // loop_header_branch
      %18 = sbr.rel (%p16) target = $region16
    $region13: #{tpu_custom_call.1} parent=1 // loop_body
      %s20 = smul.u32 %s15, 8
      %s21 = scalar_lea.vmem %s1, %s20
      %v22 = vld [vmem:[%s21] sm:$0x3f]
      %v23 = vlaneseq
      %v24 = vshrl.u32 %v23, 7
      %v25 = vsub.s32 0, %v24
      %v26 = vrot.slane %v22, %v25
      %v27 = vmul.f32 %v26, %v12
      %v28 = vlaneseq
      %v29 = vshrl.u32 %v28, 7
      %v30 = vsub.s32 1, %v29
      %v31 = vrot.slane %v22, %v30
      %v32 = vadd.f32 %v27, %v31
      %v33 = vlaneseq
      %v34 = vshrl.u32 %v33, 7
      %v35 = vsub.s32 2, %v34
      %v36 = vrot.slane %v22, %v35
      %v37 = vmul.f32 %v36, %v12
      %v38 = vlaneseq
      %v39 = vshrl.u32 %v38, 7
      %v40 = vsub.s32 3, %v39
      %v41 = vrot.slane %v22, %v40
      %v42 = vadd.f32 %v37, %v41
      %v43 = vlaneseq
      %v44 = vshrl.u32 %v43, 7
      %v45 = vsub.s32 4, %v44
      %v46 = vrot.slane %v22, %v45
      %v47 = vmul.f32 %v46, %v12
      %v48 = vlaneseq
      %v49 = vshrl.u32 %v48, 7
      %v50 = vsub.s32 5, %v49
      %v51 = vrot.slane %v22, %v50
      %v52 = vadd.f32 %v47, %v51
      %v53 = vmul.f32 %v52, 0.088388346
      %v55 = vcombine.high %v32, %v32
      %v57 = vunpack.c.l.s4 1966171168
      %v58 = vunpack.c.0.s8 %v57
      %v59 = vlaneseq
      %v60 = vshrl.u32 %v59, 7
      %v61 = vsub.s32 %v58, %v60
      %v62 = vrot.slane %v32, %v61
      %v64 = vunpack.c.l.s4 1966171168
      %v65 = vunpack.c.0.s8 %v64
      %v66 = vlaneseq
      %v67 = vshrl.u32 %v66, 7
      %v68 = vsub.s32 %v65, %v67
      %v69 = vrot.slane %v55, %v68
      %v70 = vcombine.high %v62, %v62
      %v71 = vcombine.high %v69, %v69
      %v73 = vunpack.c.l.s4 1966171168
      %v74 = vunpack.c.0.s8 %v73
      %v75 = vlaneseq
      %v76 = vshrl.u32 %v75, 7
      %v77 = vsub.s32 %v74, %v76
      %v78 = vrot.slane %v62, %v77
      %v80 = vunpack.c.l.s4 1966171168
      %v81 = vunpack.c.0.s8 %v80
      %v82 = vlaneseq
      %v83 = vshrl.u32 %v82, 7
      %v84 = vsub.s32 %v81, %v83
      %v85 = vrot.slane %v69, %v84
      %v87 = vunpack.c.l.s4 1966171168
      %v88 = vunpack.c.0.s8 %v87
      %v89 = vlaneseq
      %v90 = vshrl.u32 %v89, 7
      %v91 = vsub.s32 %v88, %v90
      %v92 = vrot.slane %v70, %v91
      %v94 = vunpack.c.l.s4 1966171168
      %v95 = vunpack.c.0.s8 %v94
      %v96 = vlaneseq
      %v97 = vshrl.u32 %v96, 7
      %v98 = vsub.s32 %v95, %v97
      %v99 = vrot.slane %v71, %v98
      %v100 = vcombine.high %v78, %v78
      %v101 = vcombine.high %v85, %v85
      %v102 = vcombine.high %v92, %v92
      %v103 = vcombine.high %v99, %v99
      %v105 = vcombine.high %v53, %v53
      %v107 = vunpack.c.l.s4 1966171168
      %v108 = vunpack.c.0.s8 %v107
      %v109 = vlaneseq
      %v110 = vshrl.u32 %v109, 7
      %v111 = vsub.s32 %v108, %v110
      %v112 = vrot.slane %v53, %v111
      %v114 = vunpack.c.l.s4 1966171168
      %v115 = vunpack.c.0.s8 %v114
      %v116 = vlaneseq
      %v117 = vshrl.u32 %v116, 7
      %v118 = vsub.s32 %v115, %v117
      %v119 = vrot.slane %v105, %v118
      %v120 = vcombine.high %v112, %v112
      %v121 = vcombine.high %v119, %v119
      %v123 = vunpack.c.l.s4 1966171168
      %v124 = vunpack.c.0.s8 %v123
      %v125 = vlaneseq
      %v126 = vshrl.u32 %v125, 7
      %v127 = vsub.s32 %v124, %v126
      %v128 = vrot.slane %v112, %v127
      %v130 = vunpack.c.l.s4 1966171168
      %v131 = vunpack.c.0.s8 %v130
      %v132 = vlaneseq
      %v133 = vshrl.u32 %v132, 7
      %v134 = vsub.s32 %v131, %v133
      %v135 = vrot.slane %v119, %v134
      %v137 = vunpack.c.l.s4 1966171168
      %v138 = vunpack.c.0.s8 %v137
      %v139 = vlaneseq
      %v140 = vshrl.u32 %v139, 7
      %v141 = vsub.s32 %v138, %v140
      %v142 = vrot.slane %v120, %v141
      %v144 = vunpack.c.l.s4 1966171168
      %v145 = vunpack.c.0.s8 %v144
      %v146 = vlaneseq
      %v147 = vshrl.u32 %v146, 7
      %v148 = vsub.s32 %v145, %v147
      %v149 = vrot.slane %v121, %v148
      %v150 = vcombine.high %v128, %v128
      %v151 = vcombine.high %v135, %v135
      %v152 = vcombine.high %v142, %v142
      %v153 = vcombine.high %v149, %v149
      %v154 = vlaneseq
      %v155 = vshrl.u32 %v154, 7
      %v156 = vsub.s32 0, %v155
      %v157 = vrot.slane %v42, %v156
      %159 = vbcast.lane.b32.xlu0 %v157, 256
      %v160 = vpop.permute.xlu0 %159
      %s162 = sor.u32 256, 8
      %163 = vbcast.lane.b32.xlu0 %v157, %s162
      %v164 = vpop.permute.xlu0 %163
      %s166 = sor.u32 256, 16
      %167 = vbcast.lane.b32.xlu0 %v157, %s166
      %v168 = vpop.permute.xlu0 %167
      %s170 = sor.u32 256, 24
      %171 = vbcast.lane.b32.xlu0 %v157, %s170
      %v172 = vpop.permute.xlu0 %171
      %s174 = sor.u32 256, 32
      %175 = vbcast.lane.b32.xlu0 %v157, %s174
      %v176 = vpop.permute.xlu0 %175
      %s178 = sor.u32 256, 40
      %179 = vbcast.lane.b32.xlu0 %v157, %s178
      %v180 = vpop.permute.xlu0 %179
      %s182 = sor.u32 256, 48
      %183 = vbcast.lane.b32.xlu0 %v157, %s182
      %v184 = vpop.permute.xlu0 %183
      %s186 = sor.u32 256, 56
      %187 = vbcast.lane.b32.xlu0 %v157, %s186
      %v188 = vpop.permute.xlu0 %187
      %s190 = sor.u32 256, 64
      %191 = vbcast.lane.b32.xlu0 %v157, %s190
      %v192 = vpop.permute.xlu0 %191
      %s194 = sor.u32 256, 72
      %195 = vbcast.lane.b32.xlu0 %v157, %s194
      %v196 = vpop.permute.xlu0 %195
      %s198 = sor.u32 256, 80
      %199 = vbcast.lane.b32.xlu0 %v157, %s198
      %v200 = vpop.permute.xlu0 %199
      %s202 = sor.u32 256, 88
      %203 = vbcast.lane.b32.xlu0 %v157, %s202
      %v204 = vpop.permute.xlu0 %203
      %s206 = sor.u32 256, 96
      %207 = vbcast.lane.b32.xlu0 %v157, %s206
      %v208 = vpop.permute.xlu0 %207
      %s210 = sor.u32 256, 104
      %211 = vbcast.lane.b32.xlu0 %v157, %s210
      %v212 = vpop.permute.xlu0 %211
      %s214 = sor.u32 256, 112
      %215 = vbcast.lane.b32.xlu0 %v157, %s214
      %v216 = vpop.permute.xlu0 %215
      %s218 = sor.u32 256, 120
      %219 = vbcast.lane.b32.xlu0 %v157, %s218
      %v220 = vpop.permute.xlu0 %219
      %v221 = vlaneseq
      %v222 = vshrl.u32 %v221, 7
      %v223 = vsub.s32 1, %v222
      %v224 = vrot.slane %v42, %v223
      %226 = vbcast.lane.b32.xlu0 %v224, 256
      %v227 = vpop.permute.xlu0 %226
      %s229 = sor.u32 256, 8
      %230 = vbcast.lane.b32.xlu0 %v224, %s229
      %v231 = vpop.permute.xlu0 %230
      %s233 = sor.u32 256, 16
      %234 = vbcast.lane.b32.xlu0 %v224, %s233
      %v235 = vpop.permute.xlu0 %234
      %s237 = sor.u32 256, 24
      %238 = vbcast.lane.b32.xlu0 %v224, %s237
      %v239 = vpop.permute.xlu0 %238
      %s241 = sor.u32 256, 32
      %242 = vbcast.lane.b32.xlu0 %v224, %s241
      %v243 = vpop.permute.xlu0 %242
      %s245 = sor.u32 256, 40
      %246 = vbcast.lane.b32.xlu0 %v224, %s245
      %v247 = vpop.permute.xlu0 %246
      %s249 = sor.u32 256, 48
      %250 = vbcast.lane.b32.xlu0 %v224, %s249
      %v251 = vpop.permute.xlu0 %250
      %s253 = sor.u32 256, 56
      %254 = vbcast.lane.b32.xlu0 %v224, %s253
      %v255 = vpop.permute.xlu0 %254
      %s257 = sor.u32 256, 64
      %258 = vbcast.lane.b32.xlu0 %v224, %s257
      %v259 = vpop.permute.xlu0 %258
      %s261 = sor.u32 256, 72
      %262 = vbcast.lane.b32.xlu0 %v224, %s261
      %v263 = vpop.permute.xlu0 %262
      %s265 = sor.u32 256, 80
      %266 = vbcast.lane.b32.xlu0 %v224, %s265
      %v267 = vpop.permute.xlu0 %266
      %s269 = sor.u32 256, 88
      %270 = vbcast.lane.b32.xlu0 %v224, %s269
      %v271 = vpop.permute.xlu0 %270
      %s273 = sor.u32 256, 96
      %274 = vbcast.lane.b32.xlu0 %v224, %s273
      %v275 = vpop.permute.xlu0 %274
      %s277 = sor.u32 256, 104
      %278 = vbcast.lane.b32.xlu0 %v224, %s277
      %v279 = vpop.permute.xlu0 %278
      %s281 = sor.u32 256, 112
      %282 = vbcast.lane.b32.xlu0 %v224, %s281
      %v283 = vpop.permute.xlu0 %282
      %s285 = sor.u32 256, 120
      %286 = vbcast.lane.b32.xlu0 %v224, %s285
      %v287 = vpop.permute.xlu0 %286
      %v288 = vlaneseq
      %v289 = vshrl.u32 %v288, 7
      %v290 = vsub.s32 2, %v289
      %v291 = vrot.slane %v42, %v290
      %293 = vbcast.lane.b32.xlu0 %v291, 256
      %v294 = vpop.permute.xlu0 %293
      %s296 = sor.u32 256, 8
      %297 = vbcast.lane.b32.xlu0 %v291, %s296
      %v298 = vpop.permute.xlu0 %297
      %s300 = sor.u32 256, 16
      %301 = vbcast.lane.b32.xlu0 %v291, %s300
      %v302 = vpop.permute.xlu0 %301
      %s304 = sor.u32 256, 24
      %305 = vbcast.lane.b32.xlu0 %v291, %s304
      %v306 = vpop.permute.xlu0 %305
      %s308 = sor.u32 256, 32
      %309 = vbcast.lane.b32.xlu0 %v291, %s308
      %v310 = vpop.permute.xlu0 %309
      %s312 = sor.u32 256, 40
      %313 = vbcast.lane.b32.xlu0 %v291, %s312
      %v314 = vpop.permute.xlu0 %313
      %s316 = sor.u32 256, 48
      %317 = vbcast.lane.b32.xlu0 %v291, %s316
      %v318 = vpop.permute.xlu0 %317
      %s320 = sor.u32 256, 56
      %321 = vbcast.lane.b32.xlu0 %v291, %s320
      %v322 = vpop.permute.xlu0 %321
      %s324 = sor.u32 256, 64
      %325 = vbcast.lane.b32.xlu0 %v291, %s324
      %v326 = vpop.permute.xlu0 %325
      %s328 = sor.u32 256, 72
      %329 = vbcast.lane.b32.xlu0 %v291, %s328
      %v330 = vpop.permute.xlu0 %329
      %s332 = sor.u32 256, 80
      %333 = vbcast.lane.b32.xlu0 %v291, %s332
      %v334 = vpop.permute.xlu0 %333
      %s336 = sor.u32 256, 88
      %337 = vbcast.lane.b32.xlu0 %v291, %s336
      %v338 = vpop.permute.xlu0 %337
      %s340 = sor.u32 256, 96
      %341 = vbcast.lane.b32.xlu0 %v291, %s340
      %v342 = vpop.permute.xlu0 %341
      %s344 = sor.u32 256, 104
      %345 = vbcast.lane.b32.xlu0 %v291, %s344
      %v346 = vpop.permute.xlu0 %345
      %s348 = sor.u32 256, 112
      %349 = vbcast.lane.b32.xlu0 %v291, %s348
      %v350 = vpop.permute.xlu0 %349
      %s352 = sor.u32 256, 120
      %353 = vbcast.lane.b32.xlu0 %v291, %s352
      %v354 = vpop.permute.xlu0 %353
      %v355 = vlaneseq
      %v356 = vshrl.u32 %v355, 7
      %v357 = vsub.s32 3, %v356
      %v358 = vrot.slane %v42, %v357
      %360 = vbcast.lane.b32.xlu0 %v358, 256
      %v361 = vpop.permute.xlu0 %360
      %s363 = sor.u32 256, 8
      %364 = vbcast.lane.b32.xlu0 %v358, %s363
      %v365 = vpop.permute.xlu0 %364
      %s367 = sor.u32 256, 16
      %368 = vbcast.lane.b32.xlu0 %v358, %s367
      %v369 = vpop.permute.xlu0 %368
      %s371 = sor.u32 256, 24
      %372 = vbcast.lane.b32.xlu0 %v358, %s371
      %v373 = vpop.permute.xlu0 %372
      %s375 = sor.u32 256, 32
      %376 = vbcast.lane.b32.xlu0 %v358, %s375
      %v377 = vpop.permute.xlu0 %376
      %s379 = sor.u32 256, 40
      %380 = vbcast.lane.b32.xlu0 %v358, %s379
      %v381 = vpop.permute.xlu0 %380
      %s383 = sor.u32 256, 48
      %384 = vbcast.lane.b32.xlu0 %v358, %s383
      %v385 = vpop.permute.xlu0 %384
      %s387 = sor.u32 256, 56
      %388 = vbcast.lane.b32.xlu0 %v358, %s387
      %v389 = vpop.permute.xlu0 %388
      %s391 = sor.u32 256, 64
      %392 = vbcast.lane.b32.xlu0 %v358, %s391
      %v393 = vpop.permute.xlu0 %392
      %s395 = sor.u32 256, 72
      %396 = vbcast.lane.b32.xlu0 %v358, %s395
      %v397 = vpop.permute.xlu0 %396
      %s399 = sor.u32 256, 80
      %400 = vbcast.lane.b32.xlu0 %v358, %s399
      %v401 = vpop.permute.xlu0 %400
      %s403 = sor.u32 256, 88
      %404 = vbcast.lane.b32.xlu0 %v358, %s403
      %v405 = vpop.permute.xlu0 %404
      %s407 = sor.u32 256, 96
      %408 = vbcast.lane.b32.xlu0 %v358, %s407
      %v409 = vpop.permute.xlu0 %408
      %s411 = sor.u32 256, 104
      %412 = vbcast.lane.b32.xlu0 %v358, %s411
      %v413 = vpop.permute.xlu0 %412
      %s415 = sor.u32 256, 112
      %416 = vbcast.lane.b32.xlu0 %v358, %s415
      %v417 = vpop.permute.xlu0 %416
      %s419 = sor.u32 256, 120
      %420 = vbcast.lane.b32.xlu0 %v358, %s419
      %v421 = vpop.permute.xlu0 %420
      %v422 = vlaneseq
      %v423 = vshrl.u32 %v422, 7
      %v424 = vsub.s32 4, %v423
      %v425 = vrot.slane %v42, %v424
      %427 = vbcast.lane.b32.xlu0 %v425, 256
      %v428 = vpop.permute.xlu0 %427
      %s430 = sor.u32 256, 8
      %431 = vbcast.lane.b32.xlu0 %v425, %s430
      %v432 = vpop.permute.xlu0 %431
      %s434 = sor.u32 256, 16
      %435 = vbcast.lane.b32.xlu0 %v425, %s434
      %v436 = vpop.permute.xlu0 %435
      %s438 = sor.u32 256, 24
      %439 = vbcast.lane.b32.xlu0 %v425, %s438
      %v440 = vpop.permute.xlu0 %439
      %s442 = sor.u32 256, 32
      %443 = vbcast.lane.b32.xlu0 %v425, %s442
      %v444 = vpop.permute.xlu0 %443
      %s446 = sor.u32 256, 40
      %447 = vbcast.lane.b32.xlu0 %v425, %s446
      %v448 = vpop.permute.xlu0 %447
      %s450 = sor.u32 256, 48
      %451 = vbcast.lane.b32.xlu0 %v425, %s450
      %v452 = vpop.permute.xlu0 %451
      %s454 = sor.u32 256, 56
      %455 = vbcast.lane.b32.xlu0 %v425, %s454
      %v456 = vpop.permute.xlu0 %455
      %s458 = sor.u32 256, 64
      %459 = vbcast.lane.b32.xlu0 %v425, %s458
      %v460 = vpop.permute.xlu0 %459
      %s462 = sor.u32 256, 72
      %463 = vbcast.lane.b32.xlu0 %v425, %s462
      %v464 = vpop.permute.xlu0 %463
      %s466 = sor.u32 256, 80
      %467 = vbcast.lane.b32.xlu0 %v425, %s466
      %v468 = vpop.permute.xlu0 %467
      %s470 = sor.u32 256, 88
      %471 = vbcast.lane.b32.xlu0 %v425, %s470
      %v472 = vpop.permute.xlu0 %471
      %s474 = sor.u32 256, 96
      %475 = vbcast.lane.b32.xlu0 %v425, %s474
      %v476 = vpop.permute.xlu0 %475
      %s478 = sor.u32 256, 104
      %479 = vbcast.lane.b32.xlu0 %v425, %s478
      %v480 = vpop.permute.xlu0 %479
      %s482 = sor.u32 256, 112
      %483 = vbcast.lane.b32.xlu0 %v425, %s482
      %v484 = vpop.permute.xlu0 %483
      %s486 = sor.u32 256, 120
      %487 = vbcast.lane.b32.xlu0 %v425, %s486
      %v488 = vpop.permute.xlu0 %487
      %v489 = vlaneseq
      %v490 = vshrl.u32 %v489, 7
      %v491 = vsub.s32 5, %v490
      %v492 = vrot.slane %v42, %v491
      %494 = vbcast.lane.b32.xlu0 %v492, 256
      %v495 = vpop.permute.xlu0 %494
      %s497 = sor.u32 256, 8
      %498 = vbcast.lane.b32.xlu0 %v492, %s497
      %v499 = vpop.permute.xlu0 %498
      %s501 = sor.u32 256, 16
      %502 = vbcast.lane.b32.xlu0 %v492, %s501
      %v503 = vpop.permute.xlu0 %502
      %s505 = sor.u32 256, 24
      %506 = vbcast.lane.b32.xlu0 %v492, %s505
      %v507 = vpop.permute.xlu0 %506
      %s509 = sor.u32 256, 32
      %510 = vbcast.lane.b32.xlu0 %v492, %s509
      %v511 = vpop.permute.xlu0 %510
      %s513 = sor.u32 256, 40
      %514 = vbcast.lane.b32.xlu0 %v492, %s513
      %v515 = vpop.permute.xlu0 %514
      %s517 = sor.u32 256, 48
      %518 = vbcast.lane.b32.xlu0 %v492, %s517
      %v519 = vpop.permute.xlu0 %518
      %s521 = sor.u32 256, 56
      %522 = vbcast.lane.b32.xlu0 %v492, %s521
      %v523 = vpop.permute.xlu0 %522
      %s525 = sor.u32 256, 64
      %526 = vbcast.lane.b32.xlu0 %v492, %s525
      %v527 = vpop.permute.xlu0 %526
      %s529 = sor.u32 256, 72
      %530 = vbcast.lane.b32.xlu0 %v492, %s529
      %v531 = vpop.permute.xlu0 %530
      %s533 = sor.u32 256, 80
      %534 = vbcast.lane.b32.xlu0 %v492, %s533
      %v535 = vpop.permute.xlu0 %534
      %s537 = sor.u32 256, 88
      %538 = vbcast.lane.b32.xlu0 %v492, %s537
      %v539 = vpop.permute.xlu0 %538
      %s541 = sor.u32 256, 96
      %542 = vbcast.lane.b32.xlu0 %v492, %s541
      %v543 = vpop.permute.xlu0 %542
      %s545 = sor.u32 256, 104
      %546 = vbcast.lane.b32.xlu0 %v492, %s545
      %v547 = vpop.permute.xlu0 %546
      %s549 = sor.u32 256, 112
      %550 = vbcast.lane.b32.xlu0 %v492, %s549
      %v551 = vpop.permute.xlu0 %550
      %s553 = sor.u32 256, 120
      %554 = vbcast.lane.b32.xlu0 %v492, %s553
      %v555 = vpop.permute.xlu0 %554
      %v556 = vlaneseq
      %v557 = vshrl.u32 %v556, 7
      %v558 = vsub.s32 6, %v557
      %v559 = vrot.slane %v42, %v558
      %561 = vbcast.lane.b32.xlu0 %v559, 256
      %v562 = vpop.permute.xlu0 %561
      %s564 = sor.u32 256, 8
      %565 = vbcast.lane.b32.xlu0 %v559, %s564
      %v566 = vpop.permute.xlu0 %565
      %s568 = sor.u32 256, 16
      %569 = vbcast.lane.b32.xlu0 %v559, %s568
      %v570 = vpop.permute.xlu0 %569
      %s572 = sor.u32 256, 24
      %573 = vbcast.lane.b32.xlu0 %v559, %s572
      %v574 = vpop.permute.xlu0 %573
      %s576 = sor.u32 256, 32
      %577 = vbcast.lane.b32.xlu0 %v559, %s576
      %v578 = vpop.permute.xlu0 %577
      %s580 = sor.u32 256, 40
      %581 = vbcast.lane.b32.xlu0 %v559, %s580
      %v582 = vpop.permute.xlu0 %581
      %s584 = sor.u32 256, 48
      %585 = vbcast.lane.b32.xlu0 %v559, %s584
      %v586 = vpop.permute.xlu0 %585
      %s588 = sor.u32 256, 56
      %589 = vbcast.lane.b32.xlu0 %v559, %s588
      %v590 = vpop.permute.xlu0 %589
      %s592 = sor.u32 256, 64
      %593 = vbcast.lane.b32.xlu0 %v559, %s592
      %v594 = vpop.permute.xlu0 %593
      %s596 = sor.u32 256, 72
      %597 = vbcast.lane.b32.xlu0 %v559, %s596
      %v598 = vpop.permute.xlu0 %597
      %s600 = sor.u32 256, 80
      %601 = vbcast.lane.b32.xlu0 %v559, %s600
      %v602 = vpop.permute.xlu0 %601
      %s604 = sor.u32 256, 88
      %605 = vbcast.lane.b32.xlu0 %v559, %s604
      %v606 = vpop.permute.xlu0 %605
      %s608 = sor.u32 256, 96
      %609 = vbcast.lane.b32.xlu0 %v559, %s608
      %v610 = vpop.permute.xlu0 %609
      %s612 = sor.u32 256, 104
      %613 = vbcast.lane.b32.xlu0 %v559, %s612
      %v614 = vpop.permute.xlu0 %613
      %s616 = sor.u32 256, 112
      %617 = vbcast.lane.b32.xlu0 %v559, %s616
      %v618 = vpop.permute.xlu0 %617
      %s620 = sor.u32 256, 120
      %621 = vbcast.lane.b32.xlu0 %v559, %s620
      %v622 = vpop.permute.xlu0 %621
      %v623 = vlaneseq
      %v624 = vshrl.u32 %v623, 7
      %v625 = vsub.s32 7, %v624
      %v626 = vrot.slane %v42, %v625
      %628 = vbcast.lane.b32.xlu0 %v626, 256
      %v629 = vpop.permute.xlu0 %628
      %s631 = sor.u32 256, 8
      %632 = vbcast.lane.b32.xlu0 %v626, %s631
      %v633 = vpop.permute.xlu0 %632
      %s635 = sor.u32 256, 16
      %636 = vbcast.lane.b32.xlu0 %v626, %s635
      %v637 = vpop.permute.xlu0 %636
      %s639 = sor.u32 256, 24
      %640 = vbcast.lane.b32.xlu0 %v626, %s639
      %v641 = vpop.permute.xlu0 %640
      %s643 = sor.u32 256, 32
      %644 = vbcast.lane.b32.xlu0 %v626, %s643
      %v645 = vpop.permute.xlu0 %644
      %s647 = sor.u32 256, 40
      %648 = vbcast.lane.b32.xlu0 %v626, %s647
      %v649 = vpop.permute.xlu0 %648
      %s651 = sor.u32 256, 48
      %652 = vbcast.lane.b32.xlu0 %v626, %s651
      %v653 = vpop.permute.xlu0 %652
      %s655 = sor.u32 256, 56
      %656 = vbcast.lane.b32.xlu0 %v626, %s655
      %v657 = vpop.permute.xlu0 %656
      %s659 = sor.u32 256, 64
      %660 = vbcast.lane.b32.xlu0 %v626, %s659
      %v661 = vpop.permute.xlu0 %660
      %s663 = sor.u32 256, 72
      %664 = vbcast.lane.b32.xlu0 %v626, %s663
      %v665 = vpop.permute.xlu0 %664
      %s667 = sor.u32 256, 80
      %668 = vbcast.lane.b32.xlu0 %v626, %s667
      %v669 = vpop.permute.xlu0 %668
      %s671 = sor.u32 256, 88
      %672 = vbcast.lane.b32.xlu0 %v626, %s671
      %v673 = vpop.permute.xlu0 %672
      %s675 = sor.u32 256, 96
      %676 = vbcast.lane.b32.xlu0 %v626, %s675
      %v677 = vpop.permute.xlu0 %676
      %s679 = sor.u32 256, 104
      %680 = vbcast.lane.b32.xlu0 %v626, %s679
      %v681 = vpop.permute.xlu0 %680
      %s683 = sor.u32 256, 112
      %684 = vbcast.lane.b32.xlu0 %v626, %s683
      %v685 = vpop.permute.xlu0 %684
      %s687 = sor.u32 256, 120
      %688 = vbcast.lane.b32.xlu0 %v626, %s687
      %v689 = vpop.permute.xlu0 %688
      %v690 = vlaneseq
      %v691 = vshrl.u32 %v690, 7
      %v692 = vsub.s32 0, %v691
      %v693 = vrot.slane %v78, %v692
      %v694 = vlaneseq
      %v695 = vshrl.u32 %v694, 7
      %v696 = vsub.s32 0, %v695
      %v697 = vrot.slane %v92, %v696
      %v698 = vlaneseq
      %v699 = vshrl.u32 %v698, 7
      %v700 = vsub.s32 0, %v699
      %v701 = vrot.slane %v100, %v700
      %v702 = vlaneseq
      %v703 = vshrl.u32 %v702, 7
      %v704 = vsub.s32 0, %v703
      %v705 = vrot.slane %v102, %v704
      %v706 = vlaneseq
      %v707 = vshrl.u32 %v706, 7
      %v708 = vsub.s32 0, %v707
      %v709 = vrot.slane %v85, %v708
      %v710 = vlaneseq
      %v711 = vshrl.u32 %v710, 7
      %v712 = vsub.s32 0, %v711
      %v713 = vrot.slane %v99, %v712
      %v714 = vlaneseq
      %v715 = vshrl.u32 %v714, 7
      %v716 = vsub.s32 0, %v715
      %v717 = vrot.slane %v101, %v716
      %v718 = vlaneseq
      %v719 = vshrl.u32 %v718, 7
      %v720 = vsub.s32 0, %v719
      %v721 = vrot.slane %v103, %v720
      %v730 = vsub.f32 %v693, %v160
      %v731 = vsub.f32 %v693, %v164
      %v732 = vsub.f32 %v693, %v168
      %v733 = vsub.f32 %v693, %v172
      %v734 = vsub.f32 %v693, %v176
      %v735 = vsub.f32 %v693, %v180
      %v736 = vsub.f32 %v693, %v184
      %v737 = vsub.f32 %v693, %v188
      %v738 = vsub.f32 %v693, %v192
      %v739 = vsub.f32 %v693, %v196
      %v740 = vsub.f32 %v693, %v200
      %v741 = vsub.f32 %v693, %v204
      %v742 = vsub.f32 %v693, %v208
      %v743 = vsub.f32 %v693, %v212
      %v744 = vsub.f32 %v693, %v216
      %v745 = vsub.f32 %v693, %v220
      %v746 = vsub.f32 %v697, %v227
      %v747 = vsub.f32 %v697, %v231
      %v748 = vsub.f32 %v697, %v235
      %v749 = vsub.f32 %v697, %v239
      %v750 = vsub.f32 %v697, %v243
      %v751 = vsub.f32 %v697, %v247
      %v752 = vsub.f32 %v697, %v251
      %v753 = vsub.f32 %v697, %v255
      %v754 = vsub.f32 %v697, %v259
      %v755 = vsub.f32 %v697, %v263
      %v756 = vsub.f32 %v697, %v267
      %v757 = vsub.f32 %v697, %v271
      %v758 = vsub.f32 %v697, %v275
      %v759 = vsub.f32 %v697, %v279
      %v760 = vsub.f32 %v697, %v283
      %v761 = vsub.f32 %v697, %v287
      %v762 = vsub.f32 %v701, %v294
      %v763 = vsub.f32 %v701, %v298
      %v764 = vsub.f32 %v701, %v302
      %v765 = vsub.f32 %v701, %v306
      %v766 = vsub.f32 %v701, %v310
      %v767 = vsub.f32 %v701, %v314
      %v768 = vsub.f32 %v701, %v318
      %v769 = vsub.f32 %v701, %v322
      %v770 = vsub.f32 %v701, %v326
      %v771 = vsub.f32 %v701, %v330
      %v772 = vsub.f32 %v701, %v334
      %v773 = vsub.f32 %v701, %v338
      %v774 = vsub.f32 %v701, %v342
      %v775 = vsub.f32 %v701, %v346
      %v776 = vsub.f32 %v701, %v350
      %v777 = vsub.f32 %v701, %v354
      %v778 = vsub.f32 %v705, %v361
      %v779 = vsub.f32 %v705, %v365
      %v780 = vsub.f32 %v705, %v369
      %v781 = vsub.f32 %v705, %v373
      %v782 = vsub.f32 %v705, %v377
      %v783 = vsub.f32 %v705, %v381
      %v784 = vsub.f32 %v705, %v385
      %v785 = vsub.f32 %v705, %v389
      %v786 = vsub.f32 %v705, %v393
      %v787 = vsub.f32 %v705, %v397
      %v788 = vsub.f32 %v705, %v401
      %v789 = vsub.f32 %v705, %v405
      %v790 = vsub.f32 %v705, %v409
      %v791 = vsub.f32 %v705, %v413
      %v792 = vsub.f32 %v705, %v417
      %v793 = vsub.f32 %v705, %v421
      %v794 = vsub.f32 %v709, %v428
      %v795 = vsub.f32 %v709, %v432
      %v796 = vsub.f32 %v709, %v436
      %v797 = vsub.f32 %v709, %v440
      %v798 = vsub.f32 %v709, %v444
      %v799 = vsub.f32 %v709, %v448
      %v800 = vsub.f32 %v709, %v452
      %v801 = vsub.f32 %v709, %v456
      %v802 = vsub.f32 %v709, %v460
      %v803 = vsub.f32 %v709, %v464
      %v804 = vsub.f32 %v709, %v468
      %v805 = vsub.f32 %v709, %v472
      %v806 = vsub.f32 %v709, %v476
      %v807 = vsub.f32 %v709, %v480
      %v808 = vsub.f32 %v709, %v484
      %v809 = vsub.f32 %v709, %v488
      %v810 = vsub.f32 %v713, %v495
      %v811 = vsub.f32 %v713, %v499
      %v812 = vsub.f32 %v713, %v503
      %v813 = vsub.f32 %v713, %v507
      %v814 = vsub.f32 %v713, %v511
      %v815 = vsub.f32 %v713, %v515
      %v816 = vsub.f32 %v713, %v519
      %v817 = vsub.f32 %v713, %v523
      %v818 = vsub.f32 %v713, %v527
      %v819 = vsub.f32 %v713, %v531
      %v820 = vsub.f32 %v713, %v535
      %v821 = vsub.f32 %v713, %v539
      %v822 = vsub.f32 %v713, %v543
      %v823 = vsub.f32 %v713, %v547
      %v824 = vsub.f32 %v713, %v551
      %v825 = vsub.f32 %v713, %v555
      %v826 = vsub.f32 %v717, %v562
      %v827 = vsub.f32 %v717, %v566
      %v828 = vsub.f32 %v717, %v570
      %v829 = vsub.f32 %v717, %v574
      %v830 = vsub.f32 %v717, %v578
      %v831 = vsub.f32 %v717, %v582
      %v832 = vsub.f32 %v717, %v586
      %v833 = vsub.f32 %v717, %v590
      %v834 = vsub.f32 %v717, %v594
      %v835 = vsub.f32 %v717, %v598
      %v836 = vsub.f32 %v717, %v602
      %v837 = vsub.f32 %v717, %v606
      %v838 = vsub.f32 %v717, %v610
      %v839 = vsub.f32 %v717, %v614
      %v840 = vsub.f32 %v717, %v618
      %v841 = vsub.f32 %v717, %v622
      %v842 = vsub.f32 %v721, %v629
      %v843 = vsub.f32 %v721, %v633
      %v844 = vsub.f32 %v721, %v637
      %v845 = vsub.f32 %v721, %v641
      %v846 = vsub.f32 %v721, %v645
      %v847 = vsub.f32 %v721, %v649
      %v848 = vsub.f32 %v721, %v653
      %v849 = vsub.f32 %v721, %v657
      %v850 = vsub.f32 %v721, %v661
      %v851 = vsub.f32 %v721, %v665
      %v852 = vsub.f32 %v721, %v669
      %v853 = vsub.f32 %v721, %v673
      %v854 = vsub.f32 %v721, %v677
      %v855 = vsub.f32 %v721, %v681
      %v856 = vsub.f32 %v721, %v685
      %v857 = vsub.f32 %v721, %v689
      %v858 = vand.u32 2147483647, %v730
      %v859 = vand.u32 2147483647, %v731
      %v860 = vand.u32 2147483647, %v732
      %v861 = vand.u32 2147483647, %v733
      %v862 = vand.u32 2147483647, %v734
      %v863 = vand.u32 2147483647, %v735
      %v864 = vand.u32 2147483647, %v736
      %v865 = vand.u32 2147483647, %v737
      %v866 = vand.u32 2147483647, %v738
      %v867 = vand.u32 2147483647, %v739
      %v868 = vand.u32 2147483647, %v740
      %v869 = vand.u32 2147483647, %v741
      %v870 = vand.u32 2147483647, %v742
      %v871 = vand.u32 2147483647, %v743
      %v872 = vand.u32 2147483647, %v744
      %v873 = vand.u32 2147483647, %v745
      %v874 = vand.u32 2147483647, %v746
      %v875 = vand.u32 2147483647, %v747
      %v876 = vand.u32 2147483647, %v748
      %v877 = vand.u32 2147483647, %v749
      %v878 = vand.u32 2147483647, %v750
      %v879 = vand.u32 2147483647, %v751
      %v880 = vand.u32 2147483647, %v752
      %v881 = vand.u32 2147483647, %v753
      %v882 = vand.u32 2147483647, %v754
      %v883 = vand.u32 2147483647, %v755
      %v884 = vand.u32 2147483647, %v756
      %v885 = vand.u32 2147483647, %v757
      %v886 = vand.u32 2147483647, %v758
      %v887 = vand.u32 2147483647, %v759
      %v888 = vand.u32 2147483647, %v760
      %v889 = vand.u32 2147483647, %v761
      %v890 = vand.u32 2147483647, %v762
      %v891 = vand.u32 2147483647, %v763
      %v892 = vand.u32 2147483647, %v764
      %v893 = vand.u32 2147483647, %v765
      %v894 = vand.u32 2147483647, %v766
      %v895 = vand.u32 2147483647, %v767
      %v896 = vand.u32 2147483647, %v768
      %v897 = vand.u32 2147483647, %v769
      %v898 = vand.u32 2147483647, %v770
      %v899 = vand.u32 2147483647, %v771
      %v900 = vand.u32 2147483647, %v772
      %v901 = vand.u32 2147483647, %v773
      %v902 = vand.u32 2147483647, %v774
      %v903 = vand.u32 2147483647, %v775
      %v904 = vand.u32 2147483647, %v776
      %v905 = vand.u32 2147483647, %v777
      %v906 = vand.u32 2147483647, %v778
      %v907 = vand.u32 2147483647, %v779
      %v908 = vand.u32 2147483647, %v780
      %v909 = vand.u32 2147483647, %v781
      %v910 = vand.u32 2147483647, %v782
      %v911 = vand.u32 2147483647, %v783
      %v912 = vand.u32 2147483647, %v784
      %v913 = vand.u32 2147483647, %v785
      %v914 = vand.u32 2147483647, %v786
      %v915 = vand.u32 2147483647, %v787
      %v916 = vand.u32 2147483647, %v788
      %v917 = vand.u32 2147483647, %v789
      %v918 = vand.u32 2147483647, %v790
      %v919 = vand.u32 2147483647, %v791
      %v920 = vand.u32 2147483647, %v792
      %v921 = vand.u32 2147483647, %v793
      %v922 = vand.u32 2147483647, %v794
      %v923 = vand.u32 2147483647, %v795
      %v924 = vand.u32 2147483647, %v796
      %v925 = vand.u32 2147483647, %v797
      %v926 = vand.u32 2147483647, %v798
      %v927 = vand.u32 2147483647, %v799
      %v928 = vand.u32 2147483647, %v800
      %v929 = vand.u32 2147483647, %v801
      %v930 = vand.u32 2147483647, %v802
      %v931 = vand.u32 2147483647, %v803
      %v932 = vand.u32 2147483647, %v804
      %v933 = vand.u32 2147483647, %v805
      %v934 = vand.u32 2147483647, %v806
      %v935 = vand.u32 2147483647, %v807
      %v936 = vand.u32 2147483647, %v808
      %v937 = vand.u32 2147483647, %v809
      %v938 = vand.u32 2147483647, %v810
      %v939 = vand.u32 2147483647, %v811
      %v940 = vand.u32 2147483647, %v812
      %v941 = vand.u32 2147483647, %v813
      %v942 = vand.u32 2147483647, %v814
      %v943 = vand.u32 2147483647, %v815
      %v944 = vand.u32 2147483647, %v816
      %v945 = vand.u32 2147483647, %v817
      %v946 = vand.u32 2147483647, %v818
      %v947 = vand.u32 2147483647, %v819
      %v948 = vand.u32 2147483647, %v820
      %v949 = vand.u32 2147483647, %v821
      %v950 = vand.u32 2147483647, %v822
      %v951 = vand.u32 2147483647, %v823
      %v952 = vand.u32 2147483647, %v824
      %v953 = vand.u32 2147483647, %v825
      %v954 = vand.u32 2147483647, %v826
      %v955 = vand.u32 2147483647, %v827
      %v956 = vand.u32 2147483647, %v828
      %v957 = vand.u32 2147483647, %v829
      %v958 = vand.u32 2147483647, %v830
      %v959 = vand.u32 2147483647, %v831
      %v960 = vand.u32 2147483647, %v832
      %v961 = vand.u32 2147483647, %v833
      %v962 = vand.u32 2147483647, %v834
      %v963 = vand.u32 2147483647, %v835
      %v964 = vand.u32 2147483647, %v836
      %v965 = vand.u32 2147483647, %v837
      %v966 = vand.u32 2147483647, %v838
      %v967 = vand.u32 2147483647, %v839
      %v968 = vand.u32 2147483647, %v840
      %v969 = vand.u32 2147483647, %v841
      %v970 = vand.u32 2147483647, %v842
      %v971 = vand.u32 2147483647, %v843
      %v972 = vand.u32 2147483647, %v844
      %v973 = vand.u32 2147483647, %v845
      %v974 = vand.u32 2147483647, %v846
      %v975 = vand.u32 2147483647, %v847
      %v976 = vand.u32 2147483647, %v848
      %v977 = vand.u32 2147483647, %v849
      %v978 = vand.u32 2147483647, %v850
      %v979 = vand.u32 2147483647, %v851
      %v980 = vand.u32 2147483647, %v852
      %v981 = vand.u32 2147483647, %v853
      %v982 = vand.u32 2147483647, %v854
      %v983 = vand.u32 2147483647, %v855
      %v984 = vand.u32 2147483647, %v856
      %v985 = vand.u32 2147483647, %v857
      %v986 = vadd.f32 %v858, 1e-08
      %v987 = vadd.f32 %v859, 1e-08
      %v988 = vadd.f32 %v860, 1e-08
      %v989 = vadd.f32 %v861, 1e-08
      %v990 = vadd.f32 %v862, 1e-08
      %v991 = vadd.f32 %v863, 1e-08
      %v992 = vadd.f32 %v864, 1e-08
      %v993 = vadd.f32 %v865, 1e-08
      %v994 = vadd.f32 %v866, 1e-08
      %v995 = vadd.f32 %v867, 1e-08
      %v996 = vadd.f32 %v868, 1e-08
      %v997 = vadd.f32 %v869, 1e-08
      %v998 = vadd.f32 %v870, 1e-08
      %v999 = vadd.f32 %v871, 1e-08
      %v1000 = vadd.f32 %v872, 1e-08
      %v1001 = vadd.f32 %v873, 1e-08
      %v1002 = vadd.f32 %v874, 1e-08
      %v1003 = vadd.f32 %v875, 1e-08
      %v1004 = vadd.f32 %v876, 1e-08
      %v1005 = vadd.f32 %v877, 1e-08
      %v1006 = vadd.f32 %v878, 1e-08
      %v1007 = vadd.f32 %v879, 1e-08
      %v1008 = vadd.f32 %v880, 1e-08
      %v1009 = vadd.f32 %v881, 1e-08
      %v1010 = vadd.f32 %v882, 1e-08
      %v1011 = vadd.f32 %v883, 1e-08
      %v1012 = vadd.f32 %v884, 1e-08
      %v1013 = vadd.f32 %v885, 1e-08
      %v1014 = vadd.f32 %v886, 1e-08
      %v1015 = vadd.f32 %v887, 1e-08
      %v1016 = vadd.f32 %v888, 1e-08
      %v1017 = vadd.f32 %v889, 1e-08
      %v1018 = vadd.f32 %v890, 1e-08
      %v1019 = vadd.f32 %v891, 1e-08
      %v1020 = vadd.f32 %v892, 1e-08
      %v1021 = vadd.f32 %v893, 1e-08
      %v1022 = vadd.f32 %v894, 1e-08
      %v1023 = vadd.f32 %v895, 1e-08
      %v1024 = vadd.f32 %v896, 1e-08
      %v1025 = vadd.f32 %v897, 1e-08
      %v1026 = vadd.f32 %v898, 1e-08
      %v1027 = vadd.f32 %v899, 1e-08
      %v1028 = vadd.f32 %v900, 1e-08
      %v1029 = vadd.f32 %v901, 1e-08
      %v1030 = vadd.f32 %v902, 1e-08
      %v1031 = vadd.f32 %v903, 1e-08
      %v1032 = vadd.f32 %v904, 1e-08
      %v1033 = vadd.f32 %v905, 1e-08
      %v1034 = vadd.f32 %v906, 1e-08
      %v1035 = vadd.f32 %v907, 1e-08
      %v1036 = vadd.f32 %v908, 1e-08
      %v1037 = vadd.f32 %v909, 1e-08
      %v1038 = vadd.f32 %v910, 1e-08
      %v1039 = vadd.f32 %v911, 1e-08
      %v1040 = vadd.f32 %v912, 1e-08
      %v1041 = vadd.f32 %v913, 1e-08
      %v1042 = vadd.f32 %v914, 1e-08
      %v1043 = vadd.f32 %v915, 1e-08
      %v1044 = vadd.f32 %v916, 1e-08
      %v1045 = vadd.f32 %v917, 1e-08
      %v1046 = vadd.f32 %v918, 1e-08
      %v1047 = vadd.f32 %v919, 1e-08
      %v1048 = vadd.f32 %v920, 1e-08
      %v1049 = vadd.f32 %v921, 1e-08
      %v1050 = vadd.f32 %v922, 1e-08
      %v1051 = vadd.f32 %v923, 1e-08
      %v1052 = vadd.f32 %v924, 1e-08
      %v1053 = vadd.f32 %v925, 1e-08
      %v1054 = vadd.f32 %v926, 1e-08
      %v1055 = vadd.f32 %v927, 1e-08
      %v1056 = vadd.f32 %v928, 1e-08
      %v1057 = vadd.f32 %v929, 1e-08
      %v1058 = vadd.f32 %v930, 1e-08
      %v1059 = vadd.f32 %v931, 1e-08
      %v1060 = vadd.f32 %v932, 1e-08
      %v1061 = vadd.f32 %v933, 1e-08
      %v1062 = vadd.f32 %v934, 1e-08
      %v1063 = vadd.f32 %v935, 1e-08
      %v1064 = vadd.f32 %v936, 1e-08
      %v1065 = vadd.f32 %v937, 1e-08
      %v1066 = vadd.f32 %v938, 1e-08
      %v1067 = vadd.f32 %v939, 1e-08
      %v1068 = vadd.f32 %v940, 1e-08
      %v1069 = vadd.f32 %v941, 1e-08
      %v1070 = vadd.f32 %v942, 1e-08
      %v1071 = vadd.f32 %v943, 1e-08
      %v1072 = vadd.f32 %v944, 1e-08
      %v1073 = vadd.f32 %v945, 1e-08
      %v1074 = vadd.f32 %v946, 1e-08
      %v1075 = vadd.f32 %v947, 1e-08
      %v1076 = vadd.f32 %v948, 1e-08
      %v1077 = vadd.f32 %v949, 1e-08
      %v1078 = vadd.f32 %v950, 1e-08
      %v1079 = vadd.f32 %v951, 1e-08
      %v1080 = vadd.f32 %v952, 1e-08
      %v1081 = vadd.f32 %v953, 1e-08
      %v1082 = vadd.f32 %v954, 1e-08
      %v1083 = vadd.f32 %v955, 1e-08
      %v1084 = vadd.f32 %v956, 1e-08
      %v1085 = vadd.f32 %v957, 1e-08
      %v1086 = vadd.f32 %v958, 1e-08
      %v1087 = vadd.f32 %v959, 1e-08
      %v1088 = vadd.f32 %v960, 1e-08
      %v1089 = vadd.f32 %v961, 1e-08
      %v1090 = vadd.f32 %v962, 1e-08
      %v1091 = vadd.f32 %v963, 1e-08
      %v1092 = vadd.f32 %v964, 1e-08
      %v1093 = vadd.f32 %v965, 1e-08
      %v1094 = vadd.f32 %v966, 1e-08
      %v1095 = vadd.f32 %v967, 1e-08
      %v1096 = vadd.f32 %v968, 1e-08
      %v1097 = vadd.f32 %v969, 1e-08
      %v1098 = vadd.f32 %v970, 1e-08
      %v1099 = vadd.f32 %v971, 1e-08
      %v1100 = vadd.f32 %v972, 1e-08
      %v1101 = vadd.f32 %v973, 1e-08
      %v1102 = vadd.f32 %v974, 1e-08
      %v1103 = vadd.f32 %v975, 1e-08
      %v1104 = vadd.f32 %v976, 1e-08
      %v1105 = vadd.f32 %v977, 1e-08
      %v1106 = vadd.f32 %v978, 1e-08
      %v1107 = vadd.f32 %v979, 1e-08
      %v1108 = vadd.f32 %v980, 1e-08
      %v1109 = vadd.f32 %v981, 1e-08
      %v1110 = vadd.f32 %v982, 1e-08
      %v1111 = vadd.f32 %v983, 1e-08
      %v1112 = vadd.f32 %v984, 1e-08
      %v1113 = vadd.f32 %v985, 1e-08
      %v1114 = vrcp.pop %v986
      %v1115 = vmul.f32 1.0, %v1114
      %v1116 = vrcp.pop %v987
      %v1117 = vmul.f32 1.0, %v1116
      %v1118 = vrcp.pop %v988
      %v1119 = vmul.f32 1.0, %v1118
      %v1120 = vrcp.pop %v989
      %v1121 = vmul.f32 1.0, %v1120
      %v1122 = vrcp.pop %v990
      %v1123 = vmul.f32 1.0, %v1122
      %v1124 = vrcp.pop %v991
      %v1125 = vmul.f32 1.0, %v1124
      %v1126 = vrcp.pop %v992
      %v1127 = vmul.f32 1.0, %v1126
      %v1128 = vrcp.pop %v993
      %v1129 = vmul.f32 1.0, %v1128
      %v1130 = vrcp.pop %v994
      %v1131 = vmul.f32 1.0, %v1130
      %v1132 = vrcp.pop %v995
      %v1133 = vmul.f32 1.0, %v1132
      %v1134 = vrcp.pop %v996
      %v1135 = vmul.f32 1.0, %v1134
      %v1136 = vrcp.pop %v997
      %v1137 = vmul.f32 1.0, %v1136
      %v1138 = vrcp.pop %v998
      %v1139 = vmul.f32 1.0, %v1138
      %v1140 = vrcp.pop %v999
      %v1141 = vmul.f32 1.0, %v1140
      %v1142 = vrcp.pop %v1000
      %v1143 = vmul.f32 1.0, %v1142
      %v1144 = vrcp.pop %v1001
      %v1145 = vmul.f32 1.0, %v1144
      %v1146 = vrcp.pop %v1002
      %v1147 = vmul.f32 1.0, %v1146
      %v1148 = vrcp.pop %v1003
      %v1149 = vmul.f32 1.0, %v1148
      %v1150 = vrcp.pop %v1004
      %v1151 = vmul.f32 1.0, %v1150
      %v1152 = vrcp.pop %v1005
      %v1153 = vmul.f32 1.0, %v1152
      %v1154 = vrcp.pop %v1006
      %v1155 = vmul.f32 1.0, %v1154
      %v1156 = vrcp.pop %v1007
      %v1157 = vmul.f32 1.0, %v1156
      %v1158 = vrcp.pop %v1008
      %v1159 = vmul.f32 1.0, %v1158
      %v1160 = vrcp.pop %v1009
      %v1161 = vmul.f32 1.0, %v1160
      %v1162 = vrcp.pop %v1010
      %v1163 = vmul.f32 1.0, %v1162
      %v1164 = vrcp.pop %v1011
      %v1165 = vmul.f32 1.0, %v1164
      %v1166 = vrcp.pop %v1012
      %v1167 = vmul.f32 1.0, %v1166
      %v1168 = vrcp.pop %v1013
      %v1169 = vmul.f32 1.0, %v1168
      %v1170 = vrcp.pop %v1014
      %v1171 = vmul.f32 1.0, %v1170
      %v1172 = vrcp.pop %v1015
      %v1173 = vmul.f32 1.0, %v1172
      %v1174 = vrcp.pop %v1016
      %v1175 = vmul.f32 1.0, %v1174
      %v1176 = vrcp.pop %v1017
      %v1177 = vmul.f32 1.0, %v1176
      %v1178 = vrcp.pop %v1018
      %v1179 = vmul.f32 1.0, %v1178
      %v1180 = vrcp.pop %v1019
      %v1181 = vmul.f32 1.0, %v1180
      %v1182 = vrcp.pop %v1020
      %v1183 = vmul.f32 1.0, %v1182
      %v1184 = vrcp.pop %v1021
      %v1185 = vmul.f32 1.0, %v1184
      %v1186 = vrcp.pop %v1022
      %v1187 = vmul.f32 1.0, %v1186
      %v1188 = vrcp.pop %v1023
      %v1189 = vmul.f32 1.0, %v1188
      %v1190 = vrcp.pop %v1024
      %v1191 = vmul.f32 1.0, %v1190
      %v1192 = vrcp.pop %v1025
      %v1193 = vmul.f32 1.0, %v1192
      %v1194 = vrcp.pop %v1026
      %v1195 = vmul.f32 1.0, %v1194
      %v1196 = vrcp.pop %v1027
      %v1197 = vmul.f32 1.0, %v1196
      %v1198 = vrcp.pop %v1028
      %v1199 = vmul.f32 1.0, %v1198
      %v1200 = vrcp.pop %v1029
      %v1201 = vmul.f32 1.0, %v1200
      %v1202 = vrcp.pop %v1030
      %v1203 = vmul.f32 1.0, %v1202
      %v1204 = vrcp.pop %v1031
      %v1205 = vmul.f32 1.0, %v1204
      %v1206 = vrcp.pop %v1032
      %v1207 = vmul.f32 1.0, %v1206
      %v1208 = vrcp.pop %v1033
      %v1209 = vmul.f32 1.0, %v1208
      %v1210 = vrcp.pop %v1034
      %v1211 = vmul.f32 1.0, %v1210
      %v1212 = vrcp.pop %v1035
      %v1213 = vmul.f32 1.0, %v1212
      %v1214 = vrcp.pop %v1036
      %v1215 = vmul.f32 1.0, %v1214
      %v1216 = vrcp.pop %v1037
      %v1217 = vmul.f32 1.0, %v1216
      %v1218 = vrcp.pop %v1038
      %v1219 = vmul.f32 1.0, %v1218
      %v1220 = vrcp.pop %v1039
      %v1221 = vmul.f32 1.0, %v1220
      %v1222 = vrcp.pop %v1040
      %v1223 = vmul.f32 1.0, %v1222
      %v1224 = vrcp.pop %v1041
      %v1225 = vmul.f32 1.0, %v1224
      %v1226 = vrcp.pop %v1042
      %v1227 = vmul.f32 1.0, %v1226
      %v1228 = vrcp.pop %v1043
      %v1229 = vmul.f32 1.0, %v1228
      %v1230 = vrcp.pop %v1044
      %v1231 = vmul.f32 1.0, %v1230
      %v1232 = vrcp.pop %v1045
      %v1233 = vmul.f32 1.0, %v1232
      %v1234 = vrcp.pop %v1046
      %v1235 = vmul.f32 1.0, %v1234
      %v1236 = vrcp.pop %v1047
      %v1237 = vmul.f32 1.0, %v1236
      %v1238 = vrcp.pop %v1048
      %v1239 = vmul.f32 1.0, %v1238
      %v1240 = vrcp.pop %v1049
      %v1241 = vmul.f32 1.0, %v1240
      %v1242 = vrcp.pop %v1050
      %v1243 = vmul.f32 1.0, %v1242
      %v1244 = vrcp.pop %v1051
      %v1245 = vmul.f32 1.0, %v1244
      %v1246 = vrcp.pop %v1052
      %v1247 = vmul.f32 1.0, %v1246
      %v1248 = vrcp.pop %v1053
      %v1249 = vmul.f32 1.0, %v1248
      %v1250 = vrcp.pop %v1054
      %v1251 = vmul.f32 1.0, %v1250
      %v1252 = vrcp.pop %v1055
      %v1253 = vmul.f32 1.0, %v1252
      %v1254 = vrcp.pop %v1056
      %v1255 = vmul.f32 1.0, %v1254
      %v1256 = vrcp.pop %v1057
      %v1257 = vmul.f32 1.0, %v1256
      %v1258 = vrcp.pop %v1058
      %v1259 = vmul.f32 1.0, %v1258
      %v1260 = vrcp.pop %v1059
      %v1261 = vmul.f32 1.0, %v1260
      %v1262 = vrcp.pop %v1060
      %v1263 = vmul.f32 1.0, %v1262
      %v1264 = vrcp.pop %v1061
      %v1265 = vmul.f32 1.0, %v1264
      %v1266 = vrcp.pop %v1062
      %v1267 = vmul.f32 1.0, %v1266
      %v1268 = vrcp.pop %v1063
      %v1269 = vmul.f32 1.0, %v1268
      %v1270 = vrcp.pop %v1064
      %v1271 = vmul.f32 1.0, %v1270
      %v1272 = vrcp.pop %v1065
      %v1273 = vmul.f32 1.0, %v1272
      %v1274 = vrcp.pop %v1066
      %v1275 = vmul.f32 1.0, %v1274
      %v1276 = vrcp.pop %v1067
      %v1277 = vmul.f32 1.0, %v1276
      %v1278 = vrcp.pop %v1068
      %v1279 = vmul.f32 1.0, %v1278
      %v1280 = vrcp.pop %v1069
      %v1281 = vmul.f32 1.0, %v1280
      %v1282 = vrcp.pop %v1070
      %v1283 = vmul.f32 1.0, %v1282
      %v1284 = vrcp.pop %v1071
      %v1285 = vmul.f32 1.0, %v1284
      %v1286 = vrcp.pop %v1072
      %v1287 = vmul.f32 1.0, %v1286
      %v1288 = vrcp.pop %v1073
      %v1289 = vmul.f32 1.0, %v1288
      %v1290 = vrcp.pop %v1074
      %v1291 = vmul.f32 1.0, %v1290
      %v1292 = vrcp.pop %v1075
      %v1293 = vmul.f32 1.0, %v1292
      %v1294 = vrcp.pop %v1076
      %v1295 = vmul.f32 1.0, %v1294
      %v1296 = vrcp.pop %v1077
      %v1297 = vmul.f32 1.0, %v1296
      %v1298 = vrcp.pop %v1078
      %v1299 = vmul.f32 1.0, %v1298
      %v1300 = vrcp.pop %v1079
      %v1301 = vmul.f32 1.0, %v1300
      %v1302 = vrcp.pop %v1080
      %v1303 = vmul.f32 1.0, %v1302
      %v1304 = vrcp.pop %v1081
      %v1305 = vmul.f32 1.0, %v1304
      %v1306 = vrcp.pop %v1082
      %v1307 = vmul.f32 1.0, %v1306
      %v1308 = vrcp.pop %v1083
      %v1309 = vmul.f32 1.0, %v1308
      %v1310 = vrcp.pop %v1084
      %v1311 = vmul.f32 1.0, %v1310
      %v1312 = vrcp.pop %v1085
      %v1313 = vmul.f32 1.0, %v1312
      %v1314 = vrcp.pop %v1086
      %v1315 = vmul.f32 1.0, %v1314
      %v1316 = vrcp.pop %v1087
      %v1317 = vmul.f32 1.0, %v1316
      %v1318 = vrcp.pop %v1088
      %v1319 = vmul.f32 1.0, %v1318
      %v1320 = vrcp.pop %v1089
      %v1321 = vmul.f32 1.0, %v1320
      %v1322 = vrcp.pop %v1090
      %v1323 = vmul.f32 1.0, %v1322
      %v1324 = vrcp.pop %v1091
      %v1325 = vmul.f32 1.0, %v1324
      %v1326 = vrcp.pop %v1092
      %v1327 = vmul.f32 1.0, %v1326
      %v1328 = vrcp.pop %v1093
      %v1329 = vmul.f32 1.0, %v1328
      %v1330 = vrcp.pop %v1094
      %v1331 = vmul.f32 1.0, %v1330
      %v1332 = vrcp.pop %v1095
      %v1333 = vmul.f32 1.0, %v1332
      %v1334 = vrcp.pop %v1096
      %v1335 = vmul.f32 1.0, %v1334
      %v1336 = vrcp.pop %v1097
      %v1337 = vmul.f32 1.0, %v1336
      %v1338 = vrcp.pop %v1098
      %v1339 = vmul.f32 1.0, %v1338
      %v1340 = vrcp.pop %v1099
      %v1341 = vmul.f32 1.0, %v1340
      %v1342 = vrcp.pop %v1100
      %v1343 = vmul.f32 1.0, %v1342
      %v1344 = vrcp.pop %v1101
      %v1345 = vmul.f32 1.0, %v1344
      %v1346 = vrcp.pop %v1102
      %v1347 = vmul.f32 1.0, %v1346
      %v1348 = vrcp.pop %v1103
      %v1349 = vmul.f32 1.0, %v1348
      %v1350 = vrcp.pop %v1104
      %v1351 = vmul.f32 1.0, %v1350
      %v1352 = vrcp.pop %v1105
      %v1353 = vmul.f32 1.0, %v1352
      %v1354 = vrcp.pop %v1106
      %v1355 = vmul.f32 1.0, %v1354
      %v1356 = vrcp.pop %v1107
      %v1357 = vmul.f32 1.0, %v1356
      %v1358 = vrcp.pop %v1108
      %v1359 = vmul.f32 1.0, %v1358
      %v1360 = vrcp.pop %v1109
      %v1361 = vmul.f32 1.0, %v1360
      %v1362 = vrcp.pop %v1110
      %v1363 = vmul.f32 1.0, %v1362
      %v1364 = vrcp.pop %v1111
      %v1365 = vmul.f32 1.0, %v1364
      %v1366 = vrcp.pop %v1112
      %v1367 = vmul.f32 1.0, %v1366
      %v1368 = vrcp.pop %v1113
      %v1369 = vmul.f32 1.0, %v1368
      %1370 = vmax.xlane.f32.xlu0 %v1115
      %v1371 = vpop.xlane.xlu0 %1370
      %1372 = vmax.xlane.f32.xlu0 %v1117
      %v1373 = vpop.xlane.xlu0 %1372
      %1374 = vmax.xlane.f32.xlu0 %v1119
      %v1375 = vpop.xlane.xlu0 %1374
      %1376 = vmax.xlane.f32.xlu0 %v1121
      %v1377 = vpop.xlane.xlu0 %1376
      %1378 = vmax.xlane.f32.xlu0 %v1123
      %v1379 = vpop.xlane.xlu0 %1378
      %1380 = vmax.xlane.f32.xlu0 %v1125
      %v1381 = vpop.xlane.xlu0 %1380
      %1382 = vmax.xlane.f32.xlu0 %v1127
      %v1383 = vpop.xlane.xlu0 %1382
      %1384 = vmax.xlane.f32.xlu0 %v1129
      %v1385 = vpop.xlane.xlu0 %1384
      %1386 = vmax.xlane.f32.xlu0 %v1131
      %v1387 = vpop.xlane.xlu0 %1386
      %1388 = vmax.xlane.f32.xlu0 %v1133
      %v1389 = vpop.xlane.xlu0 %1388
      %1390 = vmax.xlane.f32.xlu0 %v1135
      %v1391 = vpop.xlane.xlu0 %1390
      %1392 = vmax.xlane.f32.xlu0 %v1137
      %v1393 = vpop.xlane.xlu0 %1392
      %1394 = vmax.xlane.f32.xlu0 %v1139
      %v1395 = vpop.xlane.xlu0 %1394
      %1396 = vmax.xlane.f32.xlu0 %v1141
      %v1397 = vpop.xlane.xlu0 %1396
      %1398 = vmax.xlane.f32.xlu0 %v1143
      %v1399 = vpop.xlane.xlu0 %1398
      %1400 = vmax.xlane.f32.xlu0 %v1145
      %v1401 = vpop.xlane.xlu0 %1400
      %1402 = vmax.xlane.f32.xlu0 %v1147
      %v1403 = vpop.xlane.xlu0 %1402
      %1404 = vmax.xlane.f32.xlu0 %v1149
      %v1405 = vpop.xlane.xlu0 %1404
      %1406 = vmax.xlane.f32.xlu0 %v1151
      %v1407 = vpop.xlane.xlu0 %1406
      %1408 = vmax.xlane.f32.xlu0 %v1153
      %v1409 = vpop.xlane.xlu0 %1408
      %1410 = vmax.xlane.f32.xlu0 %v1155
      %v1411 = vpop.xlane.xlu0 %1410
      %1412 = vmax.xlane.f32.xlu0 %v1157
      %v1413 = vpop.xlane.xlu0 %1412
      %1414 = vmax.xlane.f32.xlu0 %v1159
      %v1415 = vpop.xlane.xlu0 %1414
      %1416 = vmax.xlane.f32.xlu0 %v1161
      %v1417 = vpop.xlane.xlu0 %1416
      %1418 = vmax.xlane.f32.xlu0 %v1163
      %v1419 = vpop.xlane.xlu0 %1418
      %1420 = vmax.xlane.f32.xlu0 %v1165
      %v1421 = vpop.xlane.xlu0 %1420
      %1422 = vmax.xlane.f32.xlu0 %v1167
      %v1423 = vpop.xlane.xlu0 %1422
      %1424 = vmax.xlane.f32.xlu0 %v1169
      %v1425 = vpop.xlane.xlu0 %1424
      %1426 = vmax.xlane.f32.xlu0 %v1171
      %v1427 = vpop.xlane.xlu0 %1426
      %1428 = vmax.xlane.f32.xlu0 %v1173
      %v1429 = vpop.xlane.xlu0 %1428
      %1430 = vmax.xlane.f32.xlu0 %v1175
      %v1431 = vpop.xlane.xlu0 %1430
      %1432 = vmax.xlane.f32.xlu0 %v1177
      %v1433 = vpop.xlane.xlu0 %1432
      %1434 = vmax.xlane.f32.xlu0 %v1179
      %v1435 = vpop.xlane.xlu0 %1434
      %1436 = vmax.xlane.f32.xlu0 %v1181
      %v1437 = vpop.xlane.xlu0 %1436
      %1438 = vmax.xlane.f32.xlu0 %v1183
      %v1439 = vpop.xlane.xlu0 %1438
      %1440 = vmax.xlane.f32.xlu0 %v1185
      %v1441 = vpop.xlane.xlu0 %1440
      %1442 = vmax.xlane.f32.xlu0 %v1187
      %v1443 = vpop.xlane.xlu0 %1442
      %1444 = vmax.xlane.f32.xlu0 %v1189
      %v1445 = vpop.xlane.xlu0 %1444
      %1446 = vmax.xlane.f32.xlu0 %v1191
      %v1447 = vpop.xlane.xlu0 %1446
      %1448 = vmax.xlane.f32.xlu0 %v1193
      %v1449 = vpop.xlane.xlu0 %1448
      %1450 = vmax.xlane.f32.xlu0 %v1195
      %v1451 = vpop.xlane.xlu0 %1450
      %1452 = vmax.xlane.f32.xlu0 %v1197
      %v1453 = vpop.xlane.xlu0 %1452
      %1454 = vmax.xlane.f32.xlu0 %v1199
      %v1455 = vpop.xlane.xlu0 %1454
      %1456 = vmax.xlane.f32.xlu0 %v1201
      %v1457 = vpop.xlane.xlu0 %1456
      %1458 = vmax.xlane.f32.xlu0 %v1203
      %v1459 = vpop.xlane.xlu0 %1458
      %1460 = vmax.xlane.f32.xlu0 %v1205
      %v1461 = vpop.xlane.xlu0 %1460
      %1462 = vmax.xlane.f32.xlu0 %v1207
      %v1463 = vpop.xlane.xlu0 %1462
      %1464 = vmax.xlane.f32.xlu0 %v1209
      %v1465 = vpop.xlane.xlu0 %1464
      %1466 = vmax.xlane.f32.xlu0 %v1211
      %v1467 = vpop.xlane.xlu0 %1466
      %1468 = vmax.xlane.f32.xlu0 %v1213
      %v1469 = vpop.xlane.xlu0 %1468
      %1470 = vmax.xlane.f32.xlu0 %v1215
      %v1471 = vpop.xlane.xlu0 %1470
      %1472 = vmax.xlane.f32.xlu0 %v1217
      %v1473 = vpop.xlane.xlu0 %1472
      %1474 = vmax.xlane.f32.xlu0 %v1219
      %v1475 = vpop.xlane.xlu0 %1474
      %1476 = vmax.xlane.f32.xlu0 %v1221
      %v1477 = vpop.xlane.xlu0 %1476
      %1478 = vmax.xlane.f32.xlu0 %v1223
      %v1479 = vpop.xlane.xlu0 %1478
      %1480 = vmax.xlane.f32.xlu0 %v1225
      %v1481 = vpop.xlane.xlu0 %1480
      %1482 = vmax.xlane.f32.xlu0 %v1227
      %v1483 = vpop.xlane.xlu0 %1482
      %1484 = vmax.xlane.f32.xlu0 %v1229
      %v1485 = vpop.xlane.xlu0 %1484
      %1486 = vmax.xlane.f32.xlu0 %v1231
      %v1487 = vpop.xlane.xlu0 %1486
      %1488 = vmax.xlane.f32.xlu0 %v1233
      %v1489 = vpop.xlane.xlu0 %1488
      %1490 = vmax.xlane.f32.xlu0 %v1235
      %v1491 = vpop.xlane.xlu0 %1490
      %1492 = vmax.xlane.f32.xlu0 %v1237
      %v1493 = vpop.xlane.xlu0 %1492
      %1494 = vmax.xlane.f32.xlu0 %v1239
      %v1495 = vpop.xlane.xlu0 %1494
      %1496 = vmax.xlane.f32.xlu0 %v1241
      %v1497 = vpop.xlane.xlu0 %1496
      %1498 = vmax.xlane.f32.xlu0 %v1243
      %v1499 = vpop.xlane.xlu0 %1498
      %1500 = vmax.xlane.f32.xlu0 %v1245
      %v1501 = vpop.xlane.xlu0 %1500
      %1502 = vmax.xlane.f32.xlu0 %v1247
      %v1503 = vpop.xlane.xlu0 %1502
      %1504 = vmax.xlane.f32.xlu0 %v1249
      %v1505 = vpop.xlane.xlu0 %1504
      %1506 = vmax.xlane.f32.xlu0 %v1251
      %v1507 = vpop.xlane.xlu0 %1506
      %1508 = vmax.xlane.f32.xlu0 %v1253
      %v1509 = vpop.xlane.xlu0 %1508
      %1510 = vmax.xlane.f32.xlu0 %v1255
      %v1511 = vpop.xlane.xlu0 %1510
      %1512 = vmax.xlane.f32.xlu0 %v1257
      %v1513 = vpop.xlane.xlu0 %1512
      %1514 = vmax.xlane.f32.xlu0 %v1259
      %v1515 = vpop.xlane.xlu0 %1514
      %1516 = vmax.xlane.f32.xlu0 %v1261
      %v1517 = vpop.xlane.xlu0 %1516
      %1518 = vmax.xlane.f32.xlu0 %v1263
      %v1519 = vpop.xlane.xlu0 %1518
      %1520 = vmax.xlane.f32.xlu0 %v1265
      %v1521 = vpop.xlane.xlu0 %1520
      %1522 = vmax.xlane.f32.xlu0 %v1267
      %v1523 = vpop.xlane.xlu0 %1522
      %1524 = vmax.xlane.f32.xlu0 %v1269
      %v1525 = vpop.xlane.xlu0 %1524
      %1526 = vmax.xlane.f32.xlu0 %v1271
      %v1527 = vpop.xlane.xlu0 %1526
      %1528 = vmax.xlane.f32.xlu0 %v1273
      %v1529 = vpop.xlane.xlu0 %1528
      %1530 = vmax.xlane.f32.xlu0 %v1275
      %v1531 = vpop.xlane.xlu0 %1530
      %1532 = vmax.xlane.f32.xlu0 %v1277
      %v1533 = vpop.xlane.xlu0 %1532
      %1534 = vmax.xlane.f32.xlu0 %v1279
      %v1535 = vpop.xlane.xlu0 %1534
      %1536 = vmax.xlane.f32.xlu0 %v1281
      %v1537 = vpop.xlane.xlu0 %1536
      %1538 = vmax.xlane.f32.xlu0 %v1283
      %v1539 = vpop.xlane.xlu0 %1538
      %1540 = vmax.xlane.f32.xlu0 %v1285
      %v1541 = vpop.xlane.xlu0 %1540
      %1542 = vmax.xlane.f32.xlu0 %v1287
      %v1543 = vpop.xlane.xlu0 %1542
      %1544 = vmax.xlane.f32.xlu0 %v1289
      %v1545 = vpop.xlane.xlu0 %1544
      %1546 = vmax.xlane.f32.xlu0 %v1291
      %v1547 = vpop.xlane.xlu0 %1546
      %1548 = vmax.xlane.f32.xlu0 %v1293
      %v1549 = vpop.xlane.xlu0 %1548
      %1550 = vmax.xlane.f32.xlu0 %v1295
      %v1551 = vpop.xlane.xlu0 %1550
      %1552 = vmax.xlane.f32.xlu0 %v1297
      %v1553 = vpop.xlane.xlu0 %1552
      %1554 = vmax.xlane.f32.xlu0 %v1299
      %v1555 = vpop.xlane.xlu0 %1554
      %1556 = vmax.xlane.f32.xlu0 %v1301
      %v1557 = vpop.xlane.xlu0 %1556
      %1558 = vmax.xlane.f32.xlu0 %v1303
      %v1559 = vpop.xlane.xlu0 %1558
      %1560 = vmax.xlane.f32.xlu0 %v1305
      %v1561 = vpop.xlane.xlu0 %1560
      %1562 = vmax.xlane.f32.xlu0 %v1307
      %v1563 = vpop.xlane.xlu0 %1562
      %1564 = vmax.xlane.f32.xlu0 %v1309
      %v1565 = vpop.xlane.xlu0 %1564
      %1566 = vmax.xlane.f32.xlu0 %v1311
      %v1567 = vpop.xlane.xlu0 %1566
      %1568 = vmax.xlane.f32.xlu0 %v1313
      %v1569 = vpop.xlane.xlu0 %1568
      %1570 = vmax.xlane.f32.xlu0 %v1315
      %v1571 = vpop.xlane.xlu0 %1570
      %1572 = vmax.xlane.f32.xlu0 %v1317
      %v1573 = vpop.xlane.xlu0 %1572
      %1574 = vmax.xlane.f32.xlu0 %v1319
      %v1575 = vpop.xlane.xlu0 %1574
      %1576 = vmax.xlane.f32.xlu0 %v1321
      %v1577 = vpop.xlane.xlu0 %1576
      %1578 = vmax.xlane.f32.xlu0 %v1323
      %v1579 = vpop.xlane.xlu0 %1578
      %1580 = vmax.xlane.f32.xlu0 %v1325
      %v1581 = vpop.xlane.xlu0 %1580
      %1582 = vmax.xlane.f32.xlu0 %v1327
      %v1583 = vpop.xlane.xlu0 %1582
      %1584 = vmax.xlane.f32.xlu0 %v1329
      %v1585 = vpop.xlane.xlu0 %1584
      %1586 = vmax.xlane.f32.xlu0 %v1331
      %v1587 = vpop.xlane.xlu0 %1586
      %1588 = vmax.xlane.f32.xlu0 %v1333
      %v1589 = vpop.xlane.xlu0 %1588
      %1590 = vmax.xlane.f32.xlu0 %v1335
      %v1591 = vpop.xlane.xlu0 %1590
      %1592 = vmax.xlane.f32.xlu0 %v1337
      %v1593 = vpop.xlane.xlu0 %1592
      %1594 = vmax.xlane.f32.xlu0 %v1339
      %v1595 = vpop.xlane.xlu0 %1594
      %1596 = vmax.xlane.f32.xlu0 %v1341
      %v1597 = vpop.xlane.xlu0 %1596
      %1598 = vmax.xlane.f32.xlu0 %v1343
      %v1599 = vpop.xlane.xlu0 %1598
      %1600 = vmax.xlane.f32.xlu0 %v1345
      %v1601 = vpop.xlane.xlu0 %1600
      %1602 = vmax.xlane.f32.xlu0 %v1347
      %v1603 = vpop.xlane.xlu0 %1602
      %1604 = vmax.xlane.f32.xlu0 %v1349
      %v1605 = vpop.xlane.xlu0 %1604
      %1606 = vmax.xlane.f32.xlu0 %v1351
      %v1607 = vpop.xlane.xlu0 %1606
      %1608 = vmax.xlane.f32.xlu0 %v1353
      %v1609 = vpop.xlane.xlu0 %1608
      %1610 = vmax.xlane.f32.xlu0 %v1355
      %v1611 = vpop.xlane.xlu0 %1610
      %1612 = vmax.xlane.f32.xlu0 %v1357
      %v1613 = vpop.xlane.xlu0 %1612
      %1614 = vmax.xlane.f32.xlu0 %v1359
      %v1615 = vpop.xlane.xlu0 %1614
      %1616 = vmax.xlane.f32.xlu0 %v1361
      %v1617 = vpop.xlane.xlu0 %1616
      %1618 = vmax.xlane.f32.xlu0 %v1363
      %v1619 = vpop.xlane.xlu0 %1618
      %1620 = vmax.xlane.f32.xlu0 %v1365
      %v1621 = vpop.xlane.xlu0 %1620
      %1622 = vmax.xlane.f32.xlu0 %v1367
      %v1623 = vpop.xlane.xlu0 %1622
      %1624 = vmax.xlane.f32.xlu0 %v1369
      %v1625 = vpop.xlane.xlu0 %1624
      %v1626 = vsub.f32 %v1115, %v1371
      %v1627 = vsub.f32 %v1117, %v1373
      %v1628 = vsub.f32 %v1119, %v1375
      %v1629 = vsub.f32 %v1121, %v1377
      %v1630 = vsub.f32 %v1123, %v1379
      %v1631 = vsub.f32 %v1125, %v1381
      %v1632 = vsub.f32 %v1127, %v1383
      %v1633 = vsub.f32 %v1129, %v1385
      %v1634 = vsub.f32 %v1131, %v1387
      %v1635 = vsub.f32 %v1133, %v1389
      %v1636 = vsub.f32 %v1135, %v1391
      %v1637 = vsub.f32 %v1137, %v1393
      %v1638 = vsub.f32 %v1139, %v1395
      %v1639 = vsub.f32 %v1141, %v1397
      %v1640 = vsub.f32 %v1143, %v1399
      %v1641 = vsub.f32 %v1145, %v1401
      %v1642 = vsub.f32 %v1147, %v1403
      %v1643 = vsub.f32 %v1149, %v1405
      %v1644 = vsub.f32 %v1151, %v1407
      %v1645 = vsub.f32 %v1153, %v1409
      %v1646 = vsub.f32 %v1155, %v1411
      %v1647 = vsub.f32 %v1157, %v1413
      %v1648 = vsub.f32 %v1159, %v1415
      %v1649 = vsub.f32 %v1161, %v1417
      %v1650 = vsub.f32 %v1163, %v1419
      %v1651 = vsub.f32 %v1165, %v1421
      %v1652 = vsub.f32 %v1167, %v1423
      %v1653 = vsub.f32 %v1169, %v1425
      %v1654 = vsub.f32 %v1171, %v1427
      %v1655 = vsub.f32 %v1173, %v1429
      %v1656 = vsub.f32 %v1175, %v1431
      %v1657 = vsub.f32 %v1177, %v1433
      %v1658 = vsub.f32 %v1179, %v1435
      %v1659 = vsub.f32 %v1181, %v1437
      %v1660 = vsub.f32 %v1183, %v1439
      %v1661 = vsub.f32 %v1185, %v1441
      %v1662 = vsub.f32 %v1187, %v1443
      %v1663 = vsub.f32 %v1189, %v1445
      %v1664 = vsub.f32 %v1191, %v1447
      %v1665 = vsub.f32 %v1193, %v1449
      %v1666 = vsub.f32 %v1195, %v1451
      %v1667 = vsub.f32 %v1197, %v1453
      %v1668 = vsub.f32 %v1199, %v1455
      %v1669 = vsub.f32 %v1201, %v1457
      %v1670 = vsub.f32 %v1203, %v1459
      %v1671 = vsub.f32 %v1205, %v1461
      %v1672 = vsub.f32 %v1207, %v1463
      %v1673 = vsub.f32 %v1209, %v1465
      %v1674 = vsub.f32 %v1211, %v1467
      %v1675 = vsub.f32 %v1213, %v1469
      %v1676 = vsub.f32 %v1215, %v1471
      %v1677 = vsub.f32 %v1217, %v1473
      %v1678 = vsub.f32 %v1219, %v1475
      %v1679 = vsub.f32 %v1221, %v1477
      %v1680 = vsub.f32 %v1223, %v1479
      %v1681 = vsub.f32 %v1225, %v1481
      %v1682 = vsub.f32 %v1227, %v1483
      %v1683 = vsub.f32 %v1229, %v1485
      %v1684 = vsub.f32 %v1231, %v1487
      %v1685 = vsub.f32 %v1233, %v1489
      %v1686 = vsub.f32 %v1235, %v1491
      %v1687 = vsub.f32 %v1237, %v1493
      %v1688 = vsub.f32 %v1239, %v1495
      %v1689 = vsub.f32 %v1241, %v1497
      %v1690 = vsub.f32 %v1243, %v1499
      %v1691 = vsub.f32 %v1245, %v1501
      %v1692 = vsub.f32 %v1247, %v1503
      %v1693 = vsub.f32 %v1249, %v1505
      %v1694 = vsub.f32 %v1251, %v1507
      %v1695 = vsub.f32 %v1253, %v1509
      %v1696 = vsub.f32 %v1255, %v1511
      %v1697 = vsub.f32 %v1257, %v1513
      %v1698 = vsub.f32 %v1259, %v1515
      %v1699 = vsub.f32 %v1261, %v1517
      %v1700 = vsub.f32 %v1263, %v1519
      %v1701 = vsub.f32 %v1265, %v1521
      %v1702 = vsub.f32 %v1267, %v1523
      %v1703 = vsub.f32 %v1269, %v1525
      %v1704 = vsub.f32 %v1271, %v1527
      %v1705 = vsub.f32 %v1273, %v1529
      %v1706 = vsub.f32 %v1275, %v1531
      %v1707 = vsub.f32 %v1277, %v1533
      %v1708 = vsub.f32 %v1279, %v1535
      %v1709 = vsub.f32 %v1281, %v1537
      %v1710 = vsub.f32 %v1283, %v1539
      %v1711 = vsub.f32 %v1285, %v1541
      %v1712 = vsub.f32 %v1287, %v1543
      %v1713 = vsub.f32 %v1289, %v1545
      %v1714 = vsub.f32 %v1291, %v1547
      %v1715 = vsub.f32 %v1293, %v1549
      %v1716 = vsub.f32 %v1295, %v1551
      %v1717 = vsub.f32 %v1297, %v1553
      %v1718 = vsub.f32 %v1299, %v1555
      %v1719 = vsub.f32 %v1301, %v1557
      %v1720 = vsub.f32 %v1303, %v1559
      %v1721 = vsub.f32 %v1305, %v1561
      %v1722 = vsub.f32 %v1307, %v1563
      %v1723 = vsub.f32 %v1309, %v1565
      %v1724 = vsub.f32 %v1311, %v1567
      %v1725 = vsub.f32 %v1313, %v1569
      %v1726 = vsub.f32 %v1315, %v1571
      %v1727 = vsub.f32 %v1317, %v1573
      %v1728 = vsub.f32 %v1319, %v1575
      %v1729 = vsub.f32 %v1321, %v1577
      %v1730 = vsub.f32 %v1323, %v1579
      %v1731 = vsub.f32 %v1325, %v1581
      %v1732 = vsub.f32 %v1327, %v1583
      %v1733 = vsub.f32 %v1329, %v1585
      %v1734 = vsub.f32 %v1331, %v1587
      %v1735 = vsub.f32 %v1333, %v1589
      %v1736 = vsub.f32 %v1335, %v1591
      %v1737 = vsub.f32 %v1337, %v1593
      %v1738 = vsub.f32 %v1339, %v1595
      %v1739 = vsub.f32 %v1341, %v1597
      %v1740 = vsub.f32 %v1343, %v1599
      %v1741 = vsub.f32 %v1345, %v1601
      %v1742 = vsub.f32 %v1347, %v1603
      %v1743 = vsub.f32 %v1349, %v1605
      %v1744 = vsub.f32 %v1351, %v1607
      %v1745 = vsub.f32 %v1353, %v1609
      %v1746 = vsub.f32 %v1355, %v1611
      %v1747 = vsub.f32 %v1357, %v1613
      %v1748 = vsub.f32 %v1359, %v1615
      %v1749 = vsub.f32 %v1361, %v1617
      %v1750 = vsub.f32 %v1363, %v1619
      %v1751 = vsub.f32 %v1365, %v1621
      %v1752 = vsub.f32 %v1367, %v1623
      %v1753 = vsub.f32 %v1369, %v1625
      %v1754 = vmul.f32 %v1626, 1.442695
      %v1755 = vpow.pop %v1754
      %v1756 = vmul.f32 %v1627, 1.442695
      %v1757 = vpow.pop %v1756
      %v1758 = vmul.f32 %v1628, 1.442695
      %v1759 = vpow.pop %v1758
      %v1760 = vmul.f32 %v1629, 1.442695
      %v1761 = vpow.pop %v1760
      %v1762 = vmul.f32 %v1630, 1.442695
      %v1763 = vpow.pop %v1762
      %v1764 = vmul.f32 %v1631, 1.442695
      %v1765 = vpow.pop %v1764
      %v1766 = vmul.f32 %v1632, 1.442695
      %v1767 = vpow.pop %v1766
      %v1768 = vmul.f32 %v1633, 1.442695
      %v1769 = vpow.pop %v1768
      %v1770 = vmul.f32 %v1634, 1.442695
      %v1771 = vpow.pop %v1770
      %v1772 = vmul.f32 %v1635, 1.442695
      %v1773 = vpow.pop %v1772
      %v1774 = vmul.f32 %v1636, 1.442695
      %v1775 = vpow.pop %v1774
      %v1776 = vmul.f32 %v1637, 1.442695
      %v1777 = vpow.pop %v1776
      %v1778 = vmul.f32 %v1638, 1.442695
      %v1779 = vpow.pop %v1778
      %v1780 = vmul.f32 %v1639, 1.442695
      %v1781 = vpow.pop %v1780
      %v1782 = vmul.f32 %v1640, 1.442695
      %v1783 = vpow.pop %v1782
      %v1784 = vmul.f32 %v1641, 1.442695
      %v1785 = vpow.pop %v1784
      %v1786 = vmul.f32 %v1642, 1.442695
      %v1787 = vpow.pop %v1786
      %v1788 = vmul.f32 %v1643, 1.442695
      %v1789 = vpow.pop %v1788
      %v1790 = vmul.f32 %v1644, 1.442695
      %v1791 = vpow.pop %v1790
      %v1792 = vmul.f32 %v1645, 1.442695
      %v1793 = vpow.pop %v1792
      %v1794 = vmul.f32 %v1646, 1.442695
      %v1795 = vpow.pop %v1794
      %v1796 = vmul.f32 %v1647, 1.442695
      %v1797 = vpow.pop %v1796
      %v1798 = vmul.f32 %v1648, 1.442695
      %v1799 = vpow.pop %v1798
      %v1800 = vmul.f32 %v1649, 1.442695
      %v1801 = vpow.pop %v1800
      %v1802 = vmul.f32 %v1650, 1.442695
      %v1803 = vpow.pop %v1802
      %v1804 = vmul.f32 %v1651, 1.442695
      %v1805 = vpow.pop %v1804
      %v1806 = vmul.f32 %v1652, 1.442695
      %v1807 = vpow.pop %v1806
      %v1808 = vmul.f32 %v1653, 1.442695
      %v1809 = vpow.pop %v1808
      %v1810 = vmul.f32 %v1654, 1.442695
      %v1811 = vpow.pop %v1810
      %v1812 = vmul.f32 %v1655, 1.442695
      %v1813 = vpow.pop %v1812
      %v1814 = vmul.f32 %v1656, 1.442695
      %v1815 = vpow.pop %v1814
      %v1816 = vmul.f32 %v1657, 1.442695
      %v1817 = vpow.pop %v1816
      %v1818 = vmul.f32 %v1658, 1.442695
      %v1819 = vpow.pop %v1818
      %v1820 = vmul.f32 %v1659, 1.442695
      %v1821 = vpow.pop %v1820
      %v1822 = vmul.f32 %v1660, 1.442695
      %v1823 = vpow.pop %v1822
      %v1824 = vmul.f32 %v1661, 1.442695
      %v1825 = vpow.pop %v1824
      %v1826 = vmul.f32 %v1662, 1.442695
      %v1827 = vpow.pop %v1826
      %v1828 = vmul.f32 %v1663, 1.442695
      %v1829 = vpow.pop %v1828
      %v1830 = vmul.f32 %v1664, 1.442695
      %v1831 = vpow.pop %v1830
      %v1832 = vmul.f32 %v1665, 1.442695
      %v1833 = vpow.pop %v1832
      %v1834 = vmul.f32 %v1666, 1.442695
      %v1835 = vpow.pop %v1834
      %v1836 = vmul.f32 %v1667, 1.442695
      %v1837 = vpow.pop %v1836
      %v1838 = vmul.f32 %v1668, 1.442695
      %v1839 = vpow.pop %v1838
      %v1840 = vmul.f32 %v1669, 1.442695
      %v1841 = vpow.pop %v1840
      %v1842 = vmul.f32 %v1670, 1.442695
      %v1843 = vpow.pop %v1842
      %v1844 = vmul.f32 %v1671, 1.442695
      %v1845 = vpow.pop %v1844
      %v1846 = vmul.f32 %v1672, 1.442695
      %v1847 = vpow.pop %v1846
      %v1848 = vmul.f32 %v1673, 1.442695
      %v1849 = vpow.pop %v1848
      %v1850 = vmul.f32 %v1674, 1.442695
      %v1851 = vpow.pop %v1850
      %v1852 = vmul.f32 %v1675, 1.442695
      %v1853 = vpow.pop %v1852
      %v1854 = vmul.f32 %v1676, 1.442695
      %v1855 = vpow.pop %v1854
      %v1856 = vmul.f32 %v1677, 1.442695
      %v1857 = vpow.pop %v1856
      %v1858 = vmul.f32 %v1678, 1.442695
      %v1859 = vpow.pop %v1858
      %v1860 = vmul.f32 %v1679, 1.442695
      %v1861 = vpow.pop %v1860
      %v1862 = vmul.f32 %v1680, 1.442695
      %v1863 = vpow.pop %v1862
      %v1864 = vmul.f32 %v1681, 1.442695
      %v1865 = vpow.pop %v1864
      %v1866 = vmul.f32 %v1682, 1.442695
      %v1867 = vpow.pop %v1866
      %v1868 = vmul.f32 %v1683, 1.442695
      %v1869 = vpow.pop %v1868
      %v1870 = vmul.f32 %v1684, 1.442695
      %v1871 = vpow.pop %v1870
      %v1872 = vmul.f32 %v1685, 1.442695
      %v1873 = vpow.pop %v1872
      %v1874 = vmul.f32 %v1686, 1.442695
      %v1875 = vpow.pop %v1874
      %v1876 = vmul.f32 %v1687, 1.442695
      %v1877 = vpow.pop %v1876
      %v1878 = vmul.f32 %v1688, 1.442695
      %v1879 = vpow.pop %v1878
      %v1880 = vmul.f32 %v1689, 1.442695
      %v1881 = vpow.pop %v1880
      %v1882 = vmul.f32 %v1690, 1.442695
      %v1883 = vpow.pop %v1882
      %v1884 = vmul.f32 %v1691, 1.442695
      %v1885 = vpow.pop %v1884
      %v1886 = vmul.f32 %v1692, 1.442695
      %v1887 = vpow.pop %v1886
      %v1888 = vmul.f32 %v1693, 1.442695
      %v1889 = vpow.pop %v1888
      %v1890 = vmul.f32 %v1694, 1.442695
      %v1891 = vpow.pop %v1890
      %v1892 = vmul.f32 %v1695, 1.442695
      %v1893 = vpow.pop %v1892
      %v1894 = vmul.f32 %v1696, 1.442695
      %v1895 = vpow.pop %v1894
      %v1896 = vmul.f32 %v1697, 1.442695
      %v1897 = vpow.pop %v1896
      %v1898 = vmul.f32 %v1698, 1.442695
      %v1899 = vpow.pop %v1898
      %v1900 = vmul.f32 %v1699, 1.442695
      %v1901 = vpow.pop %v1900
      %v1902 = vmul.f32 %v1700, 1.442695
      %v1903 = vpow.pop %v1902
      %v1904 = vmul.f32 %v1701, 1.442695
      %v1905 = vpow.pop %v1904
      %v1906 = vmul.f32 %v1702, 1.442695
      %v1907 = vpow.pop %v1906
      %v1908 = vmul.f32 %v1703, 1.442695
      %v1909 = vpow.pop %v1908
      %v1910 = vmul.f32 %v1704, 1.442695
      %v1911 = vpow.pop %v1910
      %v1912 = vmul.f32 %v1705, 1.442695
      %v1913 = vpow.pop %v1912
      %v1914 = vmul.f32 %v1706, 1.442695
      %v1915 = vpow.pop %v1914
      %v1916 = vmul.f32 %v1707, 1.442695
      %v1917 = vpow.pop %v1916
      %v1918 = vmul.f32 %v1708, 1.442695
      %v1919 = vpow.pop %v1918
      %v1920 = vmul.f32 %v1709, 1.442695
      %v1921 = vpow.pop %v1920
      %v1922 = vmul.f32 %v1710, 1.442695
      %v1923 = vpow.pop %v1922
      %v1924 = vmul.f32 %v1711, 1.442695
      %v1925 = vpow.pop %v1924
      %v1926 = vmul.f32 %v1712, 1.442695
      %v1927 = vpow.pop %v1926
      %v1928 = vmul.f32 %v1713, 1.442695
      %v1929 = vpow.pop %v1928
      %v1930 = vmul.f32 %v1714, 1.442695
      %v1931 = vpow.pop %v1930
      %v1932 = vmul.f32 %v1715, 1.442695
      %v1933 = vpow.pop %v1932
      %v1934 = vmul.f32 %v1716, 1.442695
      %v1935 = vpow.pop %v1934
      %v1936 = vmul.f32 %v1717, 1.442695
      %v1937 = vpow.pop %v1936
      %v1938 = vmul.f32 %v1718, 1.442695
      %v1939 = vpow.pop %v1938
      %v1940 = vmul.f32 %v1719, 1.442695
      %v1941 = vpow.pop %v1940
      %v1942 = vmul.f32 %v1720, 1.442695
      %v1943 = vpow.pop %v1942
      %v1944 = vmul.f32 %v1721, 1.442695
      %v1945 = vpow.pop %v1944
      %v1946 = vmul.f32 %v1722, 1.442695
      %v1947 = vpow.pop %v1946
      %v1948 = vmul.f32 %v1723, 1.442695
      %v1949 = vpow.pop %v1948
      %v1950 = vmul.f32 %v1724, 1.442695
      %v1951 = vpow.pop %v1950
      %v1952 = vmul.f32 %v1725, 1.442695
      %v1953 = vpow.pop %v1952
      %v1954 = vmul.f32 %v1726, 1.442695
      %v1955 = vpow.pop %v1954
      %v1956 = vmul.f32 %v1727, 1.442695
      %v1957 = vpow.pop %v1956
      %v1958 = vmul.f32 %v1728, 1.442695
      %v1959 = vpow.pop %v1958
      %v1960 = vmul.f32 %v1729, 1.442695
      %v1961 = vpow.pop %v1960
      %v1962 = vmul.f32 %v1730, 1.442695
      %v1963 = vpow.pop %v1962
      %v1964 = vmul.f32 %v1731, 1.442695
      %v1965 = vpow.pop %v1964
      %v1966 = vmul.f32 %v1732, 1.442695
      %v1967 = vpow.pop %v1966
      %v1968 = vmul.f32 %v1733, 1.442695
      %v1969 = vpow.pop %v1968
      %v1970 = vmul.f32 %v1734, 1.442695
      %v1971 = vpow.pop %v1970
      %v1972 = vmul.f32 %v1735, 1.442695
      %v1973 = vpow.pop %v1972
      %v1974 = vmul.f32 %v1736, 1.442695
      %v1975 = vpow.pop %v1974
      %v1976 = vmul.f32 %v1737, 1.442695
      %v1977 = vpow.pop %v1976
      %v1978 = vmul.f32 %v1738, 1.442695
      %v1979 = vpow.pop %v1978
      %v1980 = vmul.f32 %v1739, 1.442695
      %v1981 = vpow.pop %v1980
      %v1982 = vmul.f32 %v1740, 1.442695
      %v1983 = vpow.pop %v1982
      %v1984 = vmul.f32 %v1741, 1.442695
      %v1985 = vpow.pop %v1984
      %v1986 = vmul.f32 %v1742, 1.442695
      %v1987 = vpow.pop %v1986
      %v1988 = vmul.f32 %v1743, 1.442695
      %v1989 = vpow.pop %v1988
      %v1990 = vmul.f32 %v1744, 1.442695
      %v1991 = vpow.pop %v1990
      %v1992 = vmul.f32 %v1745, 1.442695
      %v1993 = vpow.pop %v1992
      %v1994 = vmul.f32 %v1746, 1.442695
      %v1995 = vpow.pop %v1994
      %v1996 = vmul.f32 %v1747, 1.442695
      %v1997 = vpow.pop %v1996
      %v1998 = vmul.f32 %v1748, 1.442695
      %v1999 = vpow.pop %v1998
      %v2000 = vmul.f32 %v1749, 1.442695
      %v2001 = vpow.pop %v2000
      %v2002 = vmul.f32 %v1750, 1.442695
      %v2003 = vpow.pop %v2002
      %v2004 = vmul.f32 %v1751, 1.442695
      %v2005 = vpow.pop %v2004
      %v2006 = vmul.f32 %v1752, 1.442695
      %v2007 = vpow.pop %v2006
      %v2008 = vmul.f32 %v1753, 1.442695
      %v2009 = vpow.pop %v2008
      %2010 = vadd.xlane.f32.xlu0 %v1755
      %v2011 = vpop.xlane.xlu0 %2010
      %2012 = vadd.xlane.f32.xlu0 %v1757
      %v2013 = vpop.xlane.xlu0 %2012
      %2014 = vadd.xlane.f32.xlu0 %v1759
      %v2015 = vpop.xlane.xlu0 %2014
      %2016 = vadd.xlane.f32.xlu0 %v1761
      %v2017 = vpop.xlane.xlu0 %2016
      %2018 = vadd.xlane.f32.xlu0 %v1763
      %v2019 = vpop.xlane.xlu0 %2018
      %2020 = vadd.xlane.f32.xlu0 %v1765
      %v2021 = vpop.xlane.xlu0 %2020
      %2022 = vadd.xlane.f32.xlu0 %v1767
      %v2023 = vpop.xlane.xlu0 %2022
      %2024 = vadd.xlane.f32.xlu0 %v1769
      %v2025 = vpop.xlane.xlu0 %2024
      %2026 = vadd.xlane.f32.xlu0 %v1771
      %v2027 = vpop.xlane.xlu0 %2026
      %2028 = vadd.xlane.f32.xlu0 %v1773
      %v2029 = vpop.xlane.xlu0 %2028
      %2030 = vadd.xlane.f32.xlu0 %v1775
      %v2031 = vpop.xlane.xlu0 %2030
      %2032 = vadd.xlane.f32.xlu0 %v1777
      %v2033 = vpop.xlane.xlu0 %2032
      %2034 = vadd.xlane.f32.xlu0 %v1779
      %v2035 = vpop.xlane.xlu0 %2034
      %2036 = vadd.xlane.f32.xlu0 %v1781
      %v2037 = vpop.xlane.xlu0 %2036
      %2038 = vadd.xlane.f32.xlu0 %v1783
      %v2039 = vpop.xlane.xlu0 %2038
      %2040 = vadd.xlane.f32.xlu0 %v1785
      %v2041 = vpop.xlane.xlu0 %2040
      %2042 = vadd.xlane.f32.xlu0 %v1787
      %v2043 = vpop.xlane.xlu0 %2042
      %2044 = vadd.xlane.f32.xlu0 %v1789
      %v2045 = vpop.xlane.xlu0 %2044
      %2046 = vadd.xlane.f32.xlu0 %v1791
      %v2047 = vpop.xlane.xlu0 %2046
      %2048 = vadd.xlane.f32.xlu0 %v1793
      %v2049 = vpop.xlane.xlu0 %2048
      %2050 = vadd.xlane.f32.xlu0 %v1795
      %v2051 = vpop.xlane.xlu0 %2050
      %2052 = vadd.xlane.f32.xlu0 %v1797
      %v2053 = vpop.xlane.xlu0 %2052
      %2054 = vadd.xlane.f32.xlu0 %v1799
      %v2055 = vpop.xlane.xlu0 %2054
      %2056 = vadd.xlane.f32.xlu0 %v1801
      %v2057 = vpop.xlane.xlu0 %2056
      %2058 = vadd.xlane.f32.xlu0 %v1803
      %v2059 = vpop.xlane.xlu0 %2058
      %2060 = vadd.xlane.f32.xlu0 %v1805
      %v2061 = vpop.xlane.xlu0 %2060
      %2062 = vadd.xlane.f32.xlu0 %v1807
      %v2063 = vpop.xlane.xlu0 %2062
      %2064 = vadd.xlane.f32.xlu0 %v1809
      %v2065 = vpop.xlane.xlu0 %2064
      %2066 = vadd.xlane.f32.xlu0 %v1811
      %v2067 = vpop.xlane.xlu0 %2066
      %2068 = vadd.xlane.f32.xlu0 %v1813
      %v2069 = vpop.xlane.xlu0 %2068
      %2070 = vadd.xlane.f32.xlu0 %v1815
      %v2071 = vpop.xlane.xlu0 %2070
      %2072 = vadd.xlane.f32.xlu0 %v1817
      %v2073 = vpop.xlane.xlu0 %2072
      %2074 = vadd.xlane.f32.xlu0 %v1819
      %v2075 = vpop.xlane.xlu0 %2074
      %2076 = vadd.xlane.f32.xlu0 %v1821
      %v2077 = vpop.xlane.xlu0 %2076
      %2078 = vadd.xlane.f32.xlu0 %v1823
      %v2079 = vpop.xlane.xlu0 %2078
      %2080 = vadd.xlane.f32.xlu0 %v1825
      %v2081 = vpop.xlane.xlu0 %2080
      %2082 = vadd.xlane.f32.xlu0 %v1827
      %v2083 = vpop.xlane.xlu0 %2082
      %2084 = vadd.xlane.f32.xlu0 %v1829
      %v2085 = vpop.xlane.xlu0 %2084
      %2086 = vadd.xlane.f32.xlu0 %v1831
      %v2087 = vpop.xlane.xlu0 %2086
      %2088 = vadd.xlane.f32.xlu0 %v1833
      %v2089 = vpop.xlane.xlu0 %2088
      %2090 = vadd.xlane.f32.xlu0 %v1835
      %v2091 = vpop.xlane.xlu0 %2090
      %2092 = vadd.xlane.f32.xlu0 %v1837
      %v2093 = vpop.xlane.xlu0 %2092
      %2094 = vadd.xlane.f32.xlu0 %v1839
      %v2095 = vpop.xlane.xlu0 %2094
      %2096 = vadd.xlane.f32.xlu0 %v1841
      %v2097 = vpop.xlane.xlu0 %2096
      %2098 = vadd.xlane.f32.xlu0 %v1843
      %v2099 = vpop.xlane.xlu0 %2098
      %2100 = vadd.xlane.f32.xlu0 %v1845
      %v2101 = vpop.xlane.xlu0 %2100
      %2102 = vadd.xlane.f32.xlu0 %v1847
      %v2103 = vpop.xlane.xlu0 %2102
      %2104 = vadd.xlane.f32.xlu0 %v1849
      %v2105 = vpop.xlane.xlu0 %2104
      %2106 = vadd.xlane.f32.xlu0 %v1851
      %v2107 = vpop.xlane.xlu0 %2106
      %2108 = vadd.xlane.f32.xlu0 %v1853
      %v2109 = vpop.xlane.xlu0 %2108
      %2110 = vadd.xlane.f32.xlu0 %v1855
      %v2111 = vpop.xlane.xlu0 %2110
      %2112 = vadd.xlane.f32.xlu0 %v1857
      %v2113 = vpop.xlane.xlu0 %2112
      %2114 = vadd.xlane.f32.xlu0 %v1859
      %v2115 = vpop.xlane.xlu0 %2114
      %2116 = vadd.xlane.f32.xlu0 %v1861
      %v2117 = vpop.xlane.xlu0 %2116
      %2118 = vadd.xlane.f32.xlu0 %v1863
      %v2119 = vpop.xlane.xlu0 %2118
      %2120 = vadd.xlane.f32.xlu0 %v1865
      %v2121 = vpop.xlane.xlu0 %2120
      %2122 = vadd.xlane.f32.xlu0 %v1867
      %v2123 = vpop.xlane.xlu0 %2122
      %2124 = vadd.xlane.f32.xlu0 %v1869
      %v2125 = vpop.xlane.xlu0 %2124
      %2126 = vadd.xlane.f32.xlu0 %v1871
      %v2127 = vpop.xlane.xlu0 %2126
      %2128 = vadd.xlane.f32.xlu0 %v1873
      %v2129 = vpop.xlane.xlu0 %2128
      %2130 = vadd.xlane.f32.xlu0 %v1875
      %v2131 = vpop.xlane.xlu0 %2130
      %2132 = vadd.xlane.f32.xlu0 %v1877
      %v2133 = vpop.xlane.xlu0 %2132
      %2134 = vadd.xlane.f32.xlu0 %v1879
      %v2135 = vpop.xlane.xlu0 %2134
      %2136 = vadd.xlane.f32.xlu0 %v1881
      %v2137 = vpop.xlane.xlu0 %2136
      %2138 = vadd.xlane.f32.xlu0 %v1883
      %v2139 = vpop.xlane.xlu0 %2138
      %2140 = vadd.xlane.f32.xlu0 %v1885
      %v2141 = vpop.xlane.xlu0 %2140
      %2142 = vadd.xlane.f32.xlu0 %v1887
      %v2143 = vpop.xlane.xlu0 %2142
      %2144 = vadd.xlane.f32.xlu0 %v1889
      %v2145 = vpop.xlane.xlu0 %2144
      %2146 = vadd.xlane.f32.xlu0 %v1891
      %v2147 = vpop.xlane.xlu0 %2146
      %2148 = vadd.xlane.f32.xlu0 %v1893
      %v2149 = vpop.xlane.xlu0 %2148
      %2150 = vadd.xlane.f32.xlu0 %v1895
      %v2151 = vpop.xlane.xlu0 %2150
      %2152 = vadd.xlane.f32.xlu0 %v1897
      %v2153 = vpop.xlane.xlu0 %2152
      %2154 = vadd.xlane.f32.xlu0 %v1899
      %v2155 = vpop.xlane.xlu0 %2154
      %2156 = vadd.xlane.f32.xlu0 %v1901
      %v2157 = vpop.xlane.xlu0 %2156
      %2158 = vadd.xlane.f32.xlu0 %v1903
      %v2159 = vpop.xlane.xlu0 %2158
      %2160 = vadd.xlane.f32.xlu0 %v1905
      %v2161 = vpop.xlane.xlu0 %2160
      %2162 = vadd.xlane.f32.xlu0 %v1907
      %v2163 = vpop.xlane.xlu0 %2162
      %2164 = vadd.xlane.f32.xlu0 %v1909
      %v2165 = vpop.xlane.xlu0 %2164
      %2166 = vadd.xlane.f32.xlu0 %v1911
      %v2167 = vpop.xlane.xlu0 %2166
      %2168 = vadd.xlane.f32.xlu0 %v1913
      %v2169 = vpop.xlane.xlu0 %2168
      %2170 = vadd.xlane.f32.xlu0 %v1915
      %v2171 = vpop.xlane.xlu0 %2170
      %2172 = vadd.xlane.f32.xlu0 %v1917
      %v2173 = vpop.xlane.xlu0 %2172
      %2174 = vadd.xlane.f32.xlu0 %v1919
      %v2175 = vpop.xlane.xlu0 %2174
      %2176 = vadd.xlane.f32.xlu0 %v1921
      %v2177 = vpop.xlane.xlu0 %2176
      %2178 = vadd.xlane.f32.xlu0 %v1923
      %v2179 = vpop.xlane.xlu0 %2178
      %2180 = vadd.xlane.f32.xlu0 %v1925
      %v2181 = vpop.xlane.xlu0 %2180
      %2182 = vadd.xlane.f32.xlu0 %v1927
      %v2183 = vpop.xlane.xlu0 %2182
      %2184 = vadd.xlane.f32.xlu0 %v1929
      %v2185 = vpop.xlane.xlu0 %2184
      %2186 = vadd.xlane.f32.xlu0 %v1931
      %v2187 = vpop.xlane.xlu0 %2186
      %2188 = vadd.xlane.f32.xlu0 %v1933
      %v2189 = vpop.xlane.xlu0 %2188
      %2190 = vadd.xlane.f32.xlu0 %v1935
      %v2191 = vpop.xlane.xlu0 %2190
      %2192 = vadd.xlane.f32.xlu0 %v1937
      %v2193 = vpop.xlane.xlu0 %2192
      %2194 = vadd.xlane.f32.xlu0 %v1939
      %v2195 = vpop.xlane.xlu0 %2194
      %2196 = vadd.xlane.f32.xlu0 %v1941
      %v2197 = vpop.xlane.xlu0 %2196
      %2198 = vadd.xlane.f32.xlu0 %v1943
      %v2199 = vpop.xlane.xlu0 %2198
      %2200 = vadd.xlane.f32.xlu0 %v1945
      %v2201 = vpop.xlane.xlu0 %2200
      %2202 = vadd.xlane.f32.xlu0 %v1947
      %v2203 = vpop.xlane.xlu0 %2202
      %2204 = vadd.xlane.f32.xlu0 %v1949
      %v2205 = vpop.xlane.xlu0 %2204
      %2206 = vadd.xlane.f32.xlu0 %v1951
      %v2207 = vpop.xlane.xlu0 %2206
      %2208 = vadd.xlane.f32.xlu0 %v1953
      %v2209 = vpop.xlane.xlu0 %2208
      %2210 = vadd.xlane.f32.xlu0 %v1955
      %v2211 = vpop.xlane.xlu0 %2210
      %2212 = vadd.xlane.f32.xlu0 %v1957
      %v2213 = vpop.xlane.xlu0 %2212
      %2214 = vadd.xlane.f32.xlu0 %v1959
      %v2215 = vpop.xlane.xlu0 %2214
      %2216 = vadd.xlane.f32.xlu0 %v1961
      %v2217 = vpop.xlane.xlu0 %2216
      %2218 = vadd.xlane.f32.xlu0 %v1963
      %v2219 = vpop.xlane.xlu0 %2218
      %2220 = vadd.xlane.f32.xlu0 %v1965
      %v2221 = vpop.xlane.xlu0 %2220
      %2222 = vadd.xlane.f32.xlu0 %v1967
      %v2223 = vpop.xlane.xlu0 %2222
      %2224 = vadd.xlane.f32.xlu0 %v1969
      %v2225 = vpop.xlane.xlu0 %2224
      %2226 = vadd.xlane.f32.xlu0 %v1971
      %v2227 = vpop.xlane.xlu0 %2226
      %2228 = vadd.xlane.f32.xlu0 %v1973
      %v2229 = vpop.xlane.xlu0 %2228
      %2230 = vadd.xlane.f32.xlu0 %v1975
      %v2231 = vpop.xlane.xlu0 %2230
      %2232 = vadd.xlane.f32.xlu0 %v1977
      %v2233 = vpop.xlane.xlu0 %2232
      %2234 = vadd.xlane.f32.xlu0 %v1979
      %v2235 = vpop.xlane.xlu0 %2234
      %2236 = vadd.xlane.f32.xlu0 %v1981
      %v2237 = vpop.xlane.xlu0 %2236
      %2238 = vadd.xlane.f32.xlu0 %v1983
      %v2239 = vpop.xlane.xlu0 %2238
      %2240 = vadd.xlane.f32.xlu0 %v1985
      %v2241 = vpop.xlane.xlu0 %2240
      %2242 = vadd.xlane.f32.xlu0 %v1987
      %v2243 = vpop.xlane.xlu0 %2242
      %2244 = vadd.xlane.f32.xlu0 %v1989
      %v2245 = vpop.xlane.xlu0 %2244
      %2246 = vadd.xlane.f32.xlu0 %v1991
      %v2247 = vpop.xlane.xlu0 %2246
      %2248 = vadd.xlane.f32.xlu0 %v1993
      %v2249 = vpop.xlane.xlu0 %2248
      %2250 = vadd.xlane.f32.xlu0 %v1995
      %v2251 = vpop.xlane.xlu0 %2250
      %2252 = vadd.xlane.f32.xlu0 %v1997
      %v2253 = vpop.xlane.xlu0 %2252
      %2254 = vadd.xlane.f32.xlu0 %v1999
      %v2255 = vpop.xlane.xlu0 %2254
      %2256 = vadd.xlane.f32.xlu0 %v2001
      %v2257 = vpop.xlane.xlu0 %2256
      %2258 = vadd.xlane.f32.xlu0 %v2003
      %v2259 = vpop.xlane.xlu0 %2258
      %2260 = vadd.xlane.f32.xlu0 %v2005
      %v2261 = vpop.xlane.xlu0 %2260
      %2262 = vadd.xlane.f32.xlu0 %v2007
      %v2263 = vpop.xlane.xlu0 %2262
      %2264 = vadd.xlane.f32.xlu0 %v2009
      %v2265 = vpop.xlane.xlu0 %2264
      %v2266 = vlaneseq
      %v2267 = vshrl.u32 %v2266, 7
      %v2268 = vsub.s32 0, %v2267
      %v2269 = vrot.slane %v128, %v2268
      %v2270 = vlaneseq
      %v2271 = vshrl.u32 %v2270, 7
      %v2272 = vsub.s32 0, %v2271
      %v2273 = vrot.slane %v142, %v2272
      %v2274 = vlaneseq
      %v2275 = vshrl.u32 %v2274, 7
      %v2276 = vsub.s32 0, %v2275
      %v2277 = vrot.slane %v150, %v2276
      %v2278 = vlaneseq
      %v2279 = vshrl.u32 %v2278, 7
      %v2280 = vsub.s32 0, %v2279
      %v2281 = vrot.slane %v152, %v2280
      %v2282 = vlaneseq
      %v2283 = vshrl.u32 %v2282, 7
      %v2284 = vsub.s32 0, %v2283
      %v2285 = vrot.slane %v135, %v2284
      %v2286 = vlaneseq
      %v2287 = vshrl.u32 %v2286, 7
      %v2288 = vsub.s32 0, %v2287
      %v2289 = vrot.slane %v149, %v2288
      %v2290 = vlaneseq
      %v2291 = vshrl.u32 %v2290, 7
      %v2292 = vsub.s32 0, %v2291
      %v2293 = vrot.slane %v151, %v2292
      %v2294 = vlaneseq
      %v2295 = vshrl.u32 %v2294, 7
      %v2296 = vsub.s32 0, %v2295
      %v2297 = vrot.slane %v153, %v2296
      %v2306 = vmul.f32 %v1755, %v2269
      %v2307 = vmul.f32 %v1757, %v2269
      %v2308 = vmul.f32 %v1759, %v2269
      %v2309 = vmul.f32 %v1761, %v2269
      %v2310 = vmul.f32 %v1763, %v2269
      %v2311 = vmul.f32 %v1765, %v2269
      %v2312 = vmul.f32 %v1767, %v2269
      %v2313 = vmul.f32 %v1769, %v2269
      %v2314 = vmul.f32 %v1771, %v2269
      %v2315 = vmul.f32 %v1773, %v2269
      %v2316 = vmul.f32 %v1775, %v2269
      %v2317 = vmul.f32 %v1777, %v2269
      %v2318 = vmul.f32 %v1779, %v2269
      %v2319 = vmul.f32 %v1781, %v2269
      %v2320 = vmul.f32 %v1783, %v2269
      %v2321 = vmul.f32 %v1785, %v2269
      %v2322 = vmul.f32 %v1787, %v2273
      %v2323 = vmul.f32 %v1789, %v2273
      %v2324 = vmul.f32 %v1791, %v2273
      %v2325 = vmul.f32 %v1793, %v2273
      %v2326 = vmul.f32 %v1795, %v2273
      %v2327 = vmul.f32 %v1797, %v2273
      %v2328 = vmul.f32 %v1799, %v2273
      %v2329 = vmul.f32 %v1801, %v2273
      %v2330 = vmul.f32 %v1803, %v2273
      %v2331 = vmul.f32 %v1805, %v2273
      %v2332 = vmul.f32 %v1807, %v2273
      %v2333 = vmul.f32 %v1809, %v2273
      %v2334 = vmul.f32 %v1811, %v2273
      %v2335 = vmul.f32 %v1813, %v2273
      %v2336 = vmul.f32 %v1815, %v2273
      %v2337 = vmul.f32 %v1817, %v2273
      %v2338 = vmul.f32 %v1819, %v2277
      %v2339 = vmul.f32 %v1821, %v2277
      %v2340 = vmul.f32 %v1823, %v2277
      %v2341 = vmul.f32 %v1825, %v2277
      %v2342 = vmul.f32 %v1827, %v2277
      %v2343 = vmul.f32 %v1829, %v2277
      %v2344 = vmul.f32 %v1831, %v2277
      %v2345 = vmul.f32 %v1833, %v2277
      %v2346 = vmul.f32 %v1835, %v2277
      %v2347 = vmul.f32 %v1837, %v2277
      %v2348 = vmul.f32 %v1839, %v2277
      %v2349 = vmul.f32 %v1841, %v2277
      %v2350 = vmul.f32 %v1843, %v2277
      %v2351 = vmul.f32 %v1845, %v2277
      %v2352 = vmul.f32 %v1847, %v2277
      %v2353 = vmul.f32 %v1849, %v2277
      %v2354 = vmul.f32 %v1851, %v2281
      %v2355 = vmul.f32 %v1853, %v2281
      %v2356 = vmul.f32 %v1855, %v2281
      %v2357 = vmul.f32 %v1857, %v2281
      %v2358 = vmul.f32 %v1859, %v2281
      %v2359 = vmul.f32 %v1861, %v2281
      %v2360 = vmul.f32 %v1863, %v2281
      %v2361 = vmul.f32 %v1865, %v2281
      %v2362 = vmul.f32 %v1867, %v2281
      %v2363 = vmul.f32 %v1869, %v2281
      %v2364 = vmul.f32 %v1871, %v2281
      %v2365 = vmul.f32 %v1873, %v2281
      %v2366 = vmul.f32 %v1875, %v2281
      %v2367 = vmul.f32 %v1877, %v2281
      %v2368 = vmul.f32 %v1879, %v2281
      %v2369 = vmul.f32 %v1881, %v2281
      %v2370 = vmul.f32 %v1883, %v2285
      %v2371 = vmul.f32 %v1885, %v2285
      %v2372 = vmul.f32 %v1887, %v2285
      %v2373 = vmul.f32 %v1889, %v2285
      %v2374 = vmul.f32 %v1891, %v2285
      %v2375 = vmul.f32 %v1893, %v2285
      %v2376 = vmul.f32 %v1895, %v2285
      %v2377 = vmul.f32 %v1897, %v2285
      %v2378 = vmul.f32 %v1899, %v2285
      %v2379 = vmul.f32 %v1901, %v2285
      %v2380 = vmul.f32 %v1903, %v2285
      %v2381 = vmul.f32 %v1905, %v2285
      %v2382 = vmul.f32 %v1907, %v2285
      %v2383 = vmul.f32 %v1909, %v2285
      %v2384 = vmul.f32 %v1911, %v2285
      %v2385 = vmul.f32 %v1913, %v2285
      %v2386 = vmul.f32 %v1915, %v2289
      %v2387 = vmul.f32 %v1917, %v2289
      %v2388 = vmul.f32 %v1919, %v2289
      %v2389 = vmul.f32 %v1921, %v2289
      %v2390 = vmul.f32 %v1923, %v2289
      %v2391 = vmul.f32 %v1925, %v2289
      %v2392 = vmul.f32 %v1927, %v2289
      %v2393 = vmul.f32 %v1929, %v2289
      %v2394 = vmul.f32 %v1931, %v2289
      %v2395 = vmul.f32 %v1933, %v2289
      %v2396 = vmul.f32 %v1935, %v2289
      %v2397 = vmul.f32 %v1937, %v2289
      %v2398 = vmul.f32 %v1939, %v2289
      %v2399 = vmul.f32 %v1941, %v2289
      %v2400 = vmul.f32 %v1943, %v2289
      %v2401 = vmul.f32 %v1945, %v2289
      %v2402 = vmul.f32 %v1947, %v2293
      %v2403 = vmul.f32 %v1949, %v2293
      %v2404 = vmul.f32 %v1951, %v2293
      %v2405 = vmul.f32 %v1953, %v2293
      %v2406 = vmul.f32 %v1955, %v2293
      %v2407 = vmul.f32 %v1957, %v2293
      %v2408 = vmul.f32 %v1959, %v2293
      %v2409 = vmul.f32 %v1961, %v2293
      %v2410 = vmul.f32 %v1963, %v2293
      %v2411 = vmul.f32 %v1965, %v2293
      %v2412 = vmul.f32 %v1967, %v2293
      %v2413 = vmul.f32 %v1969, %v2293
      %v2414 = vmul.f32 %v1971, %v2293
      %v2415 = vmul.f32 %v1973, %v2293
      %v2416 = vmul.f32 %v1975, %v2293
      %v2417 = vmul.f32 %v1977, %v2293
      %v2418 = vmul.f32 %v1979, %v2297
      %v2419 = vmul.f32 %v1981, %v2297
      %v2420 = vmul.f32 %v1983, %v2297
      %v2421 = vmul.f32 %v1985, %v2297
      %v2422 = vmul.f32 %v1987, %v2297
      %v2423 = vmul.f32 %v1989, %v2297
      %v2424 = vmul.f32 %v1991, %v2297
      %v2425 = vmul.f32 %v1993, %v2297
      %v2426 = vmul.f32 %v1995, %v2297
      %v2427 = vmul.f32 %v1997, %v2297
      %v2428 = vmul.f32 %v1999, %v2297
      %v2429 = vmul.f32 %v2001, %v2297
      %v2430 = vmul.f32 %v2003, %v2297
      %v2431 = vmul.f32 %v2005, %v2297
      %v2432 = vmul.f32 %v2007, %v2297
      %v2433 = vmul.f32 %v2009, %v2297
      %2434 = vadd.xlane.f32.xlu0 %v2306
      %v2435 = vpop.xlane.xlu0 %2434
      %2436 = vadd.xlane.f32.xlu0 %v2307
      %v2437 = vpop.xlane.xlu0 %2436
      %2438 = vadd.xlane.f32.xlu0 %v2308
      %v2439 = vpop.xlane.xlu0 %2438
      %2440 = vadd.xlane.f32.xlu0 %v2309
      %v2441 = vpop.xlane.xlu0 %2440
      %2442 = vadd.xlane.f32.xlu0 %v2310
      %v2443 = vpop.xlane.xlu0 %2442
      %2444 = vadd.xlane.f32.xlu0 %v2311
      %v2445 = vpop.xlane.xlu0 %2444
      %2446 = vadd.xlane.f32.xlu0 %v2312
      %v2447 = vpop.xlane.xlu0 %2446
      %2448 = vadd.xlane.f32.xlu0 %v2313
      %v2449 = vpop.xlane.xlu0 %2448
      %2450 = vadd.xlane.f32.xlu0 %v2314
      %v2451 = vpop.xlane.xlu0 %2450
      %2452 = vadd.xlane.f32.xlu0 %v2315
      %v2453 = vpop.xlane.xlu0 %2452
      %2454 = vadd.xlane.f32.xlu0 %v2316
      %v2455 = vpop.xlane.xlu0 %2454
      %2456 = vadd.xlane.f32.xlu0 %v2317
      %v2457 = vpop.xlane.xlu0 %2456
      %2458 = vadd.xlane.f32.xlu0 %v2318
      %v2459 = vpop.xlane.xlu0 %2458
      %2460 = vadd.xlane.f32.xlu0 %v2319
      %v2461 = vpop.xlane.xlu0 %2460
      %2462 = vadd.xlane.f32.xlu0 %v2320
      %v2463 = vpop.xlane.xlu0 %2462
      %2464 = vadd.xlane.f32.xlu0 %v2321
      %v2465 = vpop.xlane.xlu0 %2464
      %2466 = vadd.xlane.f32.xlu0 %v2322
      %v2467 = vpop.xlane.xlu0 %2466
      %2468 = vadd.xlane.f32.xlu0 %v2323
      %v2469 = vpop.xlane.xlu0 %2468
      %2470 = vadd.xlane.f32.xlu0 %v2324
      %v2471 = vpop.xlane.xlu0 %2470
      %2472 = vadd.xlane.f32.xlu0 %v2325
      %v2473 = vpop.xlane.xlu0 %2472
      %2474 = vadd.xlane.f32.xlu0 %v2326
      %v2475 = vpop.xlane.xlu0 %2474
      %2476 = vadd.xlane.f32.xlu0 %v2327
      %v2477 = vpop.xlane.xlu0 %2476
      %2478 = vadd.xlane.f32.xlu0 %v2328
      %v2479 = vpop.xlane.xlu0 %2478
      %2480 = vadd.xlane.f32.xlu0 %v2329
      %v2481 = vpop.xlane.xlu0 %2480
      %2482 = vadd.xlane.f32.xlu0 %v2330
      %v2483 = vpop.xlane.xlu0 %2482
      %2484 = vadd.xlane.f32.xlu0 %v2331
      %v2485 = vpop.xlane.xlu0 %2484
      %2486 = vadd.xlane.f32.xlu0 %v2332
      %v2487 = vpop.xlane.xlu0 %2486
      %2488 = vadd.xlane.f32.xlu0 %v2333
      %v2489 = vpop.xlane.xlu0 %2488
      %2490 = vadd.xlane.f32.xlu0 %v2334
      %v2491 = vpop.xlane.xlu0 %2490
      %2492 = vadd.xlane.f32.xlu0 %v2335
      %v2493 = vpop.xlane.xlu0 %2492
      %2494 = vadd.xlane.f32.xlu0 %v2336
      %v2495 = vpop.xlane.xlu0 %2494
      %2496 = vadd.xlane.f32.xlu0 %v2337
      %v2497 = vpop.xlane.xlu0 %2496
      %2498 = vadd.xlane.f32.xlu0 %v2338
      %v2499 = vpop.xlane.xlu0 %2498
      %2500 = vadd.xlane.f32.xlu0 %v2339
      %v2501 = vpop.xlane.xlu0 %2500
      %2502 = vadd.xlane.f32.xlu0 %v2340
      %v2503 = vpop.xlane.xlu0 %2502
      %2504 = vadd.xlane.f32.xlu0 %v2341
      %v2505 = vpop.xlane.xlu0 %2504
      %2506 = vadd.xlane.f32.xlu0 %v2342
      %v2507 = vpop.xlane.xlu0 %2506
      %2508 = vadd.xlane.f32.xlu0 %v2343
      %v2509 = vpop.xlane.xlu0 %2508
      %2510 = vadd.xlane.f32.xlu0 %v2344
      %v2511 = vpop.xlane.xlu0 %2510
      %2512 = vadd.xlane.f32.xlu0 %v2345
      %v2513 = vpop.xlane.xlu0 %2512
      %2514 = vadd.xlane.f32.xlu0 %v2346
      %v2515 = vpop.xlane.xlu0 %2514
      %2516 = vadd.xlane.f32.xlu0 %v2347
      %v2517 = vpop.xlane.xlu0 %2516
      %2518 = vadd.xlane.f32.xlu0 %v2348
      %v2519 = vpop.xlane.xlu0 %2518
      %2520 = vadd.xlane.f32.xlu0 %v2349
      %v2521 = vpop.xlane.xlu0 %2520
      %2522 = vadd.xlane.f32.xlu0 %v2350
      %v2523 = vpop.xlane.xlu0 %2522
      %2524 = vadd.xlane.f32.xlu0 %v2351
      %v2525 = vpop.xlane.xlu0 %2524
      %2526 = vadd.xlane.f32.xlu0 %v2352
      %v2527 = vpop.xlane.xlu0 %2526
      %2528 = vadd.xlane.f32.xlu0 %v2353
      %v2529 = vpop.xlane.xlu0 %2528
      %2530 = vadd.xlane.f32.xlu0 %v2354
      %v2531 = vpop.xlane.xlu0 %2530
      %2532 = vadd.xlane.f32.xlu0 %v2355
      %v2533 = vpop.xlane.xlu0 %2532
      %2534 = vadd.xlane.f32.xlu0 %v2356
      %v2535 = vpop.xlane.xlu0 %2534
      %2536 = vadd.xlane.f32.xlu0 %v2357
      %v2537 = vpop.xlane.xlu0 %2536
      %2538 = vadd.xlane.f32.xlu0 %v2358
      %v2539 = vpop.xlane.xlu0 %2538
      %2540 = vadd.xlane.f32.xlu0 %v2359
      %v2541 = vpop.xlane.xlu0 %2540
      %2542 = vadd.xlane.f32.xlu0 %v2360
      %v2543 = vpop.xlane.xlu0 %2542
      %2544 = vadd.xlane.f32.xlu0 %v2361
      %v2545 = vpop.xlane.xlu0 %2544
      %2546 = vadd.xlane.f32.xlu0 %v2362
      %v2547 = vpop.xlane.xlu0 %2546
      %2548 = vadd.xlane.f32.xlu0 %v2363
      %v2549 = vpop.xlane.xlu0 %2548
      %2550 = vadd.xlane.f32.xlu0 %v2364
      %v2551 = vpop.xlane.xlu0 %2550
      %2552 = vadd.xlane.f32.xlu0 %v2365
      %v2553 = vpop.xlane.xlu0 %2552
      %2554 = vadd.xlane.f32.xlu0 %v2366
      %v2555 = vpop.xlane.xlu0 %2554
      %2556 = vadd.xlane.f32.xlu0 %v2367
      %v2557 = vpop.xlane.xlu0 %2556
      %2558 = vadd.xlane.f32.xlu0 %v2368
      %v2559 = vpop.xlane.xlu0 %2558
      %2560 = vadd.xlane.f32.xlu0 %v2369
      %v2561 = vpop.xlane.xlu0 %2560
      %2562 = vadd.xlane.f32.xlu0 %v2370
      %v2563 = vpop.xlane.xlu0 %2562
      %2564 = vadd.xlane.f32.xlu0 %v2371
      %v2565 = vpop.xlane.xlu0 %2564
      %2566 = vadd.xlane.f32.xlu0 %v2372
      %v2567 = vpop.xlane.xlu0 %2566
      %2568 = vadd.xlane.f32.xlu0 %v2373
      %v2569 = vpop.xlane.xlu0 %2568
      %2570 = vadd.xlane.f32.xlu0 %v2374
      %v2571 = vpop.xlane.xlu0 %2570
      %2572 = vadd.xlane.f32.xlu0 %v2375
      %v2573 = vpop.xlane.xlu0 %2572
      %2574 = vadd.xlane.f32.xlu0 %v2376
      %v2575 = vpop.xlane.xlu0 %2574
      %2576 = vadd.xlane.f32.xlu0 %v2377
      %v2577 = vpop.xlane.xlu0 %2576
      %2578 = vadd.xlane.f32.xlu0 %v2378
      %v2579 = vpop.xlane.xlu0 %2578
      %2580 = vadd.xlane.f32.xlu0 %v2379
      %v2581 = vpop.xlane.xlu0 %2580
      %2582 = vadd.xlane.f32.xlu0 %v2380
      %v2583 = vpop.xlane.xlu0 %2582
      %2584 = vadd.xlane.f32.xlu0 %v2381
      %v2585 = vpop.xlane.xlu0 %2584
      %2586 = vadd.xlane.f32.xlu0 %v2382
      %v2587 = vpop.xlane.xlu0 %2586
      %2588 = vadd.xlane.f32.xlu0 %v2383
      %v2589 = vpop.xlane.xlu0 %2588
      %2590 = vadd.xlane.f32.xlu0 %v2384
      %v2591 = vpop.xlane.xlu0 %2590
      %2592 = vadd.xlane.f32.xlu0 %v2385
      %v2593 = vpop.xlane.xlu0 %2592
      %2594 = vadd.xlane.f32.xlu0 %v2386
      %v2595 = vpop.xlane.xlu0 %2594
      %2596 = vadd.xlane.f32.xlu0 %v2387
      %v2597 = vpop.xlane.xlu0 %2596
      %2598 = vadd.xlane.f32.xlu0 %v2388
      %v2599 = vpop.xlane.xlu0 %2598
      %2600 = vadd.xlane.f32.xlu0 %v2389
      %v2601 = vpop.xlane.xlu0 %2600
      %2602 = vadd.xlane.f32.xlu0 %v2390
      %v2603 = vpop.xlane.xlu0 %2602
      %2604 = vadd.xlane.f32.xlu0 %v2391
      %v2605 = vpop.xlane.xlu0 %2604
      %2606 = vadd.xlane.f32.xlu0 %v2392
      %v2607 = vpop.xlane.xlu0 %2606
      %2608 = vadd.xlane.f32.xlu0 %v2393
      %v2609 = vpop.xlane.xlu0 %2608
      %2610 = vadd.xlane.f32.xlu0 %v2394
      %v2611 = vpop.xlane.xlu0 %2610
      %2612 = vadd.xlane.f32.xlu0 %v2395
      %v2613 = vpop.xlane.xlu0 %2612
      %2614 = vadd.xlane.f32.xlu0 %v2396
      %v2615 = vpop.xlane.xlu0 %2614
      %2616 = vadd.xlane.f32.xlu0 %v2397
      %v2617 = vpop.xlane.xlu0 %2616
      %2618 = vadd.xlane.f32.xlu0 %v2398
      %v2619 = vpop.xlane.xlu0 %2618
      %2620 = vadd.xlane.f32.xlu0 %v2399
      %v2621 = vpop.xlane.xlu0 %2620
      %2622 = vadd.xlane.f32.xlu0 %v2400
      %v2623 = vpop.xlane.xlu0 %2622
      %2624 = vadd.xlane.f32.xlu0 %v2401
      %v2625 = vpop.xlane.xlu0 %2624
      %2626 = vadd.xlane.f32.xlu0 %v2402
      %v2627 = vpop.xlane.xlu0 %2626
      %2628 = vadd.xlane.f32.xlu0 %v2403
      %v2629 = vpop.xlane.xlu0 %2628
      %2630 = vadd.xlane.f32.xlu0 %v2404
      %v2631 = vpop.xlane.xlu0 %2630
      %2632 = vadd.xlane.f32.xlu0 %v2405
      %v2633 = vpop.xlane.xlu0 %2632
      %2634 = vadd.xlane.f32.xlu0 %v2406
      %v2635 = vpop.xlane.xlu0 %2634
      %2636 = vadd.xlane.f32.xlu0 %v2407
      %v2637 = vpop.xlane.xlu0 %2636
      %2638 = vadd.xlane.f32.xlu0 %v2408
      %v2639 = vpop.xlane.xlu0 %2638
      %2640 = vadd.xlane.f32.xlu0 %v2409
      %v2641 = vpop.xlane.xlu0 %2640
      %2642 = vadd.xlane.f32.xlu0 %v2410
      %v2643 = vpop.xlane.xlu0 %2642
      %2644 = vadd.xlane.f32.xlu0 %v2411
      %v2645 = vpop.xlane.xlu0 %2644
      %2646 = vadd.xlane.f32.xlu0 %v2412
      %v2647 = vpop.xlane.xlu0 %2646
      %2648 = vadd.xlane.f32.xlu0 %v2413
      %v2649 = vpop.xlane.xlu0 %2648
      %2650 = vadd.xlane.f32.xlu0 %v2414
      %v2651 = vpop.xlane.xlu0 %2650
      %2652 = vadd.xlane.f32.xlu0 %v2415
      %v2653 = vpop.xlane.xlu0 %2652
      %2654 = vadd.xlane.f32.xlu0 %v2416
      %v2655 = vpop.xlane.xlu0 %2654
      %2656 = vadd.xlane.f32.xlu0 %v2417
      %v2657 = vpop.xlane.xlu0 %2656
      %2658 = vadd.xlane.f32.xlu0 %v2418
      %v2659 = vpop.xlane.xlu0 %2658
      %2660 = vadd.xlane.f32.xlu0 %v2419
      %v2661 = vpop.xlane.xlu0 %2660
      %2662 = vadd.xlane.f32.xlu0 %v2420
      %v2663 = vpop.xlane.xlu0 %2662
      %2664 = vadd.xlane.f32.xlu0 %v2421
      %v2665 = vpop.xlane.xlu0 %2664
      %2666 = vadd.xlane.f32.xlu0 %v2422
      %v2667 = vpop.xlane.xlu0 %2666
      %2668 = vadd.xlane.f32.xlu0 %v2423
      %v2669 = vpop.xlane.xlu0 %2668
      %2670 = vadd.xlane.f32.xlu0 %v2424
      %v2671 = vpop.xlane.xlu0 %2670
      %2672 = vadd.xlane.f32.xlu0 %v2425
      %v2673 = vpop.xlane.xlu0 %2672
      %2674 = vadd.xlane.f32.xlu0 %v2426
      %v2675 = vpop.xlane.xlu0 %2674
      %2676 = vadd.xlane.f32.xlu0 %v2427
      %v2677 = vpop.xlane.xlu0 %2676
      %2678 = vadd.xlane.f32.xlu0 %v2428
      %v2679 = vpop.xlane.xlu0 %2678
      %2680 = vadd.xlane.f32.xlu0 %v2429
      %v2681 = vpop.xlane.xlu0 %2680
      %2682 = vadd.xlane.f32.xlu0 %v2430
      %v2683 = vpop.xlane.xlu0 %2682
      %2684 = vadd.xlane.f32.xlu0 %v2431
      %v2685 = vpop.xlane.xlu0 %2684
      %2686 = vadd.xlane.f32.xlu0 %v2432
      %v2687 = vpop.xlane.xlu0 %2686
      %2688 = vadd.xlane.f32.xlu0 %v2433
      %v2689 = vpop.xlane.xlu0 %2688
      %v2690 = vrcp.pop %v2011
      %v2691 = vmul.f32 %v2435, %v2690
      %v2692 = vrcp.pop %v2013
      %v2693 = vmul.f32 %v2437, %v2692
      %v2694 = vrcp.pop %v2015
      %v2695 = vmul.f32 %v2439, %v2694
      %v2696 = vrcp.pop %v2017
      %v2697 = vmul.f32 %v2441, %v2696
      %v2698 = vrcp.pop %v2019
      %v2699 = vmul.f32 %v2443, %v2698
      %v2700 = vrcp.pop %v2021
      %v2701 = vmul.f32 %v2445, %v2700
      %v2702 = vrcp.pop %v2023
      %v2703 = vmul.f32 %v2447, %v2702
      %v2704 = vrcp.pop %v2025
      %v2705 = vmul.f32 %v2449, %v2704
      %v2706 = vrcp.pop %v2027
      %v2707 = vmul.f32 %v2451, %v2706
      %v2708 = vrcp.pop %v2029
      %v2709 = vmul.f32 %v2453, %v2708
      %v2710 = vrcp.pop %v2031
      %v2711 = vmul.f32 %v2455, %v2710
      %v2712 = vrcp.pop %v2033
      %v2713 = vmul.f32 %v2457, %v2712
      %v2714 = vrcp.pop %v2035
      %v2715 = vmul.f32 %v2459, %v2714
      %v2716 = vrcp.pop %v2037
      %v2717 = vmul.f32 %v2461, %v2716
      %v2718 = vrcp.pop %v2039
      %v2719 = vmul.f32 %v2463, %v2718
      %v2720 = vrcp.pop %v2041
      %v2721 = vmul.f32 %v2465, %v2720
      %v2722 = vrcp.pop %v2043
      %v2723 = vmul.f32 %v2467, %v2722
      %v2724 = vrcp.pop %v2045
      %v2725 = vmul.f32 %v2469, %v2724
      %v2726 = vrcp.pop %v2047
      %v2727 = vmul.f32 %v2471, %v2726
      %v2728 = vrcp.pop %v2049
      %v2729 = vmul.f32 %v2473, %v2728
      %v2730 = vrcp.pop %v2051
      %v2731 = vmul.f32 %v2475, %v2730
      %v2732 = vrcp.pop %v2053
      %v2733 = vmul.f32 %v2477, %v2732
      %v2734 = vrcp.pop %v2055
      %v2735 = vmul.f32 %v2479, %v2734
      %v2736 = vrcp.pop %v2057
      %v2737 = vmul.f32 %v2481, %v2736
      %v2738 = vrcp.pop %v2059
      %v2739 = vmul.f32 %v2483, %v2738
      %v2740 = vrcp.pop %v2061
      %v2741 = vmul.f32 %v2485, %v2740
      %v2742 = vrcp.pop %v2063
      %v2743 = vmul.f32 %v2487, %v2742
      %v2744 = vrcp.pop %v2065
      %v2745 = vmul.f32 %v2489, %v2744
      %v2746 = vrcp.pop %v2067
      %v2747 = vmul.f32 %v2491, %v2746
      %v2748 = vrcp.pop %v2069
      %v2749 = vmul.f32 %v2493, %v2748
      %v2750 = vrcp.pop %v2071
      %v2751 = vmul.f32 %v2495, %v2750
      %v2752 = vrcp.pop %v2073
      %v2753 = vmul.f32 %v2497, %v2752
      %v2754 = vrcp.pop %v2075
      %v2755 = vmul.f32 %v2499, %v2754
      %v2756 = vrcp.pop %v2077
      %v2757 = vmul.f32 %v2501, %v2756
      %v2758 = vrcp.pop %v2079
      %v2759 = vmul.f32 %v2503, %v2758
      %v2760 = vrcp.pop %v2081
      %v2761 = vmul.f32 %v2505, %v2760
      %v2762 = vrcp.pop %v2083
      %v2763 = vmul.f32 %v2507, %v2762
      %v2764 = vrcp.pop %v2085
      %v2765 = vmul.f32 %v2509, %v2764
      %v2766 = vrcp.pop %v2087
      %v2767 = vmul.f32 %v2511, %v2766
      %v2768 = vrcp.pop %v2089
      %v2769 = vmul.f32 %v2513, %v2768
      %v2770 = vrcp.pop %v2091
      %v2771 = vmul.f32 %v2515, %v2770
      %v2772 = vrcp.pop %v2093
      %v2773 = vmul.f32 %v2517, %v2772
      %v2774 = vrcp.pop %v2095
      %v2775 = vmul.f32 %v2519, %v2774
      %v2776 = vrcp.pop %v2097
      %v2777 = vmul.f32 %v2521, %v2776
      %v2778 = vrcp.pop %v2099
      %v2779 = vmul.f32 %v2523, %v2778
      %v2780 = vrcp.pop %v2101
      %v2781 = vmul.f32 %v2525, %v2780
      %v2782 = vrcp.pop %v2103
      %v2783 = vmul.f32 %v2527, %v2782
      %v2784 = vrcp.pop %v2105
      %v2785 = vmul.f32 %v2529, %v2784
      %v2786 = vrcp.pop %v2107
      %v2787 = vmul.f32 %v2531, %v2786
      %v2788 = vrcp.pop %v2109
      %v2789 = vmul.f32 %v2533, %v2788
      %v2790 = vrcp.pop %v2111
      %v2791 = vmul.f32 %v2535, %v2790
      %v2792 = vrcp.pop %v2113
      %v2793 = vmul.f32 %v2537, %v2792
      %v2794 = vrcp.pop %v2115
      %v2795 = vmul.f32 %v2539, %v2794
      %v2796 = vrcp.pop %v2117
      %v2797 = vmul.f32 %v2541, %v2796
      %v2798 = vrcp.pop %v2119
      %v2799 = vmul.f32 %v2543, %v2798
      %v2800 = vrcp.pop %v2121
      %v2801 = vmul.f32 %v2545, %v2800
      %v2802 = vrcp.pop %v2123
      %v2803 = vmul.f32 %v2547, %v2802
      %v2804 = vrcp.pop %v2125
      %v2805 = vmul.f32 %v2549, %v2804
      %v2806 = vrcp.pop %v2127
      %v2807 = vmul.f32 %v2551, %v2806
      %v2808 = vrcp.pop %v2129
      %v2809 = vmul.f32 %v2553, %v2808
      %v2810 = vrcp.pop %v2131
      %v2811 = vmul.f32 %v2555, %v2810
      %v2812 = vrcp.pop %v2133
      %v2813 = vmul.f32 %v2557, %v2812
      %v2814 = vrcp.pop %v2135
      %v2815 = vmul.f32 %v2559, %v2814
      %v2816 = vrcp.pop %v2137
      %v2817 = vmul.f32 %v2561, %v2816
      %v2818 = vrcp.pop %v2139
      %v2819 = vmul.f32 %v2563, %v2818
      %v2820 = vrcp.pop %v2141
      %v2821 = vmul.f32 %v2565, %v2820
      %v2822 = vrcp.pop %v2143
      %v2823 = vmul.f32 %v2567, %v2822
      %v2824 = vrcp.pop %v2145
      %v2825 = vmul.f32 %v2569, %v2824
      %v2826 = vrcp.pop %v2147
      %v2827 = vmul.f32 %v2571, %v2826
      %v2828 = vrcp.pop %v2149
      %v2829 = vmul.f32 %v2573, %v2828
      %v2830 = vrcp.pop %v2151
      %v2831 = vmul.f32 %v2575, %v2830
      %v2832 = vrcp.pop %v2153
      %v2833 = vmul.f32 %v2577, %v2832
      %v2834 = vrcp.pop %v2155
      %v2835 = vmul.f32 %v2579, %v2834
      %v2836 = vrcp.pop %v2157
      %v2837 = vmul.f32 %v2581, %v2836
      %v2838 = vrcp.pop %v2159
      %v2839 = vmul.f32 %v2583, %v2838
      %v2840 = vrcp.pop %v2161
      %v2841 = vmul.f32 %v2585, %v2840
      %v2842 = vrcp.pop %v2163
      %v2843 = vmul.f32 %v2587, %v2842
      %v2844 = vrcp.pop %v2165
      %v2845 = vmul.f32 %v2589, %v2844
      %v2846 = vrcp.pop %v2167
      %v2847 = vmul.f32 %v2591, %v2846
      %v2848 = vrcp.pop %v2169
      %v2849 = vmul.f32 %v2593, %v2848
      %v2850 = vrcp.pop %v2171
      %v2851 = vmul.f32 %v2595, %v2850
      %v2852 = vrcp.pop %v2173
      %v2853 = vmul.f32 %v2597, %v2852
      %v2854 = vrcp.pop %v2175
      %v2855 = vmul.f32 %v2599, %v2854
      %v2856 = vrcp.pop %v2177
      %v2857 = vmul.f32 %v2601, %v2856
      %v2858 = vrcp.pop %v2179
      %v2859 = vmul.f32 %v2603, %v2858
      %v2860 = vrcp.pop %v2181
      %v2861 = vmul.f32 %v2605, %v2860
      %v2862 = vrcp.pop %v2183
      %v2863 = vmul.f32 %v2607, %v2862
      %v2864 = vrcp.pop %v2185
      %v2865 = vmul.f32 %v2609, %v2864
      %v2866 = vrcp.pop %v2187
      %v2867 = vmul.f32 %v2611, %v2866
      %v2868 = vrcp.pop %v2189
      %v2869 = vmul.f32 %v2613, %v2868
      %v2870 = vrcp.pop %v2191
      %v2871 = vmul.f32 %v2615, %v2870
      %v2872 = vrcp.pop %v2193
      %v2873 = vmul.f32 %v2617, %v2872
      %v2874 = vrcp.pop %v2195
      %v2875 = vmul.f32 %v2619, %v2874
      %v2876 = vrcp.pop %v2197
      %v2877 = vmul.f32 %v2621, %v2876
      %v2878 = vrcp.pop %v2199
      %v2879 = vmul.f32 %v2623, %v2878
      %v2880 = vrcp.pop %v2201
      %v2881 = vmul.f32 %v2625, %v2880
      %v2882 = vrcp.pop %v2203
      %v2883 = vmul.f32 %v2627, %v2882
      %v2884 = vrcp.pop %v2205
      %v2885 = vmul.f32 %v2629, %v2884
      %v2886 = vrcp.pop %v2207
      %v2887 = vmul.f32 %v2631, %v2886
      %v2888 = vrcp.pop %v2209
      %v2889 = vmul.f32 %v2633, %v2888
      %v2890 = vrcp.pop %v2211
      %v2891 = vmul.f32 %v2635, %v2890
      %v2892 = vrcp.pop %v2213
      %v2893 = vmul.f32 %v2637, %v2892
      %v2894 = vrcp.pop %v2215
      %v2895 = vmul.f32 %v2639, %v2894
      %v2896 = vrcp.pop %v2217
      %v2897 = vmul.f32 %v2641, %v2896
      %v2898 = vrcp.pop %v2219
      %v2899 = vmul.f32 %v2643, %v2898
      %v2900 = vrcp.pop %v2221
      %v2901 = vmul.f32 %v2645, %v2900
      %v2902 = vrcp.pop %v2223
      %v2903 = vmul.f32 %v2647, %v2902
      %v2904 = vrcp.pop %v2225
      %v2905 = vmul.f32 %v2649, %v2904
      %v2906 = vrcp.pop %v2227
      %v2907 = vmul.f32 %v2651, %v2906
      %v2908 = vrcp.pop %v2229
      %v2909 = vmul.f32 %v2653, %v2908
      %v2910 = vrcp.pop %v2231
      %v2911 = vmul.f32 %v2655, %v2910
      %v2912 = vrcp.pop %v2233
      %v2913 = vmul.f32 %v2657, %v2912
      %v2914 = vrcp.pop %v2235
      %v2915 = vmul.f32 %v2659, %v2914
      %v2916 = vrcp.pop %v2237
      %v2917 = vmul.f32 %v2661, %v2916
      %v2918 = vrcp.pop %v2239
      %v2919 = vmul.f32 %v2663, %v2918
      %v2920 = vrcp.pop %v2241
      %v2921 = vmul.f32 %v2665, %v2920
      %v2922 = vrcp.pop %v2243
      %v2923 = vmul.f32 %v2667, %v2922
      %v2924 = vrcp.pop %v2245
      %v2925 = vmul.f32 %v2669, %v2924
      %v2926 = vrcp.pop %v2247
      %v2927 = vmul.f32 %v2671, %v2926
      %v2928 = vrcp.pop %v2249
      %v2929 = vmul.f32 %v2673, %v2928
      %v2930 = vrcp.pop %v2251
      %v2931 = vmul.f32 %v2675, %v2930
      %v2932 = vrcp.pop %v2253
      %v2933 = vmul.f32 %v2677, %v2932
      %v2934 = vrcp.pop %v2255
      %v2935 = vmul.f32 %v2679, %v2934
      %v2936 = vrcp.pop %v2257
      %v2937 = vmul.f32 %v2681, %v2936
      %v2938 = vrcp.pop %v2259
      %v2939 = vmul.f32 %v2683, %v2938
      %v2940 = vrcp.pop %v2261
      %v2941 = vmul.f32 %v2685, %v2940
      %v2942 = vrcp.pop %v2263
      %v2943 = vmul.f32 %v2687, %v2942
      %v2944 = vrcp.pop %v2265
      %v2945 = vmul.f32 %v2689, %v2944
      %v2946 = vld [vmem:[#allocation2] sm:$0xff]
      %v3075 = vlaneseq
      %v3076 = vand.u32 %v3075, 127
      %v3077 = vlaneseq
      %v3078 = vshrl.u32 %v3077, 7
      %v3079 = vsub.s32 %v3076, %v3078
      %v3080 = vrot.slane %v2691, %v3079
      %v3081 = vadd.s32 %v3076, 4294967288
      %v3082 = vlaneseq
      %v3083 = vshrl.u32 %v3082, 7
      %v3084 = vsub.s32 %v3081, %v3083
      %v3085 = vrot.slane %v2693, %v3084
      %vm3086 = vcmask 130112
      %v3087 = vsel %vm3086, %v3085, %v3080
      %v3088 = vadd.s32 %v3076, 4294967280
      %v3089 = vlaneseq
      %v3090 = vshrl.u32 %v3089, 7
      %v3091 = vsub.s32 %v3088, %v3090
      %v3092 = vrot.slane %v2695, %v3091
      %vm3093 = vcmask 195712
      %v3094 = vsel %vm3093, %v3092, %v3087
      %v3095 = vadd.s32 %v3076, 4294967272
      %v3096 = vlaneseq
      %v3097 = vshrl.u32 %v3096, 7
      %v3098 = vsub.s32 %v3095, %v3097
      %v3099 = vrot.slane %v2697, %v3098
      %vm3100 = vcmask 261312
      %v3101 = vsel %vm3100, %v3099, %v3094
      %v3102 = vadd.s32 %v3076, 4294967264
      %v3103 = vlaneseq
      %v3104 = vshrl.u32 %v3103, 7
      %v3105 = vsub.s32 %v3102, %v3104
      %v3106 = vrot.slane %v2699, %v3105
      %vm3107 = vcmask 326912
      %v3108 = vsel %vm3107, %v3106, %v3101
      %v3109 = vadd.s32 %v3076, 4294967256
      %v3110 = vlaneseq
      %v3111 = vshrl.u32 %v3110, 7
      %v3112 = vsub.s32 %v3109, %v3111
      %v3113 = vrot.slane %v2701, %v3112
      %vm3114 = vcmask 392512
      %v3115 = vsel %vm3114, %v3113, %v3108
      %v3116 = vadd.s32 %v3076, 4294967248
      %v3117 = vlaneseq
      %v3118 = vshrl.u32 %v3117, 7
      %v3119 = vsub.s32 %v3116, %v3118
      %v3120 = vrot.slane %v2703, %v3119
      %vm3121 = vcmask 458112
      %v3122 = vsel %vm3121, %v3120, %v3115
      %v3123 = vadd.s32 %v3076, 4294967240
      %v3124 = vlaneseq
      %v3125 = vshrl.u32 %v3124, 7
      %v3126 = vsub.s32 %v3123, %v3125
      %v3127 = vrot.slane %v2705, %v3126
      %vm3128 = vcmask 523712
      %v3129 = vsel %vm3128, %v3127, %v3122
      %v3130 = vadd.s32 %v3076, 4294967232
      %v3131 = vlaneseq
      %v3132 = vshrl.u32 %v3131, 7
      %v3133 = vsub.s32 %v3130, %v3132
      %v3134 = vrot.slane %v2707, %v3133
      %vm3135 = vcmask 589312
      %v3136 = vsel %vm3135, %v3134, %v3129
      %v3137 = vadd.s32 %v3076, 4294967224
      %v3138 = vlaneseq
      %v3139 = vshrl.u32 %v3138, 7
      %v3140 = vsub.s32 %v3137, %v3139
      %v3141 = vrot.slane %v2709, %v3140
      %vm3142 = vcmask 654912
      %v3143 = vsel %vm3142, %v3141, %v3136
      %v3144 = vadd.s32 %v3076, 4294967216
      %v3145 = vlaneseq
      %v3146 = vshrl.u32 %v3145, 7
      %v3147 = vsub.s32 %v3144, %v3146
      %v3148 = vrot.slane %v2711, %v3147
      %vm3149 = vcmask 720512
      %v3150 = vsel %vm3149, %v3148, %v3143
      %v3151 = vadd.s32 %v3076, 4294967208
      %v3152 = vlaneseq
      %v3153 = vshrl.u32 %v3152, 7
      %v3154 = vsub.s32 %v3151, %v3153
      %v3155 = vrot.slane %v2713, %v3154
      %vm3156 = vcmask 786112
      %v3157 = vsel %vm3156, %v3155, %v3150
      %v3158 = vadd.s32 %v3076, 4294967200
      %v3159 = vlaneseq
      %v3160 = vshrl.u32 %v3159, 7
      %v3161 = vsub.s32 %v3158, %v3160
      %v3162 = vrot.slane %v2715, %v3161
      %vm3163 = vcmask 851712
      %v3164 = vsel %vm3163, %v3162, %v3157
      %v3165 = vadd.s32 %v3076, 4294967192
      %v3166 = vlaneseq
      %v3167 = vshrl.u32 %v3166, 7
      %v3168 = vsub.s32 %v3165, %v3167
      %v3169 = vrot.slane %v2717, %v3168
      %vm3170 = vcmask 917312
      %v3171 = vsel %vm3170, %v3169, %v3164
      %v3172 = vadd.s32 %v3076, 4294967184
      %v3173 = vlaneseq
      %v3174 = vshrl.u32 %v3173, 7
      %v3175 = vsub.s32 %v3172, %v3174
      %v3176 = vrot.slane %v2719, %v3175
      %vm3177 = vcmask 982912
      %v3178 = vsel %vm3177, %v3176, %v3171
      %v3179 = vadd.s32 %v3076, 4294967176
      %v3180 = vlaneseq
      %v3181 = vshrl.u32 %v3180, 7
      %v3182 = vsub.s32 %v3179, %v3181
      %v3183 = vrot.slane %v2721, %v3182
      %vm3184 = vcmask 1048512
      %v3185 = vsel %vm3184, %v3183, %v3178
      %v3186 = vlaneseq
      %v3187 = vshrl.u32 %v3186, 7
      %v3188 = vsub.s32 %v3076, %v3187
      %v3189 = vrot.slane %v2723, %v3188
      %v3190 = vlaneseq
      %v3191 = vshrl.u32 %v3190, 7
      %v3192 = vsub.s32 %v3081, %v3191
      %v3193 = vrot.slane %v2725, %v3192
      %v3194 = vsel %vm3086, %v3193, %v3189
      %v3195 = vlaneseq
      %v3196 = vshrl.u32 %v3195, 7
      %v3197 = vsub.s32 %v3088, %v3196
      %v3198 = vrot.slane %v2727, %v3197
      %v3199 = vsel %vm3093, %v3198, %v3194
      %v3200 = vlaneseq
      %v3201 = vshrl.u32 %v3200, 7
      %v3202 = vsub.s32 %v3095, %v3201
      %v3203 = vrot.slane %v2729, %v3202
      %v3204 = vsel %vm3100, %v3203, %v3199
      %v3205 = vlaneseq
      %v3206 = vshrl.u32 %v3205, 7
      %v3207 = vsub.s32 %v3102, %v3206
      %v3208 = vrot.slane %v2731, %v3207
      %v3209 = vsel %vm3107, %v3208, %v3204
      %v3210 = vlaneseq
      %v3211 = vshrl.u32 %v3210, 7
      %v3212 = vsub.s32 %v3109, %v3211
      %v3213 = vrot.slane %v2733, %v3212
      %v3214 = vsel %vm3114, %v3213, %v3209
      %v3215 = vlaneseq
      %v3216 = vshrl.u32 %v3215, 7
      %v3217 = vsub.s32 %v3116, %v3216
      %v3218 = vrot.slane %v2735, %v3217
      %v3219 = vsel %vm3121, %v3218, %v3214
      %v3220 = vlaneseq
      %v3221 = vshrl.u32 %v3220, 7
      %v3222 = vsub.s32 %v3123, %v3221
      %v3223 = vrot.slane %v2737, %v3222
      %v3224 = vsel %vm3128, %v3223, %v3219
      %v3225 = vlaneseq
      %v3226 = vshrl.u32 %v3225, 7
      %v3227 = vsub.s32 %v3130, %v3226
      %v3228 = vrot.slane %v2739, %v3227
      %v3229 = vsel %vm3135, %v3228, %v3224
      %v3230 = vlaneseq
      %v3231 = vshrl.u32 %v3230, 7
      %v3232 = vsub.s32 %v3137, %v3231
      %v3233 = vrot.slane %v2741, %v3232
      %v3234 = vsel %vm3142, %v3233, %v3229
      %v3235 = vlaneseq
      %v3236 = vshrl.u32 %v3235, 7
      %v3237 = vsub.s32 %v3144, %v3236
      %v3238 = vrot.slane %v2743, %v3237
      %v3239 = vsel %vm3149, %v3238, %v3234
      %v3240 = vlaneseq
      %v3241 = vshrl.u32 %v3240, 7
      %v3242 = vsub.s32 %v3151, %v3241
      %v3243 = vrot.slane %v2745, %v3242
      %v3244 = vsel %vm3156, %v3243, %v3239
      %v3245 = vlaneseq
      %v3246 = vshrl.u32 %v3245, 7
      %v3247 = vsub.s32 %v3158, %v3246
      %v3248 = vrot.slane %v2747, %v3247
      %v3249 = vsel %vm3163, %v3248, %v3244
      %v3250 = vlaneseq
      %v3251 = vshrl.u32 %v3250, 7
      %v3252 = vsub.s32 %v3165, %v3251
      %v3253 = vrot.slane %v2749, %v3252
      %v3254 = vsel %vm3170, %v3253, %v3249
      %v3255 = vlaneseq
      %v3256 = vshrl.u32 %v3255, 7
      %v3257 = vsub.s32 %v3172, %v3256
      %v3258 = vrot.slane %v2751, %v3257
      %v3259 = vsel %vm3177, %v3258, %v3254
      %v3260 = vlaneseq
      %v3261 = vshrl.u32 %v3260, 7
      %v3262 = vsub.s32 %v3179, %v3261
      %v3263 = vrot.slane %v2753, %v3262
      %v3264 = vsel %vm3184, %v3263, %v3259
      %v3265 = vlaneseq
      %v3266 = vshrl.u32 %v3265, 7
      %v3267 = vsub.s32 %v3076, %v3266
      %v3268 = vrot.slane %v2755, %v3267
      %v3269 = vlaneseq
      %v3270 = vshrl.u32 %v3269, 7
      %v3271 = vsub.s32 %v3081, %v3270
      %v3272 = vrot.slane %v2757, %v3271
      %v3273 = vsel %vm3086, %v3272, %v3268
      %v3274 = vlaneseq
      %v3275 = vshrl.u32 %v3274, 7
      %v3276 = vsub.s32 %v3088, %v3275
      %v3277 = vrot.slane %v2759, %v3276
      %v3278 = vsel %vm3093, %v3277, %v3273
      %v3279 = vlaneseq
      %v3280 = vshrl.u32 %v3279, 7
      %v3281 = vsub.s32 %v3095, %v3280
      %v3282 = vrot.slane %v2761, %v3281
      %v3283 = vsel %vm3100, %v3282, %v3278
      %v3284 = vlaneseq
      %v3285 = vshrl.u32 %v3284, 7
      %v3286 = vsub.s32 %v3102, %v3285
      %v3287 = vrot.slane %v2763, %v3286
      %v3288 = vsel %vm3107, %v3287, %v3283
      %v3289 = vlaneseq
      %v3290 = vshrl.u32 %v3289, 7
      %v3291 = vsub.s32 %v3109, %v3290
      %v3292 = vrot.slane %v2765, %v3291
      %v3293 = vsel %vm3114, %v3292, %v3288
      %v3294 = vlaneseq
      %v3295 = vshrl.u32 %v3294, 7
      %v3296 = vsub.s32 %v3116, %v3295
      %v3297 = vrot.slane %v2767, %v3296
      %v3298 = vsel %vm3121, %v3297, %v3293
      %v3299 = vlaneseq
      %v3300 = vshrl.u32 %v3299, 7
      %v3301 = vsub.s32 %v3123, %v3300
      %v3302 = vrot.slane %v2769, %v3301
      %v3303 = vsel %vm3128, %v3302, %v3298
      %v3304 = vlaneseq
      %v3305 = vshrl.u32 %v3304, 7
      %v3306 = vsub.s32 %v3130, %v3305
      %v3307 = vrot.slane %v2771, %v3306
      %v3308 = vsel %vm3135, %v3307, %v3303
      %v3309 = vlaneseq
      %v3310 = vshrl.u32 %v3309, 7
      %v3311 = vsub.s32 %v3137, %v3310
      %v3312 = vrot.slane %v2773, %v3311
      %v3313 = vsel %vm3142, %v3312, %v3308
      %v3314 = vlaneseq
      %v3315 = vshrl.u32 %v3314, 7
      %v3316 = vsub.s32 %v3144, %v3315
      %v3317 = vrot.slane %v2775, %v3316
      %v3318 = vsel %vm3149, %v3317, %v3313
      %v3319 = vlaneseq
      %v3320 = vshrl.u32 %v3319, 7
      %v3321 = vsub.s32 %v3151, %v3320
      %v3322 = vrot.slane %v2777, %v3321
      %v3323 = vsel %vm3156, %v3322, %v3318
      %v3324 = vlaneseq
      %v3325 = vshrl.u32 %v3324, 7
      %v3326 = vsub.s32 %v3158, %v3325
      %v3327 = vrot.slane %v2779, %v3326
      %v3328 = vsel %vm3163, %v3327, %v3323
      %v3329 = vlaneseq
      %v3330 = vshrl.u32 %v3329, 7
      %v3331 = vsub.s32 %v3165, %v3330
      %v3332 = vrot.slane %v2781, %v3331
      %v3333 = vsel %vm3170, %v3332, %v3328
      %v3334 = vlaneseq
      %v3335 = vshrl.u32 %v3334, 7
      %v3336 = vsub.s32 %v3172, %v3335
      %v3337 = vrot.slane %v2783, %v3336
      %v3338 = vsel %vm3177, %v3337, %v3333
      %v3339 = vlaneseq
      %v3340 = vshrl.u32 %v3339, 7
      %v3341 = vsub.s32 %v3179, %v3340
      %v3342 = vrot.slane %v2785, %v3341
      %v3343 = vsel %vm3184, %v3342, %v3338
      %v3344 = vlaneseq
      %v3345 = vshrl.u32 %v3344, 7
      %v3346 = vsub.s32 %v3076, %v3345
      %v3347 = vrot.slane %v2787, %v3346
      %v3348 = vlaneseq
      %v3349 = vshrl.u32 %v3348, 7
      %v3350 = vsub.s32 %v3081, %v3349
      %v3351 = vrot.slane %v2789, %v3350
      %v3352 = vsel %vm3086, %v3351, %v3347
      %v3353 = vlaneseq
      %v3354 = vshrl.u32 %v3353, 7
      %v3355 = vsub.s32 %v3088, %v3354
      %v3356 = vrot.slane %v2791, %v3355
      %v3357 = vsel %vm3093, %v3356, %v3352
      %v3358 = vlaneseq
      %v3359 = vshrl.u32 %v3358, 7
      %v3360 = vsub.s32 %v3095, %v3359
      %v3361 = vrot.slane %v2793, %v3360
      %v3362 = vsel %vm3100, %v3361, %v3357
      %v3363 = vlaneseq
      %v3364 = vshrl.u32 %v3363, 7
      %v3365 = vsub.s32 %v3102, %v3364
      %v3366 = vrot.slane %v2795, %v3365
      %v3367 = vsel %vm3107, %v3366, %v3362
      %v3368 = vlaneseq
      %v3369 = vshrl.u32 %v3368, 7
      %v3370 = vsub.s32 %v3109, %v3369
      %v3371 = vrot.slane %v2797, %v3370
      %v3372 = vsel %vm3114, %v3371, %v3367
      %v3373 = vlaneseq
      %v3374 = vshrl.u32 %v3373, 7
      %v3375 = vsub.s32 %v3116, %v3374
      %v3376 = vrot.slane %v2799, %v3375
      %v3377 = vsel %vm3121, %v3376, %v3372
      %v3378 = vlaneseq
      %v3379 = vshrl.u32 %v3378, 7
      %v3380 = vsub.s32 %v3123, %v3379
      %v3381 = vrot.slane %v2801, %v3380
      %v3382 = vsel %vm3128, %v3381, %v3377
      %v3383 = vlaneseq
      %v3384 = vshrl.u32 %v3383, 7
      %v3385 = vsub.s32 %v3130, %v3384
      %v3386 = vrot.slane %v2803, %v3385
      %v3387 = vsel %vm3135, %v3386, %v3382
      %v3388 = vlaneseq
      %v3389 = vshrl.u32 %v3388, 7
      %v3390 = vsub.s32 %v3137, %v3389
      %v3391 = vrot.slane %v2805, %v3390
      %v3392 = vsel %vm3142, %v3391, %v3387
      %v3393 = vlaneseq
      %v3394 = vshrl.u32 %v3393, 7
      %v3395 = vsub.s32 %v3144, %v3394
      %v3396 = vrot.slane %v2807, %v3395
      %v3397 = vsel %vm3149, %v3396, %v3392
      %v3398 = vlaneseq
      %v3399 = vshrl.u32 %v3398, 7
      %v3400 = vsub.s32 %v3151, %v3399
      %v3401 = vrot.slane %v2809, %v3400
      %v3402 = vsel %vm3156, %v3401, %v3397
      %v3403 = vlaneseq
      %v3404 = vshrl.u32 %v3403, 7
      %v3405 = vsub.s32 %v3158, %v3404
      %v3406 = vrot.slane %v2811, %v3405
      %v3407 = vsel %vm3163, %v3406, %v3402
      %v3408 = vlaneseq
      %v3409 = vshrl.u32 %v3408, 7
      %v3410 = vsub.s32 %v3165, %v3409
      %v3411 = vrot.slane %v2813, %v3410
      %v3412 = vsel %vm3170, %v3411, %v3407
      %v3413 = vlaneseq
      %v3414 = vshrl.u32 %v3413, 7
      %v3415 = vsub.s32 %v3172, %v3414
      %v3416 = vrot.slane %v2815, %v3415
      %v3417 = vsel %vm3177, %v3416, %v3412
      %v3418 = vlaneseq
      %v3419 = vshrl.u32 %v3418, 7
      %v3420 = vsub.s32 %v3179, %v3419
      %v3421 = vrot.slane %v2817, %v3420
      %v3422 = vsel %vm3184, %v3421, %v3417
      %v3423 = vlaneseq
      %v3424 = vshrl.u32 %v3423, 7
      %v3425 = vsub.s32 %v3076, %v3424
      %v3426 = vrot.slane %v2819, %v3425
      %v3427 = vlaneseq
      %v3428 = vshrl.u32 %v3427, 7
      %v3429 = vsub.s32 %v3081, %v3428
      %v3430 = vrot.slane %v2821, %v3429
      %v3431 = vsel %vm3086, %v3430, %v3426
      %v3432 = vlaneseq
      %v3433 = vshrl.u32 %v3432, 7
      %v3434 = vsub.s32 %v3088, %v3433
      %v3435 = vrot.slane %v2823, %v3434
      %v3436 = vsel %vm3093, %v3435, %v3431
      %v3437 = vlaneseq
      %v3438 = vshrl.u32 %v3437, 7
      %v3439 = vsub.s32 %v3095, %v3438
      %v3440 = vrot.slane %v2825, %v3439
      %v3441 = vsel %vm3100, %v3440, %v3436
      %v3442 = vlaneseq
      %v3443 = vshrl.u32 %v3442, 7
      %v3444 = vsub.s32 %v3102, %v3443
      %v3445 = vrot.slane %v2827, %v3444
      %v3446 = vsel %vm3107, %v3445, %v3441
      %v3447 = vlaneseq
      %v3448 = vshrl.u32 %v3447, 7
      %v3449 = vsub.s32 %v3109, %v3448
      %v3450 = vrot.slane %v2829, %v3449
      %v3451 = vsel %vm3114, %v3450, %v3446
      %v3452 = vlaneseq
      %v3453 = vshrl.u32 %v3452, 7
      %v3454 = vsub.s32 %v3116, %v3453
      %v3455 = vrot.slane %v2831, %v3454
      %v3456 = vsel %vm3121, %v3455, %v3451
      %v3457 = vlaneseq
      %v3458 = vshrl.u32 %v3457, 7
      %v3459 = vsub.s32 %v3123, %v3458
      %v3460 = vrot.slane %v2833, %v3459
      %v3461 = vsel %vm3128, %v3460, %v3456
      %v3462 = vlaneseq
      %v3463 = vshrl.u32 %v3462, 7
      %v3464 = vsub.s32 %v3130, %v3463
      %v3465 = vrot.slane %v2835, %v3464
      %v3466 = vsel %vm3135, %v3465, %v3461
      %v3467 = vlaneseq
      %v3468 = vshrl.u32 %v3467, 7
      %v3469 = vsub.s32 %v3137, %v3468
      %v3470 = vrot.slane %v2837, %v3469
      %v3471 = vsel %vm3142, %v3470, %v3466
      %v3472 = vlaneseq
      %v3473 = vshrl.u32 %v3472, 7
      %v3474 = vsub.s32 %v3144, %v3473
      %v3475 = vrot.slane %v2839, %v3474
      %v3476 = vsel %vm3149, %v3475, %v3471
      %v3477 = vlaneseq
      %v3478 = vshrl.u32 %v3477, 7
      %v3479 = vsub.s32 %v3151, %v3478
      %v3480 = vrot.slane %v2841, %v3479
      %v3481 = vsel %vm3156, %v3480, %v3476
      %v3482 = vlaneseq
      %v3483 = vshrl.u32 %v3482, 7
      %v3484 = vsub.s32 %v3158, %v3483
      %v3485 = vrot.slane %v2843, %v3484
      %v3486 = vsel %vm3163, %v3485, %v3481
      %v3487 = vlaneseq
      %v3488 = vshrl.u32 %v3487, 7
      %v3489 = vsub.s32 %v3165, %v3488
      %v3490 = vrot.slane %v2845, %v3489
      %v3491 = vsel %vm3170, %v3490, %v3486
      %v3492 = vlaneseq
      %v3493 = vshrl.u32 %v3492, 7
      %v3494 = vsub.s32 %v3172, %v3493
      %v3495 = vrot.slane %v2847, %v3494
      %v3496 = vsel %vm3177, %v3495, %v3491
      %v3497 = vlaneseq
      %v3498 = vshrl.u32 %v3497, 7
      %v3499 = vsub.s32 %v3179, %v3498
      %v3500 = vrot.slane %v2849, %v3499
      %v3501 = vsel %vm3184, %v3500, %v3496
      %v3502 = vlaneseq
      %v3503 = vshrl.u32 %v3502, 7
      %v3504 = vsub.s32 %v3076, %v3503
      %v3505 = vrot.slane %v2851, %v3504
      %v3506 = vlaneseq
      %v3507 = vshrl.u32 %v3506, 7
      %v3508 = vsub.s32 %v3081, %v3507
      %v3509 = vrot.slane %v2853, %v3508
      %v3510 = vsel %vm3086, %v3509, %v3505
      %v3511 = vlaneseq
      %v3512 = vshrl.u32 %v3511, 7
      %v3513 = vsub.s32 %v3088, %v3512
      %v3514 = vrot.slane %v2855, %v3513
      %v3515 = vsel %vm3093, %v3514, %v3510
      %v3516 = vlaneseq
      %v3517 = vshrl.u32 %v3516, 7
      %v3518 = vsub.s32 %v3095, %v3517
      %v3519 = vrot.slane %v2857, %v3518
      %v3520 = vsel %vm3100, %v3519, %v3515
      %v3521 = vlaneseq
      %v3522 = vshrl.u32 %v3521, 7
      %v3523 = vsub.s32 %v3102, %v3522
      %v3524 = vrot.slane %v2859, %v3523
      %v3525 = vsel %vm3107, %v3524, %v3520
      %v3526 = vlaneseq
      %v3527 = vshrl.u32 %v3526, 7
      %v3528 = vsub.s32 %v3109, %v3527
      %v3529 = vrot.slane %v2861, %v3528
      %v3530 = vsel %vm3114, %v3529, %v3525
      %v3531 = vlaneseq
      %v3532 = vshrl.u32 %v3531, 7
      %v3533 = vsub.s32 %v3116, %v3532
      %v3534 = vrot.slane %v2863, %v3533
      %v3535 = vsel %vm3121, %v3534, %v3530
      %v3536 = vlaneseq
      %v3537 = vshrl.u32 %v3536, 7
      %v3538 = vsub.s32 %v3123, %v3537
      %v3539 = vrot.slane %v2865, %v3538
      %v3540 = vsel %vm3128, %v3539, %v3535
      %v3541 = vlaneseq
      %v3542 = vshrl.u32 %v3541, 7
      %v3543 = vsub.s32 %v3130, %v3542
      %v3544 = vrot.slane %v2867, %v3543
      %v3545 = vsel %vm3135, %v3544, %v3540
      %v3546 = vlaneseq
      %v3547 = vshrl.u32 %v3546, 7
      %v3548 = vsub.s32 %v3137, %v3547
      %v3549 = vrot.slane %v2869, %v3548
      %v3550 = vsel %vm3142, %v3549, %v3545
      %v3551 = vlaneseq
      %v3552 = vshrl.u32 %v3551, 7
      %v3553 = vsub.s32 %v3144, %v3552
      %v3554 = vrot.slane %v2871, %v3553
      %v3555 = vsel %vm3149, %v3554, %v3550
      %v3556 = vlaneseq
      %v3557 = vshrl.u32 %v3556, 7
      %v3558 = vsub.s32 %v3151, %v3557
      %v3559 = vrot.slane %v2873, %v3558
      %v3560 = vsel %vm3156, %v3559, %v3555
      %v3561 = vlaneseq
      %v3562 = vshrl.u32 %v3561, 7
      %v3563 = vsub.s32 %v3158, %v3562
      %v3564 = vrot.slane %v2875, %v3563
      %v3565 = vsel %vm3163, %v3564, %v3560
      %v3566 = vlaneseq
      %v3567 = vshrl.u32 %v3566, 7
      %v3568 = vsub.s32 %v3165, %v3567
      %v3569 = vrot.slane %v2877, %v3568
      %v3570 = vsel %vm3170, %v3569, %v3565
      %v3571 = vlaneseq
      %v3572 = vshrl.u32 %v3571, 7
      %v3573 = vsub.s32 %v3172, %v3572
      %v3574 = vrot.slane %v2879, %v3573
      %v3575 = vsel %vm3177, %v3574, %v3570
      %v3576 = vlaneseq
      %v3577 = vshrl.u32 %v3576, 7
      %v3578 = vsub.s32 %v3179, %v3577
      %v3579 = vrot.slane %v2881, %v3578
      %v3580 = vsel %vm3184, %v3579, %v3575
      %v3581 = vlaneseq
      %v3582 = vshrl.u32 %v3581, 7
      %v3583 = vsub.s32 %v3076, %v3582
      %v3584 = vrot.slane %v2883, %v3583
      %v3585 = vlaneseq
      %v3586 = vshrl.u32 %v3585, 7
      %v3587 = vsub.s32 %v3081, %v3586
      %v3588 = vrot.slane %v2885, %v3587
      %v3589 = vsel %vm3086, %v3588, %v3584
      %v3590 = vlaneseq
      %v3591 = vshrl.u32 %v3590, 7
      %v3592 = vsub.s32 %v3088, %v3591
      %v3593 = vrot.slane %v2887, %v3592
      %v3594 = vsel %vm3093, %v3593, %v3589
      %v3595 = vlaneseq
      %v3596 = vshrl.u32 %v3595, 7
      %v3597 = vsub.s32 %v3095, %v3596
      %v3598 = vrot.slane %v2889, %v3597
      %v3599 = vsel %vm3100, %v3598, %v3594
      %v3600 = vlaneseq
      %v3601 = vshrl.u32 %v3600, 7
      %v3602 = vsub.s32 %v3102, %v3601
      %v3603 = vrot.slane %v2891, %v3602
      %v3604 = vsel %vm3107, %v3603, %v3599
      %v3605 = vlaneseq
      %v3606 = vshrl.u32 %v3605, 7
      %v3607 = vsub.s32 %v3109, %v3606
      %v3608 = vrot.slane %v2893, %v3607
      %v3609 = vsel %vm3114, %v3608, %v3604
      %v3610 = vlaneseq
      %v3611 = vshrl.u32 %v3610, 7
      %v3612 = vsub.s32 %v3116, %v3611
      %v3613 = vrot.slane %v2895, %v3612
      %v3614 = vsel %vm3121, %v3613, %v3609
      %v3615 = vlaneseq
      %v3616 = vshrl.u32 %v3615, 7
      %v3617 = vsub.s32 %v3123, %v3616
      %v3618 = vrot.slane %v2897, %v3617
      %v3619 = vsel %vm3128, %v3618, %v3614
      %v3620 = vlaneseq
      %v3621 = vshrl.u32 %v3620, 7
      %v3622 = vsub.s32 %v3130, %v3621
      %v3623 = vrot.slane %v2899, %v3622
      %v3624 = vsel %vm3135, %v3623, %v3619
      %v3625 = vlaneseq
      %v3626 = vshrl.u32 %v3625, 7
      %v3627 = vsub.s32 %v3137, %v3626
      %v3628 = vrot.slane %v2901, %v3627
      %v3629 = vsel %vm3142, %v3628, %v3624
      %v3630 = vlaneseq
      %v3631 = vshrl.u32 %v3630, 7
      %v3632 = vsub.s32 %v3144, %v3631
      %v3633 = vrot.slane %v2903, %v3632
      %v3634 = vsel %vm3149, %v3633, %v3629
      %v3635 = vlaneseq
      %v3636 = vshrl.u32 %v3635, 7
      %v3637 = vsub.s32 %v3151, %v3636
      %v3638 = vrot.slane %v2905, %v3637
      %v3639 = vsel %vm3156, %v3638, %v3634
      %v3640 = vlaneseq
      %v3641 = vshrl.u32 %v3640, 7
      %v3642 = vsub.s32 %v3158, %v3641
      %v3643 = vrot.slane %v2907, %v3642
      %v3644 = vsel %vm3163, %v3643, %v3639
      %v3645 = vlaneseq
      %v3646 = vshrl.u32 %v3645, 7
      %v3647 = vsub.s32 %v3165, %v3646
      %v3648 = vrot.slane %v2909, %v3647
      %v3649 = vsel %vm3170, %v3648, %v3644
      %v3650 = vlaneseq
      %v3651 = vshrl.u32 %v3650, 7
      %v3652 = vsub.s32 %v3172, %v3651
      %v3653 = vrot.slane %v2911, %v3652
      %v3654 = vsel %vm3177, %v3653, %v3649
      %v3655 = vlaneseq
      %v3656 = vshrl.u32 %v3655, 7
      %v3657 = vsub.s32 %v3179, %v3656
      %v3658 = vrot.slane %v2913, %v3657
      %v3659 = vsel %vm3184, %v3658, %v3654
      %v3660 = vlaneseq
      %v3661 = vshrl.u32 %v3660, 7
      %v3662 = vsub.s32 %v3076, %v3661
      %v3663 = vrot.slane %v2915, %v3662
      %v3664 = vlaneseq
      %v3665 = vshrl.u32 %v3664, 7
      %v3666 = vsub.s32 %v3081, %v3665
      %v3667 = vrot.slane %v2917, %v3666
      %v3668 = vsel %vm3086, %v3667, %v3663
      %v3669 = vlaneseq
      %v3670 = vshrl.u32 %v3669, 7
      %v3671 = vsub.s32 %v3088, %v3670
      %v3672 = vrot.slane %v2919, %v3671
      %v3673 = vsel %vm3093, %v3672, %v3668
      %v3674 = vlaneseq
      %v3675 = vshrl.u32 %v3674, 7
      %v3676 = vsub.s32 %v3095, %v3675
      %v3677 = vrot.slane %v2921, %v3676
      %v3678 = vsel %vm3100, %v3677, %v3673
      %v3679 = vlaneseq
      %v3680 = vshrl.u32 %v3679, 7
      %v3681 = vsub.s32 %v3102, %v3680
      %v3682 = vrot.slane %v2923, %v3681
      %v3683 = vsel %vm3107, %v3682, %v3678
      %v3684 = vlaneseq
      %v3685 = vshrl.u32 %v3684, 7
      %v3686 = vsub.s32 %v3109, %v3685
      %v3687 = vrot.slane %v2925, %v3686
      %v3688 = vsel %vm3114, %v3687, %v3683
      %v3689 = vlaneseq
      %v3690 = vshrl.u32 %v3689, 7
      %v3691 = vsub.s32 %v3116, %v3690
      %v3692 = vrot.slane %v2927, %v3691
      %v3693 = vsel %vm3121, %v3692, %v3688
      %v3694 = vlaneseq
      %v3695 = vshrl.u32 %v3694, 7
      %v3696 = vsub.s32 %v3123, %v3695
      %v3697 = vrot.slane %v2929, %v3696
      %v3698 = vsel %vm3128, %v3697, %v3693
      %v3699 = vlaneseq
      %v3700 = vshrl.u32 %v3699, 7
      %v3701 = vsub.s32 %v3130, %v3700
      %v3702 = vrot.slane %v2931, %v3701
      %v3703 = vsel %vm3135, %v3702, %v3698
      %v3704 = vlaneseq
      %v3705 = vshrl.u32 %v3704, 7
      %v3706 = vsub.s32 %v3137, %v3705
      %v3707 = vrot.slane %v2933, %v3706
      %v3708 = vsel %vm3142, %v3707, %v3703
      %v3709 = vlaneseq
      %v3710 = vshrl.u32 %v3709, 7
      %v3711 = vsub.s32 %v3144, %v3710
      %v3712 = vrot.slane %v2935, %v3711
      %v3713 = vsel %vm3149, %v3712, %v3708
      %v3714 = vlaneseq
      %v3715 = vshrl.u32 %v3714, 7
      %v3716 = vsub.s32 %v3151, %v3715
      %v3717 = vrot.slane %v2937, %v3716
      %v3718 = vsel %vm3156, %v3717, %v3713
      %v3719 = vlaneseq
      %v3720 = vshrl.u32 %v3719, 7
      %v3721 = vsub.s32 %v3158, %v3720
      %v3722 = vrot.slane %v2939, %v3721
      %v3723 = vsel %vm3163, %v3722, %v3718
      %v3724 = vlaneseq
      %v3725 = vshrl.u32 %v3724, 7
      %v3726 = vsub.s32 %v3165, %v3725
      %v3727 = vrot.slane %v2941, %v3726
      %v3728 = vsel %vm3170, %v3727, %v3723
      %v3729 = vlaneseq
      %v3730 = vshrl.u32 %v3729, 7
      %v3731 = vsub.s32 %v3172, %v3730
      %v3732 = vrot.slane %v2943, %v3731
      %v3733 = vsel %vm3177, %v3732, %v3728
      %v3734 = vlaneseq
      %v3735 = vshrl.u32 %v3734, 7
      %v3736 = vsub.s32 %v3179, %v3735
      %v3737 = vrot.slane %v2945, %v3736
      %v3738 = vsel %vm3184, %v3737, %v3733
      %vm3739 = vcmask 1041409
      %v3740 = vsel %vm3739, %v3264, %v3185
      %vm3741 = vcmask 1042434
      %v3742 = vsel %vm3741, %v3343, %v3740
      %vm3743 = vcmask 1043459
      %v3744 = vsel %vm3743, %v3422, %v3742
      %vm3745 = vcmask 1044484
      %v3746 = vsel %vm3745, %v3501, %v3744
      %vm3747 = vcmask 1045509
      %v3748 = vsel %vm3747, %v3580, %v3746
      %vm3749 = vcmask 1046534
      %v3750 = vsel %vm3749, %v3659, %v3748
      %vm3751 = vcmask 1047559
      %v3752 = vsel %vm3751, %v3738, %v3750
      %v3754 = vadd.f32 %v2946, %v3752
      %3755 = vst [vmem:[#allocation2] sm:$0xff] %v3754
    $region14: #{tpu_custom_call.1} parent=1 // loop_footer
      %s19 = sadd.s32 1, %s15
    $region15: #{tpu_custom_call.1} parent=1 // loop_footer_branch
      %14 = sbr.rel target = $region11
    $region16: #{tpu_custom_call.1} parent=1 // loop_exit
      _
    // Predicated region
    $region17: #{tpu_custom_call.1} parent=1 // pred_check
      _
    $region18: #{tpu_custom_call.1} parent=1 // pred_check_branch
      %3757 = sbr.rel (0) target = $region20
    $region19: #{tpu_custom_call.1} parent=1 // pred_region
      %s3759 = ssub.s32 128, 128
      %3760 = vsyncadd [#allocation3], %s3759
      %s3762 = sshll.u32 [#allocation2], 4
      %s3763 = int_to_ptr.vmem [resolvable:$true] %s3762
      %3765 = dma.vmem_to_hbm [thread:$0]  %s3763, 128, %s2, [#allocation3]
    $region20: #{tpu_custom_call.1} parent=1 // pred_fallthru
      _
    // Predicated region
    $region21: #{tpu_custom_call.1} parent=1 // pred_check
      _
    $region22: #{tpu_custom_call.1} parent=1 // pred_check_branch
      %3767 = sbr.rel (0) target = $region24
    $region23: #{tpu_custom_call.1} parent=1 // pred_region
      %3768 = dma.done [#allocation3], 128
    $region24: #{tpu_custom_call.1} parent=1 // pred_fallthru
      _
    %3769 = vsyncpa [#allocation3], 1

</llo_original>
